<compile_context>
chip_gen: v5e
topology: v5e:2x2
jax: 0.10.0
libtpu: 0.0.40
codegen_flags: <defaults>
</compile_context>

<pallas_src>
import jax
import jax.numpy as jnp
from jax.experimental import pallas as pl
from jax.experimental.pallas import tpu as pltpu

IN_DIM = 56 * 56 * 3   # 9408
H1 = 128
H2 = 64
OUT_DIM = 2


def _round_up(x, m):
    return (x + m - 1) // m * m


def illumination_gate_kernel(x_ref, w1_ref, b1_ref, w2_ref, b2_ref,
                             wd_ref, scalars_ref, out_ref):
    # Layer 1: cast the f32 x tile to bf16 in-register (no extra HBM pass),
    # bf16 x bf16 on the MXU, f32 accumulation. This is the HBM-bound layer.
    x = x_ref[...].astype(jnp.bfloat16)
    h1 = jnp.dot(x, w1_ref[...], preferred_element_type=jnp.float32)
    h1 = jnp.maximum(h1 + b1_ref[...], 0.0)

    # Layer 2 (negligible FLOPs; kept in f32 for accuracy).
    h2 = jnp.dot(h1, w2_ref[...], preferred_element_type=jnp.float32)
    h2 = jnp.maximum(h2 + b2_ref[...], 0.0)

    # Layer 3 folded into a logit-difference column: d = l0 - l1.
    d = jnp.dot(h2, wd_ref[...], preferred_element_type=jnp.float32) + scalars_ref[0, 1]

    # Closed-form 2-class softmax: p1 = 1/(1+exp(d)), p0 = 1-p1, scaled by beta.
    # Numerically stable (exp overflow -> inf -> recip 0) and avoids cross-lane
    # max/sum reductions on a 2-wide, heavily padded lane axis.
    p1 = pl.reciprocal(1.0 + jnp.exp(d), approx=True)
    p0 = 1.0 - p1
    beta = scalars_ref[0, 0]
    out_ref[...] = (jnp.concatenate([p0, p1], axis=1) * beta).astype(out_ref.dtype)


def illumination_gate(rgb_img, params, *, block_b=256):
    """rgb_img: (B, 3, 56, 56) float32, NCHW. Returns (B, 2) float32."""
    B = rgb_img.shape[0]
    w1, b1, w2, b2, w3, b3, beta = params

    # Flatten exactly like torch .view(B, -1); keep x in f32 — the bf16 cast
    # happens inside the kernel so x is read from HBM exactly once.
    x = rgb_img.reshape(B, -1)
    # W1 is small (~2.3 MiB bf16) and VMEM-resident across the grid; its
    # one-time wrapper-side cast is negligible vs. the x stream.
    w1_bf16 = w1.astype(jnp.bfloat16)

    # Fold layer 3 into a logit-difference vector; pack the two scalars
    # (beta, b3[0]-b3[1]) into one SMEM-resident array.
    wd = (w3[:, 0] - w3[:, 1]).reshape(H2, 1)
    scalars = jnp.stack([beta[0, 0], b3[0, 0] - b3[0, 1]]).reshape(1, 2)

    # Batch tile: multiple of 8 (sublane); capped at ceil(B/2) so the grid has
    # >= 2 steps whenever possible (both v7x TensorCores get work). block_b=256
    # keeps the f32 double-buffered x tiles (~19 MiB) inside every gen's VMEM.
    tb = min(block_b, max(8, _round_up(pl.cdiv(B, 2), 8)))
    grid = (pl.cdiv(B, tb),)

    cost = pl.CostEstimate(
        flops=2 * B * (IN_DIM * H1 + H1 * H2 + H2),
        transcendentals=B,
        bytes_accessed=B * IN_DIM * 4 + IN_DIM * H1 * 2
                       + (H1 * H2 + H1 + H2 + H2) * 4 + B * OUT_DIM * 4,
    )

    return pl.pallas_call(
        illumination_gate_kernel,
        out_shape=jax.ShapeDtypeStruct((B, OUT_DIM), jnp.float32),
        grid=grid,
        in_specs=[
            # x streams per batch tile; weights/biases have constant block
            # indices so they stay VMEM-resident across the whole grid.
            pl.BlockSpec((tb, IN_DIM), lambda i: (i, 0)),
            pl.BlockSpec((IN_DIM, H1), lambda i: (0, 0)),
            pl.BlockSpec((1, H1), lambda i: (0, 0)),
            pl.BlockSpec((H1, H2), lambda i: (0, 0)),
            pl.BlockSpec((1, H2), lambda i: (0, 0)),
            pl.BlockSpec((H2, 1), lambda i: (0, 0)),
            pl.BlockSpec(memory_space=pltpu.MemorySpace.SMEM),   # (beta, b3 diff)
        ],
        out_specs=pl.BlockSpec((tb, OUT_DIM), lambda i: (i, 0)),
        compiler_params=pltpu.CompilerParams(
            # Shard batch tiles across both TensorCores on v7x; no-op on v5e/v6e.
            dimension_semantics=("parallel",),
            # f32 x tile (TB=256 -> 9.6 MiB) x 2 buffers + buffered bf16 W1
            # (~4.8 MiB) + small layers ~ 25 MiB; 48 MiB leaves headroom and
            # fits every generation (v7x physical VMEM = 64 MiB).
            vmem_limit_bytes=48 << 20,
        ),
        cost_estimate=cost,
    )(x, w1_bf16, b1, w2, b2, wd, scalars)


def init_params(key):
    """Deterministic synthetic parameters (shapes from the module __init__)."""
    k1, k2, k3 = jax.random.split(key, 3)
    # Stored as (in, out); biases kept 2-D (1, out) for TPU-friendly layout.
    w1 = jax.random.normal(k1, (IN_DIM, H1), jnp.float32) * 0.01
    b1 = jnp.zeros((1, H1), jnp.float32)
    w2 = jax.random.normal(k2, (H1, H2), jnp.float32) * 0.05
    b2 = jnp.zeros((1, H2), jnp.float32)
    w3 = jax.random.normal(k3, (H2, OUT_DIM), jnp.float32) * 0.05
    b3 = jnp.zeros((1, OUT_DIM), jnp.float32)
    beta = jnp.full((1, 1), 0.7, jnp.float32)   # nn.Parameter(torch.tensor(0.7))
    return (w1, b1, w2, b2, w3, b3, beta)


def reference(rgb_img, params):
    """Pure-JAX f32 reference for correctness checks."""
    w1, b1, w2, b2, w3, b3, beta = params
    x = rgb_img.reshape(rgb_img.shape[0], -1)
    h1 = jnp.maximum(x @ w1 + b1, 0.0)
    h2 = jnp.maximum(h1 @ w2 + b2, 0.0)
    logits = h2 @ w3 + b3
    probs = jax.nn.softmax(logits, axis=1)
    return probs * beta[0, 0]


if __name__ == "__main__":
    key = jax.random.PRNGKey(0)
    k_x, k_p = jax.random.split(key)
    params = init_params(k_p)

    # Primary small-shape test (B=2): single grid step with a partial tile
    # (no jnp.pad; Pallas masks the out-of-bounds rows).
    B = 2
    rgb_img = jax.random.uniform(k_x, (B, 3, 56, 56), jnp.float32)
    out = jax.block_until_ready(illumination_gate(rgb_img, params))
    ref = reference(rgb_img, params)
    assert out.shape == (B, OUT_DIM)
    # bf16 layer-1 compute with f32 accumulation -> relaxed tolerance vs f32 ref.
    assert jnp.allclose(out, ref, atol=1e-2, rtol=1e-2)

    # Secondary test: multiple grid steps + partial last tile (B=20, TB=8).
    B2 = 20
    rgb_img2 = jax.random.uniform(jax.random.PRNGKey(7), (B2, 3, 56, 56), jnp.float32)
    out2 = jax.block_until_ready(illumination_gate(rgb_img2, params, block_b=8))
    ref2 = reference(rgb_img2, params)
    assert out2.shape == (B2, OUT_DIM)
    assert jnp.allclose(out2, ref2, atol=1e-2, rtol=1e-2)

    print("KERNEL_OK")
</pallas_src>

<mosaic_0001>
module attributes {stable_mosaic.version = 11 : i64} {
  func.func @illumination_gate_kernel(%arg0: i32, %arg1: memref<8x9408xf32, #tpu.memory_space<vmem>>, %arg2: memref<9408x128xbf16, #tpu.memory_space<vmem>>, %arg3: memref<1x128xf32, #tpu.memory_space<vmem>>, %arg4: memref<128x64xf32, #tpu.memory_space<vmem>>, %arg5: memref<1x64xf32, #tpu.memory_space<vmem>>, %arg6: memref<64x1xf32, #tpu.memory_space<vmem>>, %arg7: memref<1x2xf32, #tpu.memory_space<smem>>, %arg8: memref<8x2xf32, #tpu.memory_space<vmem>>) attributes {dimension_semantics = [#tpu.dimension_semantics<parallel>], iteration_bounds = array<i64: 1>, scalar_prefetch = 0 : i64, scratch_operands = 0 : i64, tpu.core_type = #tpu.core_type<tc>, window_params = [{transform_indices = @transform_0, window_bounds = array<i64: 8, 9408>}, {pipeline_mode = #tpu.pipeline_mode<synchronous>, transform_indices = @transform_1, window_bounds = array<i64: 9408, 128>}, {pipeline_mode = #tpu.pipeline_mode<synchronous>, transform_indices = @transform_2, window_bounds = array<i64: 1, 128>}, {pipeline_mode = #tpu.pipeline_mode<synchronous>, transform_indices = @transform_3, window_bounds = array<i64: 128, 64>}, {pipeline_mode = #tpu.pipeline_mode<synchronous>, transform_indices = @transform_4, window_bounds = array<i64: 1, 64>}, {pipeline_mode = #tpu.pipeline_mode<synchronous>, transform_indices = @transform_5, window_bounds = array<i64: 64, 1>}, {transform_indices = @transform_6, window_bounds = array<i64: 1, 2>}, {transform_indices = @transform_7, window_bounds = array<i64: 8, 2>}]} {
    %c0 = arith.constant 0 : index
    %c0_0 = arith.constant 0 : index
    %0 = vector.load %arg1[%c0, %c0_0] : memref<8x9408xf32, #tpu.memory_space<vmem>>, vector<8x9408xf32>
    %1 = arith.truncf %0 : vector<8x9408xf32> to vector<8x9408xbf16>
    %c0_1 = arith.constant 0 : index
    %c0_2 = arith.constant 0 : index
    %2 = vector.load %arg2[%c0_1, %c0_2] : memref<9408x128xbf16, #tpu.memory_space<vmem>>, vector<9408x128xbf16>
    %cst = arith.constant dense<0.000000e+00> : vector<8x128xf32>
    %3 = tpu.matmul %1, %2, %cst {dimension_numbers = #tpu.dot_dimension_numbers<[1], [0], [0], [1], [0, 0, 1, 1], [], []>} : vector<8x9408xbf16>, vector<9408x128xbf16>, vector<8x128xf32> -> vector<8x128xf32>
    %c0_3 = arith.constant 0 : index
    %c0_4 = arith.constant 0 : index
    %4 = vector.load %arg3[%c0_3, %c0_4] : memref<1x128xf32, #tpu.memory_space<vmem>>, vector<1x128xf32>
    %5 = vector.broadcast %4 : vector<1x128xf32> to vector<8x128xf32>
    %6 = arith.addf %3, %5 : vector<8x128xf32>
    %cst_5 = arith.constant 0.000000e+00 : f32
    %7 = vector.broadcast %cst_5 : f32 to vector<8x128xf32>
    %8 = arith.maximumf %6, %7 : vector<8x128xf32>
    %c0_6 = arith.constant 0 : index
    %c0_7 = arith.constant 0 : index
    %9 = vector.load %arg4[%c0_6, %c0_7] : memref<128x64xf32, #tpu.memory_space<vmem>>, vector<128x64xf32>
    %cst_8 = arith.constant dense<0.000000e+00> : vector<8x64xf32>
    %10 = tpu.matmul %8, %9, %cst_8 {dimension_numbers = #tpu.dot_dimension_numbers<[1], [0], [0], [1], [0, 0, 1, 1], [], []>} : vector<8x128xf32>, vector<128x64xf32>, vector<8x64xf32> -> vector<8x64xf32>
    %c0_9 = arith.constant 0 : index
    %c0_10 = arith.constant 0 : index
    %11 = vector.load %arg5[%c0_9, %c0_10] : memref<1x64xf32, #tpu.memory_space<vmem>>, vector<1x64xf32>
    %12 = vector.broadcast %11 : vector<1x64xf32> to vector<8x64xf32>
    %13 = arith.addf %10, %12 : vector<8x64xf32>
    %cst_11 = arith.constant 0.000000e+00 : f32
    %14 = vector.broadcast %cst_11 : f32 to vector<8x64xf32>
    %15 = arith.maximumf %13, %14 : vector<8x64xf32>
    %c0_12 = arith.constant 0 : index
    %c0_13 = arith.constant 0 : index
    %16 = vector.load %arg6[%c0_12, %c0_13] : memref<64x1xf32, #tpu.memory_space<vmem>>, vector<64x1xf32>
    %cst_14 = arith.constant dense<0.000000e+00> : vector<8x1xf32>
    %17 = tpu.matmul %15, %16, %cst_14 {dimension_numbers = #tpu.dot_dimension_numbers<[1], [0], [0], [1], [0, 0, 1, 1], [], []>} : vector<8x64xf32>, vector<64x1xf32>, vector<8x1xf32> -> vector<8x1xf32>
    %c0_15 = arith.constant 0 : index
    %c1 = arith.constant 1 : index
    %18 = memref.load %arg7[%c0_15, %c1] : memref<1x2xf32, #tpu.memory_space<smem>>
    %19 = vector.broadcast %18 : f32 to vector<8x1xf32>
    %20 = arith.addf %17, %19 : vector<8x1xf32>
    %21 = math.exp %20 : vector<8x1xf32>
    %cst_16 = arith.constant 1.000000e+00 : f32
    %22 = vector.broadcast %cst_16 : f32 to vector<8x1xf32>
    %23 = arith.addf %22, %21 : vector<8x1xf32>
    %24 = tpu.reciprocal %23 {approx = true} : vector<8x1xf32> -> vector<8x1xf32>
    %cst_17 = arith.constant 1.000000e+00 : f32
    %25 = vector.broadcast %cst_17 : f32 to vector<8x1xf32>
    %26 = arith.subf %25, %24 : vector<8x1xf32>
    %c0_18 = arith.constant 0 : index
    %c0_19 = arith.constant 0 : index
    %27 = memref.load %arg7[%c0_18, %c0_19] : memref<1x2xf32, #tpu.memory_space<smem>>
    %28 = tpu.concatenate %26, %24 in 1 : vector<8x1xf32>, vector<8x1xf32> -> vector<8x2xf32>
    %29 = vector.broadcast %27 : f32 to vector<8x2xf32>
    %30 = arith.mulf %28, %29 : vector<8x2xf32>
    %c0_20 = arith.constant 0 : index
    %c0_21 = arith.constant 0 : index
    %31 = vector.load %arg8[%c0_20, %c0_21] : memref<8x2xf32, #tpu.memory_space<vmem>>, vector<8x2xf32>
    tpu.vector_store %arg8[%c0_20, %c0_21], %30 {strides = array<i32>} : memref<8x2xf32, #tpu.memory_space<vmem>>, vector<8x2xf32>,
    return
  }
  func.func @transform_0(%arg0: i32) -> (i32, i32) {
    %c0_i32 = arith.constant 0 : i32
    %c0_i32_0 = arith.constant 0 : i32
    return %arg0, %c0_i32 : i32, i32
  }
  func.func @transform_1(%arg0: i32) -> (i32, i32) {
    %c0_i32 = arith.constant 0 : i32
    %c0_i32_0 = arith.constant 0 : i32
    %c0_i32_1 = arith.constant 0 : i32
    return %c0_i32, %c0_i32_0 : i32, i32
  }
  func.func @transform_2(%arg0: i32) -> (i32, i32) {
    %c0_i32 = arith.constant 0 : i32
    %c0_i32_0 = arith.constant 0 : i32
    %c0_i32_1 = arith.constant 0 : i32
    return %c0_i32, %c0_i32_0 : i32, i32
  }
  func.func @transform_3(%arg0: i32) -> (i32, i32) {
    %c0_i32 = arith.constant 0 : i32
    %c0_i32_0 = arith.constant 0 : i32
    %c0_i32_1 = arith.constant 0 : i32
    return %c0_i32, %c0_i32_0 : i32, i32
  }
  func.func @transform_4(%arg0: i32) -> (i32, i32) {
    %c0_i32 = arith.constant 0 : i32
    %c0_i32_0 = arith.constant 0 : i32
    %c0_i32_1 = arith.constant 0 : i32
    return %c0_i32, %c0_i32_0 : i32, i32
  }
  func.func @transform_5(%arg0: i32) -> (i32, i32) {
    %c0_i32 = arith.constant 0 : i32
    %c0_i32_0 = arith.constant 0 : i32
    %c0_i32_1 = arith.constant 0 : i32
    return %c0_i32, %c0_i32_0 : i32, i32
  }
  func.func @transform_6(%arg0: i32) -> (i32, i32) {
    %c0_i32 = arith.constant 0 : i32
    %c0_i32_0 = arith.constant 0 : i32
    %c0_i32_1 = arith.constant 0 : i32
    return %c0_i32, %c0_i32_0 : i32, i32
  }
  func.func @transform_7(%arg0: i32) -> (i32, i32) {
    %c0_i32 = arith.constant 0 : i32
    %c0_i32_0 = arith.constant 0 : i32
    return %arg0, %c0_i32 : i32, i32
  }
}

</mosaic_0001>

<llo_original>
// kernel: tpu_custom_call.1
$region0: #{tpu_custom_call.1}
  #allocation0 [shape = 'u32[]', space=smem, size = 0x4, offset = 0x4, fixed_abs, tag = 'smem constant byte address 0x4 - core index']
  #allocation1 [shape = 'u32[72,128]{1,0:T(1,128)}', space=vmem, size = 0x9000, scoped, tag = 'internal scratch']
  %s0 = inlined_call_operand.hbm [shape: f32[2,9408], index: 0, kind: input, shape index: {}]
  %s1 = inlined_call_operand.hbm [shape: bf16[9408,128], index: 1, kind: input, shape index: {}]
  %s2 = inlined_call_operand.hbm [shape: f32[1,128], index: 2, kind: input, shape index: {}]
  %s3 = inlined_call_operand.vmem [shape: f32[128,64], index: 3, kind: input, shape index: {}]
  %s4 = inlined_call_operand.hbm [shape: f32[1,64], index: 4, kind: input, shape index: {}]
  %s5 = inlined_call_operand.vmem [shape: f32[64,1], index: 5, kind: input, shape index: {}]
  %s6 = inlined_call_operand.hbm [shape: f32[1,2], index: 6, kind: input, shape index: {}]
  %s7 = inlined_call_operand.hbm [shape: f32[2,2], index: 7, kind: output, shape index: {}]
  %s8 = sld [smem:[#allocation0]]
  $region58: #{tpu_custom_call.1} parent=0
    _
  %s10 = ssub.s32 1, %s8
  %s11 = scalar_select 0, %s10, %s8
  $region1: #{tpu_custom_call.1} parent=0
    #allocation2 [shape = 'u8[303104]{0}', space=vmem, size = 0x4a000, scoped, tag = 'input window, operand 0, single buffered']
    #allocation3 [shape = 's32[1]{0}', space=sflag, size = 0x4, scoped, tag = 'scoped memory for tpu_custom_call.1']
    #allocation4 [shape = 's32[1]{0}', space=sflag, size = 0x4, scoped, tag = 'scoped memory for tpu_custom_call.1']
    #allocation5 [shape = 's32[1]{0}', space=sflag, size = 0x4, scoped, tag = 'scoped memory for tpu_custom_call.1']
    #allocation6 [shape = 'u8[2408448]{0}', space=vmem, size = 0x24c000, scoped, tag = 'input window, operand 1, single buffered']
    #allocation7 [shape = 's32[1]{0}', space=sflag, size = 0x4, scoped, tag = 'scoped memory for tpu_custom_call.1']
    #allocation8 [shape = 'u8[512]{0}', space=vmem, size = 0x400, scoped, tag = 'input window, operand 2, single buffered']
    #allocation9 [shape = 'u8[512]{0}', space=vmem, size = 0x400, scoped, tag = 'input window, operand 4, single buffered']
    #allocation10 [shape = 's32[1]{0}', space=sflag, size = 0x4, scoped, tag = 'scoped memory for tpu_custom_call.1']
    #allocation11 [shape = 'u8[512]{0}', space=smem, size = 0x200, scoped, tag = 'input window, operand 6, single buffered']
    #allocation12 [shape = 'u8[4096]{0}', space=vmem, size = 0x1000, scoped, tag = 'output window, operand 0, single buffered']
    %12 = vsyncpa [#allocation3], 0
    %13 = vsyncpa [#allocation7], 0
    %14 = vsyncpa [#allocation10], 0
    %15 = vsyncpa [#allocation5], 0
    %16 = vsyncpa [#allocation4], 0
    // Predicated region
    $region2: #{tpu_custom_call.1} parent=1 // pred_check
      _
    $region3: #{tpu_custom_call.1} parent=1 // pred_check_branch
      %18 = sbr.rel (0) target = $region5
    $region4: #{tpu_custom_call.1} parent=1 // pred_region
      %20 = vsyncadd [#allocation3], 7104
      %s21 = sshll.u32 %s0, 4
      %s22 = int_to_ptr.hbm [resolvable:$true] %s21
      %s23 = sshll.u32 [#allocation2], 4
      %s24 = int_to_ptr.vmem [resolvable:$true] %s23
      %29 = dma.hbm_to_vmem [thread:$0]  %s22, 2368, %s24, [#allocation3], 2368, 2368, 148
    $region5: #{tpu_custom_call.1} parent=1 // pred_fallthru
      _
    // Predicated region
    $region6: #{tpu_custom_call.1} parent=1 // pred_check
      _
    $region7: #{tpu_custom_call.1} parent=1 // pred_check_branch
      %31 = sbr.rel (0) target = $region9
    $region8: #{tpu_custom_call.1} parent=1 // pred_region
      %33 = vsyncadd [#allocation7], 0
      %s34 = sshll.u32 %s1, 4
      %s35 = int_to_ptr.hbm [resolvable:$true] %s34
      %s36 = sshll.u32 [#allocation6], 4
      %s37 = int_to_ptr.vmem [resolvable:$true] %s36
      %42 = dma.hbm_to_vmem [thread:$0]  %s35, 75264, %s37, [#allocation7], 64, 64, 4
    $region9: #{tpu_custom_call.1} parent=1 // pred_fallthru
      _
    // Predicated region
    $region10: #{tpu_custom_call.1} parent=1 // pred_check
      _
    $region11: #{tpu_custom_call.1} parent=1 // pred_check_branch
      %44 = sbr.rel (0) target = $region13
    $region12: #{tpu_custom_call.1} parent=1 // pred_region
      %46 = vsyncadd [#allocation7], 0
      %s48 = sshll.u32 %s2, 4
      %s49 = int_to_ptr.hbm [resolvable:$true] %s48
      %s50 = sshll.u32 [#allocation8], 4
      %s51 = int_to_ptr.vmem [resolvable:$true] %s50
      %53 = dma.hbm_to_vmem [thread:$0]  %s49, 16, %s51, [#allocation7]
    $region13: #{tpu_custom_call.1} parent=1 // pred_fallthru
      _
    // Predicated region
    $region14: #{tpu_custom_call.1} parent=1 // pred_check
      _
    $region15: #{tpu_custom_call.1} parent=1 // pred_check_branch
      %55 = sbr.rel (0) target = $region17
    $region16: #{tpu_custom_call.1} parent=1 // pred_region
      _
    $region17: #{tpu_custom_call.1} parent=1 // pred_fallthru
      _
    // Predicated region
    $region18: #{tpu_custom_call.1} parent=1 // pred_check
      _
    $region19: #{tpu_custom_call.1} parent=1 // pred_check_branch
      %57 = sbr.rel (0) target = $region21
    $region20: #{tpu_custom_call.1} parent=1 // pred_region
      %59 = vsyncadd [#allocation10], 0
      %s61 = sshll.u32 %s4, 4
      %s62 = int_to_ptr.hbm [resolvable:$true] %s61
      %s63 = sshll.u32 [#allocation9], 4
      %s64 = int_to_ptr.vmem [resolvable:$true] %s63
      %66 = dma.hbm_to_vmem [thread:$0]  %s62, 16, %s64, [#allocation10]
    $region21: #{tpu_custom_call.1} parent=1 // pred_fallthru
      _
    // Predicated region
    $region22: #{tpu_custom_call.1} parent=1 // pred_check
      _
    $region23: #{tpu_custom_call.1} parent=1 // pred_check_branch
      %68 = sbr.rel (0) target = $region25
    $region24: #{tpu_custom_call.1} parent=1 // pred_region
      _
    $region25: #{tpu_custom_call.1} parent=1 // pred_fallthru
      _
    // Predicated region
    $region26: #{tpu_custom_call.1} parent=1 // pred_check
      _
    $region27: #{tpu_custom_call.1} parent=1 // pred_check_branch
      %70 = sbr.rel (0) target = $region29
    $region28: #{tpu_custom_call.1} parent=1 // pred_region
      %72 = vsyncadd [#allocation5], 0
      %s74 = sshll.u32 %s6, 4
      %s75 = int_to_ptr.hbm [resolvable:$true] %s74
      %77 = dma.hbm_to_smem %s75, 16, [#allocation11], [#allocation5]
    $region29: #{tpu_custom_call.1} parent=1 // pred_fallthru
      _
    // Predicated region
    $region30: #{tpu_custom_call.1} parent=1 // pred_check
      _
    $region31: #{tpu_custom_call.1} parent=1 // pred_check_branch
      %79 = sbr.rel (0) target = $region33
    $region32: #{tpu_custom_call.1} parent=1 // pred_region
      %81 = dma.done [#allocation3], 9472
    $region33: #{tpu_custom_call.1} parent=1 // pred_fallthru
      _
    // Predicated region
    $region34: #{tpu_custom_call.1} parent=1 // pred_check
      _
    $region35: #{tpu_custom_call.1} parent=1 // pred_check_branch
      %83 = sbr.rel (0) target = $region37
    $region36: #{tpu_custom_call.1} parent=1 // pred_region
      %85 = dma.done [#allocation7], 75264
    $region37: #{tpu_custom_call.1} parent=1 // pred_fallthru
      _
    // Predicated region
    $region38: #{tpu_custom_call.1} parent=1 // pred_check
      _
    $region39: #{tpu_custom_call.1} parent=1 // pred_check_branch
      %87 = sbr.rel (0) target = $region41
    $region40: #{tpu_custom_call.1} parent=1 // pred_region
      %89 = dma.done [#allocation7], 16
    $region41: #{tpu_custom_call.1} parent=1 // pred_fallthru
      _
    // Predicated region
    $region42: #{tpu_custom_call.1} parent=1 // pred_check
      _
    $region43: #{tpu_custom_call.1} parent=1 // pred_check_branch
      %91 = sbr.rel (0) target = $region45
    $region44: #{tpu_custom_call.1} parent=1 // pred_region
      %93 = dma.done [#allocation10], 16
    $region45: #{tpu_custom_call.1} parent=1 // pred_fallthru
      _
    // Predicated region
    $region46: #{tpu_custom_call.1} parent=1 // pred_check
      _
    $region47: #{tpu_custom_call.1} parent=1 // pred_check_branch
      %95 = sbr.rel (0) target = $region49
    $region48: #{tpu_custom_call.1} parent=1 // pred_region
      %97 = dma.done [#allocation5], 16
    $region49: #{tpu_custom_call.1} parent=1 // pred_fallthru
      _
    %98 = sfence
    %v100 = vld [vmem:[#allocation2] sm:$0xff]
    %v101 = vld [vmem:[#allocation2 + $0x8] sm:$0xff]
    %v102 = vld [vmem:[#allocation2 + $0x10] sm:$0xff]
    %v103 = vld [vmem:[#allocation2 + $0x18] sm:$0xff]
    %v104 = vld [vmem:[#allocation2 + $0x20] sm:$0xff]
    %v105 = vld [vmem:[#allocation2 + $0x28] sm:$0xff]
    %v106 = vld [vmem:[#allocation2 + $0x30] sm:$0xff]
    %v107 = vld [vmem:[#allocation2 + $0x38] sm:$0xff]
    %v108 = vld [vmem:[#allocation2 + $0x40] sm:$0xff]
    %v109 = vld [vmem:[#allocation2 + $0x48] sm:$0xff]
    %v110 = vld [vmem:[#allocation2 + $0x50] sm:$0xff]
    %v111 = vld [vmem:[#allocation2 + $0x58] sm:$0xff]
    %v112 = vld [vmem:[#allocation2 + $0x60] sm:$0xff]
    %v113 = vld [vmem:[#allocation2 + $0x68] sm:$0xff]
    %v114 = vld [vmem:[#allocation2 + $0x70] sm:$0xff]
    %v115 = vld [vmem:[#allocation2 + $0x78] sm:$0xff]
    %v116 = vld [vmem:[#allocation2 + $0x80] sm:$0xff]
    %v117 = vld [vmem:[#allocation2 + $0x88] sm:$0xff]
    %v118 = vld [vmem:[#allocation2 + $0x90] sm:$0xf]
    %v119 = vld [vmem:[#allocation2 + $0x94] sm:$0xff]
    %v120 = vld [vmem:[#allocation2 + $0x9c] sm:$0xff]
    %v121 = vld [vmem:[#allocation2 + $0xa4] sm:$0xff]
    %v122 = vld [vmem:[#allocation2 + $0xac] sm:$0xff]
    %v123 = vld [vmem:[#allocation2 + $0xb4] sm:$0xff]
    %v124 = vld [vmem:[#allocation2 + $0xbc] sm:$0xff]
    %v125 = vld [vmem:[#allocation2 + $0xc4] sm:$0xff]
    %v126 = vld [vmem:[#allocation2 + $0xcc] sm:$0xff]
    %v127 = vld [vmem:[#allocation2 + $0xd4] sm:$0xff]
    %v128 = vld [vmem:[#allocation2 + $0xdc] sm:$0xff]
    %v129 = vld [vmem:[#allocation2 + $0xe4] sm:$0xff]
    %v130 = vld [vmem:[#allocation2 + $0xec] sm:$0xff]
    %v131 = vld [vmem:[#allocation2 + $0xf4] sm:$0xff]
    %v132 = vld [vmem:[#allocation2 + $0xfc] sm:$0xff]
    %v133 = vld [vmem:[#allocation2 + $0x104] sm:$0xff]
    %v134 = vld [vmem:[#allocation2 + $0x10c] sm:$0xff]
    %v135 = vld [vmem:[#allocation2 + $0x114] sm:$0xff]
    %v136 = vld [vmem:[#allocation2 + $0x11c] sm:$0xff]
    %v137 = vld [vmem:[#allocation2 + $0x124] sm:$0xf]
    %v138 = vld [vmem:[#allocation2 + $0x128] sm:$0xff]
    %v139 = vld [vmem:[#allocation2 + $0x130] sm:$0xff]
    %v140 = vld [vmem:[#allocation2 + $0x138] sm:$0xff]
    %v141 = vld [vmem:[#allocation2 + $0x140] sm:$0xff]
    %v142 = vld [vmem:[#allocation2 + $0x148] sm:$0xff]
    %v143 = vld [vmem:[#allocation2 + $0x150] sm:$0xff]
    %v144 = vld [vmem:[#allocation2 + $0x158] sm:$0xff]
    %v145 = vld [vmem:[#allocation2 + $0x160] sm:$0xff]
    %v146 = vld [vmem:[#allocation2 + $0x168] sm:$0xff]
    %v147 = vld [vmem:[#allocation2 + $0x170] sm:$0xff]
    %v148 = vld [vmem:[#allocation2 + $0x178] sm:$0xff]
    %v149 = vld [vmem:[#allocation2 + $0x180] sm:$0xff]
    %v150 = vld [vmem:[#allocation2 + $0x188] sm:$0xff]
    %v151 = vld [vmem:[#allocation2 + $0x190] sm:$0xff]
    %v152 = vld [vmem:[#allocation2 + $0x198] sm:$0xff]
    %v153 = vld [vmem:[#allocation2 + $0x1a0] sm:$0xff]
    %v154 = vld [vmem:[#allocation2 + $0x1a8] sm:$0xff]
    %v155 = vld [vmem:[#allocation2 + $0x1b0] sm:$0xff]
    %v156 = vld [vmem:[#allocation2 + $0x1b8] sm:$0xf]
    %v157 = vld [vmem:[#allocation2 + $0x1bc] sm:$0xff]
    %v158 = vld [vmem:[#allocation2 + $0x1c4] sm:$0xff]
    %v159 = vld [vmem:[#allocation2 + $0x1cc] sm:$0xff]
    %v160 = vld [vmem:[#allocation2 + $0x1d4] sm:$0xff]
    %v161 = vld [vmem:[#allocation2 + $0x1dc] sm:$0xff]
    %v162 = vld [vmem:[#allocation2 + $0x1e4] sm:$0xff]
    %v163 = vld [vmem:[#allocation2 + $0x1ec] sm:$0xff]
    %v164 = vld [vmem:[#allocation2 + $0x1f4] sm:$0xff]
    %v165 = vld [vmem:[#allocation2 + $0x1fc] sm:$0xff]
    %v166 = vld [vmem:[#allocation2 + $0x204] sm:$0xff]
    %v167 = vld [vmem:[#allocation2 + $0x20c] sm:$0xff]
    %v168 = vld [vmem:[#allocation2 + $0x214] sm:$0xff]
    %v169 = vld [vmem:[#allocation2 + $0x21c] sm:$0xff]
    %v170 = vld [vmem:[#allocation2 + $0x224] sm:$0xff]
    %v171 = vld [vmem:[#allocation2 + $0x22c] sm:$0xff]
    %v172 = vld [vmem:[#allocation2 + $0x234] sm:$0xff]
    %v173 = vld [vmem:[#allocation2 + $0x23c] sm:$0xff]
    %v174 = vld [vmem:[#allocation2 + $0x244] sm:$0xff]
    %v175 = vld [vmem:[#allocation2 + $0x24c] sm:$0xf]
    %252 = vst [vmem:[#allocation1] ss:$4 sm:$0xff] %v100
    %s253 = scalar_lea.vmem [#allocation1], 1
    %254 = vst [vmem:[%s253] ss:$4 sm:$0xff] %v119
    %s255 = scalar_lea.vmem [#allocation1], 2
    %256 = vst [vmem:[%s255] ss:$4 sm:$0xff] %v138
    %s257 = scalar_lea.vmem [#allocation1], 3
    %258 = vst [vmem:[%s257] ss:$4 sm:$0xff] %v157
    %s259 = scalar_lea.vmem [#allocation1], 32
    %260 = vst [vmem:[%s259] ss:$4 sm:$0xff] %v101
    %s261 = scalar_lea.vmem [#allocation1], 33
    %262 = vst [vmem:[%s261] ss:$4 sm:$0xff] %v120
    %s263 = scalar_lea.vmem [#allocation1], 34
    %264 = vst [vmem:[%s263] ss:$4 sm:$0xff] %v139
    %s265 = scalar_lea.vmem [#allocation1], 35
    %266 = vst [vmem:[%s265] ss:$4 sm:$0xff] %v158
    %v267 = vld.sshfl [vmem:[#allocation1] sm:$0xff pattern:$0x73625140]
    %v268 = vld.sshfl [vmem:[#allocation1 + $0x8] sm:$0xff pattern:$0x73625140]
    %v269 = vld.sshfl [vmem:[#allocation1 + $0x10] sm:$0xff pattern:$0x73625140]
    %v270 = vld.sshfl [vmem:[#allocation1 + $0x18] sm:$0xff pattern:$0x73625140]
    %v271 = vld.sshfl [vmem:[#allocation1 + $0x20] sm:$0xff pattern:$0x73625140]
    %v272 = vld.sshfl [vmem:[#allocation1 + $0x28] sm:$0xff pattern:$0x73625140]
    %v273 = vld.sshfl [vmem:[#allocation1 + $0x30] sm:$0xff pattern:$0x73625140]
    %v274 = vld.sshfl [vmem:[#allocation1 + $0x38] sm:$0xff pattern:$0x73625140]
    %275 = vst [vmem:[#allocation1] ss:$4 sm:$0xff] %v102
    %276 = vst [vmem:[%s253] ss:$4 sm:$0xff] %v121
    %277 = vst [vmem:[%s255] ss:$4 sm:$0xff] %v140
    %278 = vst [vmem:[%s257] ss:$4 sm:$0xff] %v159
    %279 = vst [vmem:[%s259] ss:$4 sm:$0xff] %v103
    %280 = vst [vmem:[%s261] ss:$4 sm:$0xff] %v122
    %281 = vst [vmem:[%s263] ss:$4 sm:$0xff] %v141
    %282 = vst [vmem:[%s265] ss:$4 sm:$0xff] %v160
    %v283 = vld.sshfl [vmem:[#allocation1] sm:$0xff pattern:$0x73625140]
    %v284 = vld.sshfl [vmem:[#allocation1 + $0x8] sm:$0xff pattern:$0x73625140]
    %v285 = vld.sshfl [vmem:[#allocation1 + $0x10] sm:$0xff pattern:$0x73625140]
    %v286 = vld.sshfl [vmem:[#allocation1 + $0x18] sm:$0xff pattern:$0x73625140]
    %v287 = vld.sshfl [vmem:[#allocation1 + $0x20] sm:$0xff pattern:$0x73625140]
    %v288 = vld.sshfl [vmem:[#allocation1 + $0x28] sm:$0xff pattern:$0x73625140]
    %v289 = vld.sshfl [vmem:[#allocation1 + $0x30] sm:$0xff pattern:$0x73625140]
    %v290 = vld.sshfl [vmem:[#allocation1 + $0x38] sm:$0xff pattern:$0x73625140]
    %291 = vst [vmem:[#allocation1] ss:$4 sm:$0xff] %v104
    %292 = vst [vmem:[%s253] ss:$4 sm:$0xff] %v123
    %293 = vst [vmem:[%s255] ss:$4 sm:$0xff] %v142
    %294 = vst [vmem:[%s257] ss:$4 sm:$0xff] %v161
    %295 = vst [vmem:[%s259] ss:$4 sm:$0xff] %v105
    %296 = vst [vmem:[%s261] ss:$4 sm:$0xff] %v124
    %297 = vst [vmem:[%s263] ss:$4 sm:$0xff] %v143
    %298 = vst [vmem:[%s265] ss:$4 sm:$0xff] %v162
    %v299 = vld.sshfl [vmem:[#allocation1] sm:$0xff pattern:$0x73625140]
    %v300 = vld.sshfl [vmem:[#allocation1 + $0x8] sm:$0xff pattern:$0x73625140]
    %v301 = vld.sshfl [vmem:[#allocation1 + $0x10] sm:$0xff pattern:$0x73625140]
    %v302 = vld.sshfl [vmem:[#allocation1 + $0x18] sm:$0xff pattern:$0x73625140]
    %v303 = vld.sshfl [vmem:[#allocation1 + $0x20] sm:$0xff pattern:$0x73625140]
    %v304 = vld.sshfl [vmem:[#allocation1 + $0x28] sm:$0xff pattern:$0x73625140]
    %v305 = vld.sshfl [vmem:[#allocation1 + $0x30] sm:$0xff pattern:$0x73625140]
    %v306 = vld.sshfl [vmem:[#allocation1 + $0x38] sm:$0xff pattern:$0x73625140]
    %307 = vst [vmem:[#allocation1] ss:$4 sm:$0xff] %v106
    %308 = vst [vmem:[%s253] ss:$4 sm:$0xff] %v125
    %309 = vst [vmem:[%s255] ss:$4 sm:$0xff] %v144
    %310 = vst [vmem:[%s257] ss:$4 sm:$0xff] %v163
    %311 = vst [vmem:[%s259] ss:$4 sm:$0xff] %v107
    %312 = vst [vmem:[%s261] ss:$4 sm:$0xff] %v126
    %313 = vst [vmem:[%s263] ss:$4 sm:$0xff] %v145
    %314 = vst [vmem:[%s265] ss:$4 sm:$0xff] %v164
    %v315 = vld.sshfl [vmem:[#allocation1] sm:$0xff pattern:$0x73625140]
    %v316 = vld.sshfl [vmem:[#allocation1 + $0x8] sm:$0xff pattern:$0x73625140]
    %v317 = vld.sshfl [vmem:[#allocation1 + $0x10] sm:$0xff pattern:$0x73625140]
    %v318 = vld.sshfl [vmem:[#allocation1 + $0x18] sm:$0xff pattern:$0x73625140]
    %v319 = vld.sshfl [vmem:[#allocation1 + $0x20] sm:$0xff pattern:$0x73625140]
    %v320 = vld.sshfl [vmem:[#allocation1 + $0x28] sm:$0xff pattern:$0x73625140]
    %v321 = vld.sshfl [vmem:[#allocation1 + $0x30] sm:$0xff pattern:$0x73625140]
    %v322 = vld.sshfl [vmem:[#allocation1 + $0x38] sm:$0xff pattern:$0x73625140]
    %323 = vst [vmem:[#allocation1] ss:$4 sm:$0xff] %v108
    %324 = vst [vmem:[%s253] ss:$4 sm:$0xff] %v127
    %325 = vst [vmem:[%s255] ss:$4 sm:$0xff] %v146
    %326 = vst [vmem:[%s257] ss:$4 sm:$0xff] %v165
    %327 = vst [vmem:[%s259] ss:$4 sm:$0xff] %v109
    %328 = vst [vmem:[%s261] ss:$4 sm:$0xff] %v128
    %329 = vst [vmem:[%s263] ss:$4 sm:$0xff] %v147
    %330 = vst [vmem:[%s265] ss:$4 sm:$0xff] %v166
    %v331 = vld.sshfl [vmem:[#allocation1] sm:$0xff pattern:$0x73625140]
    %v332 = vld.sshfl [vmem:[#allocation1 + $0x8] sm:$0xff pattern:$0x73625140]
    %v333 = vld.sshfl [vmem:[#allocation1 + $0x10] sm:$0xff pattern:$0x73625140]
    %v334 = vld.sshfl [vmem:[#allocation1 + $0x18] sm:$0xff pattern:$0x73625140]
    %v335 = vld.sshfl [vmem:[#allocation1 + $0x20] sm:$0xff pattern:$0x73625140]
    %v336 = vld.sshfl [vmem:[#allocation1 + $0x28] sm:$0xff pattern:$0x73625140]
    %v337 = vld.sshfl [vmem:[#allocation1 + $0x30] sm:$0xff pattern:$0x73625140]
    %v338 = vld.sshfl [vmem:[#allocation1 + $0x38] sm:$0xff pattern:$0x73625140]
    %339 = vst [vmem:[#allocation1] ss:$4 sm:$0xff] %v110
    %340 = vst [vmem:[%s253] ss:$4 sm:$0xff] %v129
    %341 = vst [vmem:[%s255] ss:$4 sm:$0xff] %v148
    %342 = vst [vmem:[%s257] ss:$4 sm:$0xff] %v167
    %343 = vst [vmem:[%s259] ss:$4 sm:$0xff] %v111
    %344 = vst [vmem:[%s261] ss:$4 sm:$0xff] %v130
    %345 = vst [vmem:[%s263] ss:$4 sm:$0xff] %v149
    %346 = vst [vmem:[%s265] ss:$4 sm:$0xff] %v168
    %v347 = vld.sshfl [vmem:[#allocation1] sm:$0xff pattern:$0x73625140]
    %v348 = vld.sshfl [vmem:[#allocation1 + $0x8] sm:$0xff pattern:$0x73625140]
    %v349 = vld.sshfl [vmem:[#allocation1 + $0x10] sm:$0xff pattern:$0x73625140]
    %v350 = vld.sshfl [vmem:[#allocation1 + $0x18] sm:$0xff pattern:$0x73625140]
    %v351 = vld.sshfl [vmem:[#allocation1 + $0x20] sm:$0xff pattern:$0x73625140]
    %v352 = vld.sshfl [vmem:[#allocation1 + $0x28] sm:$0xff pattern:$0x73625140]
    %v353 = vld.sshfl [vmem:[#allocation1 + $0x30] sm:$0xff pattern:$0x73625140]
    %v354 = vld.sshfl [vmem:[#allocation1 + $0x38] sm:$0xff pattern:$0x73625140]
    %355 = vst [vmem:[#allocation1] ss:$4 sm:$0xff] %v112
    %356 = vst [vmem:[%s253] ss:$4 sm:$0xff] %v131
    %357 = vst [vmem:[%s255] ss:$4 sm:$0xff] %v150
    %358 = vst [vmem:[%s257] ss:$4 sm:$0xff] %v169
    %359 = vst [vmem:[%s259] ss:$4 sm:$0xff] %v113
    %360 = vst [vmem:[%s261] ss:$4 sm:$0xff] %v132
    %361 = vst [vmem:[%s263] ss:$4 sm:$0xff] %v151
    %362 = vst [vmem:[%s265] ss:$4 sm:$0xff] %v170
    %v363 = vld.sshfl [vmem:[#allocation1] sm:$0xff pattern:$0x73625140]
    %v364 = vld.sshfl [vmem:[#allocation1 + $0x8] sm:$0xff pattern:$0x73625140]
    %v365 = vld.sshfl [vmem:[#allocation1 + $0x10] sm:$0xff pattern:$0x73625140]
    %v366 = vld.sshfl [vmem:[#allocation1 + $0x18] sm:$0xff pattern:$0x73625140]
    %v367 = vld.sshfl [vmem:[#allocation1 + $0x20] sm:$0xff pattern:$0x73625140]
    %v368 = vld.sshfl [vmem:[#allocation1 + $0x28] sm:$0xff pattern:$0x73625140]
    %v369 = vld.sshfl [vmem:[#allocation1 + $0x30] sm:$0xff pattern:$0x73625140]
    %v370 = vld.sshfl [vmem:[#allocation1 + $0x38] sm:$0xff pattern:$0x73625140]
    %371 = vst [vmem:[#allocation1] ss:$4 sm:$0xff] %v114
    %372 = vst [vmem:[%s253] ss:$4 sm:$0xff] %v133
    %373 = vst [vmem:[%s255] ss:$4 sm:$0xff] %v152
    %374 = vst [vmem:[%s257] ss:$4 sm:$0xff] %v171
    %375 = vst [vmem:[%s259] ss:$4 sm:$0xff] %v115
    %376 = vst [vmem:[%s261] ss:$4 sm:$0xff] %v134
    %377 = vst [vmem:[%s263] ss:$4 sm:$0xff] %v153
    %378 = vst [vmem:[%s265] ss:$4 sm:$0xff] %v172
    %v379 = vld.sshfl [vmem:[#allocation1] sm:$0xff pattern:$0x73625140]
    %v380 = vld.sshfl [vmem:[#allocation1 + $0x8] sm:$0xff pattern:$0x73625140]
    %v381 = vld.sshfl [vmem:[#allocation1 + $0x10] sm:$0xff pattern:$0x73625140]
    %v382 = vld.sshfl [vmem:[#allocation1 + $0x18] sm:$0xff pattern:$0x73625140]
    %v383 = vld.sshfl [vmem:[#allocation1 + $0x20] sm:$0xff pattern:$0x73625140]
    %v384 = vld.sshfl [vmem:[#allocation1 + $0x28] sm:$0xff pattern:$0x73625140]
    %v385 = vld.sshfl [vmem:[#allocation1 + $0x30] sm:$0xff pattern:$0x73625140]
    %v386 = vld.sshfl [vmem:[#allocation1 + $0x38] sm:$0xff pattern:$0x73625140]
    %387 = vst [vmem:[#allocation1] ss:$4 sm:$0xff] %v116
    %388 = vst [vmem:[%s253] ss:$4 sm:$0xff] %v135
    %389 = vst [vmem:[%s255] ss:$4 sm:$0xff] %v154
    %390 = vst [vmem:[%s257] ss:$4 sm:$0xff] %v173
    %391 = vst [vmem:[%s259] ss:$4 sm:$0xff] %v117
    %392 = vst [vmem:[%s261] ss:$4 sm:$0xff] %v136
    %393 = vst [vmem:[%s263] ss:$4 sm:$0xff] %v155
    %394 = vst [vmem:[%s265] ss:$4 sm:$0xff] %v174
    %v395 = vld.sshfl [vmem:[#allocation1] sm:$0xff pattern:$0x73625140]
    %v396 = vld.sshfl [vmem:[#allocation1 + $0x8] sm:$0xff pattern:$0x73625140]
    %v397 = vld.sshfl [vmem:[#allocation1 + $0x10] sm:$0xff pattern:$0x73625140]
    %v398 = vld.sshfl [vmem:[#allocation1 + $0x18] sm:$0xff pattern:$0x73625140]
    %v399 = vld.sshfl [vmem:[#allocation1 + $0x20] sm:$0xff pattern:$0x73625140]
    %v400 = vld.sshfl [vmem:[#allocation1 + $0x28] sm:$0xff pattern:$0x73625140]
    %v401 = vld.sshfl [vmem:[#allocation1 + $0x30] sm:$0xff pattern:$0x73625140]
    %v402 = vld.sshfl [vmem:[#allocation1 + $0x38] sm:$0xff pattern:$0x73625140]
    %403 = vst [vmem:[#allocation1] ss:$4 sm:$0xff] %v118
    %404 = vst [vmem:[%s253] ss:$4 sm:$0xff] %v137
    %405 = vst [vmem:[%s255] ss:$4 sm:$0xff] %v156
    %406 = vst [vmem:[%s257] ss:$4 sm:$0xff] %v175
    %v407 = vld.sshfl [vmem:[#allocation1] sm:$0xff pattern:$0x73625140]
    %v408 = vld.sshfl [vmem:[#allocation1 + $0x8] sm:$0xff pattern:$0x73625140]
    %v483 = vpack.c.bf16 %v267, %v267
    %v484 = vpack.c.bf16 %v268, %v268
    %v485 = vpack.c.bf16 %v269, %v269
    %v486 = vpack.c.bf16 %v270, %v270
    %v487 = vpack.c.bf16 %v271, %v271
    %v488 = vpack.c.bf16 %v272, %v272
    %v489 = vpack.c.bf16 %v273, %v273
    %v490 = vpack.c.bf16 %v274, %v274
    %v491 = vpack.c.bf16 %v283, %v283
    %v492 = vpack.c.bf16 %v284, %v284
    %v493 = vpack.c.bf16 %v285, %v285
    %v494 = vpack.c.bf16 %v286, %v286
    %v495 = vpack.c.bf16 %v287, %v287
    %v496 = vpack.c.bf16 %v288, %v288
    %v497 = vpack.c.bf16 %v289, %v289
    %v498 = vpack.c.bf16 %v290, %v290
    %v499 = vpack.c.bf16 %v299, %v299
    %v500 = vpack.c.bf16 %v300, %v300
    %v501 = vpack.c.bf16 %v301, %v301
    %v502 = vpack.c.bf16 %v302, %v302
    %v503 = vpack.c.bf16 %v303, %v303
    %v504 = vpack.c.bf16 %v304, %v304
    %v505 = vpack.c.bf16 %v305, %v305
    %v506 = vpack.c.bf16 %v306, %v306
    %v507 = vpack.c.bf16 %v315, %v315
    %v508 = vpack.c.bf16 %v316, %v316
    %v509 = vpack.c.bf16 %v317, %v317
    %v510 = vpack.c.bf16 %v318, %v318
    %v511 = vpack.c.bf16 %v319, %v319
    %v512 = vpack.c.bf16 %v320, %v320
    %v513 = vpack.c.bf16 %v321, %v321
    %v514 = vpack.c.bf16 %v322, %v322
    %v515 = vpack.c.bf16 %v331, %v331
    %v516 = vpack.c.bf16 %v332, %v332
    %v517 = vpack.c.bf16 %v333, %v333
    %v518 = vpack.c.bf16 %v334, %v334
    %v519 = vpack.c.bf16 %v335, %v335
    %v520 = vpack.c.bf16 %v336, %v336
    %v521 = vpack.c.bf16 %v337, %v337
    %v522 = vpack.c.bf16 %v338, %v338
    %v523 = vpack.c.bf16 %v347, %v347
    %v524 = vpack.c.bf16 %v348, %v348
    %v525 = vpack.c.bf16 %v349, %v349
    %v526 = vpack.c.bf16 %v350, %v350
    %v527 = vpack.c.bf16 %v351, %v351
    %v528 = vpack.c.bf16 %v352, %v352
    %v529 = vpack.c.bf16 %v353, %v353
    %v530 = vpack.c.bf16 %v354, %v354
    %v531 = vpack.c.bf16 %v363, %v363
    %v532 = vpack.c.bf16 %v364, %v364
    %v533 = vpack.c.bf16 %v365, %v365
    %v534 = vpack.c.bf16 %v366, %v366
    %v535 = vpack.c.bf16 %v367, %v367
    %v536 = vpack.c.bf16 %v368, %v368
    %v537 = vpack.c.bf16 %v369, %v369
    %v538 = vpack.c.bf16 %v370, %v370
    %v539 = vpack.c.bf16 %v379, %v379
    %v540 = vpack.c.bf16 %v380, %v380
    %v541 = vpack.c.bf16 %v381, %v381
    %v542 = vpack.c.bf16 %v382, %v382
    %v543 = vpack.c.bf16 %v383, %v383
    %v544 = vpack.c.bf16 %v384, %v384
    %v545 = vpack.c.bf16 %v385, %v385
    %v546 = vpack.c.bf16 %v386, %v386
    %v547 = vpack.c.bf16 %v395, %v395
    %v548 = vpack.c.bf16 %v396, %v396
    %v549 = vpack.c.bf16 %v397, %v397
    %v550 = vpack.c.bf16 %v398, %v398
    %v551 = vpack.c.bf16 %v399, %v399
    %v552 = vpack.c.bf16 %v400, %v400
    %v553 = vpack.c.bf16 %v401, %v401
    %v554 = vpack.c.bf16 %v402, %v402
    %v555 = vpack.c.bf16 %v407, %v407
    %v556 = vpack.c.bf16 %v408, %v408
    %v557 = vld [vmem:[#allocation6] sm:$0xf]
    %v558 = vld [vmem:[#allocation6 + $0x4] sm:$0xf]
    %v559 = vld [vmem:[#allocation6 + $0x8] sm:$0xf]
    %v560 = vld [vmem:[#allocation6 + $0xc] sm:$0xf]
    %v561 = vld [vmem:[#allocation6 + $0x10] sm:$0xf]
    %v562 = vld [vmem:[#allocation6 + $0x14] sm:$0xf]
    %v563 = vld [vmem:[#allocation6 + $0x18] sm:$0xf]
    %v564 = vld [vmem:[#allocation6 + $0x1c] sm:$0xf]
    %v565 = vld [vmem:[#allocation6 + $0x20] sm:$0xf]
    %v566 = vld [vmem:[#allocation6 + $0x24] sm:$0xf]
    %v567 = vld [vmem:[#allocation6 + $0x28] sm:$0xf]
    %v568 = vld [vmem:[#allocation6 + $0x2c] sm:$0xf]
    %v569 = vld [vmem:[#allocation6 + $0x30] sm:$0xf]
    %v570 = vld [vmem:[#allocation6 + $0x34] sm:$0xf]
    %v571 = vld [vmem:[#allocation6 + $0x38] sm:$0xf]
    %v572 = vld [vmem:[#allocation6 + $0x3c] sm:$0xf]
    %v573 = vld [vmem:[#allocation6 + $0x40] sm:$0xf]
    %v574 = vld [vmem:[#allocation6 + $0x44] sm:$0xf]
    %v575 = vld [vmem:[#allocation6 + $0x48] sm:$0xf]
    %v576 = vld [vmem:[#allocation6 + $0x4c] sm:$0xf]
    %v577 = vld [vmem:[#allocation6 + $0x50] sm:$0xf]
    %v578 = vld [vmem:[#allocation6 + $0x54] sm:$0xf]
    %v579 = vld [vmem:[#allocation6 + $0x58] sm:$0xf]
    %v580 = vld [vmem:[#allocation6 + $0x5c] sm:$0xf]
    %v581 = vld [vmem:[#allocation6 + $0x60] sm:$0xf]
    %v582 = vld [vmem:[#allocation6 + $0x64] sm:$0xf]
    %v583 = vld [vmem:[#allocation6 + $0x68] sm:$0xf]
    %v584 = vld [vmem:[#allocation6 + $0x6c] sm:$0xf]
    %v585 = vld [vmem:[#allocation6 + $0x70] sm:$0xf]
    %v586 = vld [vmem:[#allocation6 + $0x74] sm:$0xf]
    %v587 = vld [vmem:[#allocation6 + $0x78] sm:$0xf]
    %v588 = vld [vmem:[#allocation6 + $0x7c] sm:$0xf]
    %v589 = vld [vmem:[#allocation6 + $0x80] sm:$0xf]
    %v590 = vld [vmem:[#allocation6 + $0x84] sm:$0xf]
    %v591 = vld [vmem:[#allocation6 + $0x88] sm:$0xf]
    %v592 = vld [vmem:[#allocation6 + $0x8c] sm:$0xf]
    %v593 = vld [vmem:[#allocation6 + $0x90] sm:$0xf]
    %v594 = vld [vmem:[#allocation6 + $0x94] sm:$0xf]
    %v595 = vld [vmem:[#allocation6 + $0x98] sm:$0xf]
    %v596 = vld [vmem:[#allocation6 + $0x9c] sm:$0xf]
    %v597 = vld [vmem:[#allocation6 + $0xa0] sm:$0xf]
    %v598 = vld [vmem:[#allocation6 + $0xa4] sm:$0xf]
    %v599 = vld [vmem:[#allocation6 + $0xa8] sm:$0xf]
    %v600 = vld [vmem:[#allocation6 + $0xac] sm:$0xf]
    %v601 = vld [vmem:[#allocation6 + $0xb0] sm:$0xf]
    %v602 = vld [vmem:[#allocation6 + $0xb4] sm:$0xf]
    %v603 = vld [vmem:[#allocation6 + $0xb8] sm:$0xf]
    %v604 = vld [vmem:[#allocation6 + $0xbc] sm:$0xf]
    %v605 = vld [vmem:[#allocation6 + $0xc0] sm:$0xf]
    %v606 = vld [vmem:[#allocation6 + $0xc4] sm:$0xf]
    %v607 = vld [vmem:[#allocation6 + $0xc8] sm:$0xf]
    %v608 = vld [vmem:[#allocation6 + $0xcc] sm:$0xf]
    %v609 = vld [vmem:[#allocation6 + $0xd0] sm:$0xf]
    %v610 = vld [vmem:[#allocation6 + $0xd4] sm:$0xf]
    %v611 = vld [vmem:[#allocation6 + $0xd8] sm:$0xf]
    %v612 = vld [vmem:[#allocation6 + $0xdc] sm:$0xf]
    %v613 = vld [vmem:[#allocation6 + $0xe0] sm:$0xf]
    %v614 = vld [vmem:[#allocation6 + $0xe4] sm:$0xf]
    %v615 = vld [vmem:[#allocation6 + $0xe8] sm:$0xf]
    %v616 = vld [vmem:[#allocation6 + $0xec] sm:$0xf]
    %v617 = vld [vmem:[#allocation6 + $0xf0] sm:$0xf]
    %v618 = vld [vmem:[#allocation6 + $0xf4] sm:$0xf]
    %v619 = vld [vmem:[#allocation6 + $0xf8] sm:$0xf]
    %v620 = vld [vmem:[#allocation6 + $0xfc] sm:$0xf]
    %v621 = vld [vmem:[#allocation6 + $0x100] sm:$0xf]
    %v622 = vld [vmem:[#allocation6 + $0x104] sm:$0xf]
    %v623 = vld [vmem:[#allocation6 + $0x108] sm:$0xf]
    %v624 = vld [vmem:[#allocation6 + $0x10c] sm:$0xf]
    %v625 = vld [vmem:[#allocation6 + $0x110] sm:$0xf]
    %v626 = vld [vmem:[#allocation6 + $0x114] sm:$0xf]
    %v627 = vld [vmem:[#allocation6 + $0x118] sm:$0xf]
    %v628 = vld [vmem:[#allocation6 + $0x11c] sm:$0xf]
    %v629 = vld [vmem:[#allocation6 + $0x120] sm:$0xf]
    %v630 = vld [vmem:[#allocation6 + $0x124] sm:$0xf]
    %v631 = vld [vmem:[#allocation6 + $0x128] sm:$0xf]
    %v632 = vld [vmem:[#allocation6 + $0x12c] sm:$0xf]
    %v633 = vld [vmem:[#allocation6 + $0x130] sm:$0xf]
    %v634 = vld [vmem:[#allocation6 + $0x134] sm:$0xf]
    %v635 = vld [vmem:[#allocation6 + $0x138] sm:$0xf]
    %v636 = vld [vmem:[#allocation6 + $0x13c] sm:$0xf]
    %v637 = vld [vmem:[#allocation6 + $0x140] sm:$0xf]
    %v638 = vld [vmem:[#allocation6 + $0x144] sm:$0xf]
    %v639 = vld [vmem:[#allocation6 + $0x148] sm:$0xf]
    %v640 = vld [vmem:[#allocation6 + $0x14c] sm:$0xf]
    %v641 = vld [vmem:[#allocation6 + $0x150] sm:$0xf]
    %v642 = vld [vmem:[#allocation6 + $0x154] sm:$0xf]
    %v643 = vld [vmem:[#allocation6 + $0x158] sm:$0xf]
    %v644 = vld [vmem:[#allocation6 + $0x15c] sm:$0xf]
    %v645 = vld [vmem:[#allocation6 + $0x160] sm:$0xf]
    %v646 = vld [vmem:[#allocation6 + $0x164] sm:$0xf]
    %v647 = vld [vmem:[#allocation6 + $0x168] sm:$0xf]
    %v648 = vld [vmem:[#allocation6 + $0x16c] sm:$0xf]
    %v649 = vld [vmem:[#allocation6 + $0x170] sm:$0xf]
    %v650 = vld [vmem:[#allocation6 + $0x174] sm:$0xf]
    %v651 = vld [vmem:[#allocation6 + $0x178] sm:$0xf]
    %v652 = vld [vmem:[#allocation6 + $0x17c] sm:$0xf]
    %v653 = vld [vmem:[#allocation6 + $0x180] sm:$0xf]
    %v654 = vld [vmem:[#allocation6 + $0x184] sm:$0xf]
    %v655 = vld [vmem:[#allocation6 + $0x188] sm:$0xf]
    %v656 = vld [vmem:[#allocation6 + $0x18c] sm:$0xf]
    %v657 = vld [vmem:[#allocation6 + $0x190] sm:$0xf]
    %v658 = vld [vmem:[#allocation6 + $0x194] sm:$0xf]
    %v659 = vld [vmem:[#allocation6 + $0x198] sm:$0xf]
    %v660 = vld [vmem:[#allocation6 + $0x19c] sm:$0xf]
    %v661 = vld [vmem:[#allocation6 + $0x1a0] sm:$0xf]
    %v662 = vld [vmem:[#allocation6 + $0x1a4] sm:$0xf]
    %v663 = vld [vmem:[#allocation6 + $0x1a8] sm:$0xf]
    %v664 = vld [vmem:[#allocation6 + $0x1ac] sm:$0xf]
    %v665 = vld [vmem:[#allocation6 + $0x1b0] sm:$0xf]
    %v666 = vld [vmem:[#allocation6 + $0x1b4] sm:$0xf]
    %v667 = vld [vmem:[#allocation6 + $0x1b8] sm:$0xf]
    %v668 = vld [vmem:[#allocation6 + $0x1bc] sm:$0xf]
    %v669 = vld [vmem:[#allocation6 + $0x1c0] sm:$0xf]
    %v670 = vld [vmem:[#allocation6 + $0x1c4] sm:$0xf]
    %v671 = vld [vmem:[#allocation6 + $0x1c8] sm:$0xf]
    %v672 = vld [vmem:[#allocation6 + $0x1cc] sm:$0xf]
    %v673 = vld [vmem:[#allocation6 + $0x1d0] sm:$0xf]
    %v674 = vld [vmem:[#allocation6 + $0x1d4] sm:$0xf]
    %v675 = vld [vmem:[#allocation6 + $0x1d8] sm:$0xf]
    %v676 = vld [vmem:[#allocation6 + $0x1dc] sm:$0xf]
    %v677 = vld [vmem:[#allocation6 + $0x1e0] sm:$0xf]
    %v678 = vld [vmem:[#allocation6 + $0x1e4] sm:$0xf]
    %v679 = vld [vmem:[#allocation6 + $0x1e8] sm:$0xf]
    %v680 = vld [vmem:[#allocation6 + $0x1ec] sm:$0xf]
    %v681 = vld [vmem:[#allocation6 + $0x1f0] sm:$0xf]
    %v682 = vld [vmem:[#allocation6 + $0x1f4] sm:$0xf]
    %v683 = vld [vmem:[#allocation6 + $0x1f8] sm:$0xf]
    %v684 = vld [vmem:[#allocation6 + $0x1fc] sm:$0xf]
    %v685 = vld [vmem:[#allocation6 + $0x200] sm:$0xf]
    %v686 = vld [vmem:[#allocation6 + $0x204] sm:$0xf]
    %v687 = vld [vmem:[#allocation6 + $0x208] sm:$0xf]
    %v688 = vld [vmem:[#allocation6 + $0x20c] sm:$0xf]
    %v689 = vld [vmem:[#allocation6 + $0x210] sm:$0xf]
    %v690 = vld [vmem:[#allocation6 + $0x214] sm:$0xf]
    %v691 = vld [vmem:[#allocation6 + $0x218] sm:$0xf]
    %v692 = vld [vmem:[#allocation6 + $0x21c] sm:$0xf]
    %v693 = vld [vmem:[#allocation6 + $0x220] sm:$0xf]
    %v694 = vld [vmem:[#allocation6 + $0x224] sm:$0xf]
    %v695 = vld [vmem:[#allocation6 + $0x228] sm:$0xf]
    %v696 = vld [vmem:[#allocation6 + $0x22c] sm:$0xf]
    %v697 = vld [vmem:[#allocation6 + $0x230] sm:$0xf]
    %v698 = vld [vmem:[#allocation6 + $0x234] sm:$0xf]
    %v699 = vld [vmem:[#allocation6 + $0x238] sm:$0xf]
    %v700 = vld [vmem:[#allocation6 + $0x23c] sm:$0xf]
    %v701 = vld [vmem:[#allocation6 + $0x240] sm:$0xf]
    %v702 = vld [vmem:[#allocation6 + $0x244] sm:$0xf]
    %v703 = vld [vmem:[#allocation6 + $0x248] sm:$0xf]
    %v704 = vld [vmem:[#allocation6 + $0x24c] sm:$0xf]
    %v705 = vld [vmem:[#allocation6 + $0x250] sm:$0xf]
    %v706 = vld [vmem:[#allocation6 + $0x254] sm:$0xf]
    %v707 = vld [vmem:[#allocation6 + $0x258] sm:$0xf]
    %v708 = vld [vmem:[#allocation6 + $0x25c] sm:$0xf]
    %v709 = vld [vmem:[#allocation6 + $0x260] sm:$0xf]
    %v710 = vld [vmem:[#allocation6 + $0x264] sm:$0xf]
    %v711 = vld [vmem:[#allocation6 + $0x268] sm:$0xf]
    %v712 = vld [vmem:[#allocation6 + $0x26c] sm:$0xf]
    %v713 = vld [vmem:[#allocation6 + $0x270] sm:$0xf]
    %v714 = vld [vmem:[#allocation6 + $0x274] sm:$0xf]
    %v715 = vld [vmem:[#allocation6 + $0x278] sm:$0xf]
    %v716 = vld [vmem:[#allocation6 + $0x27c] sm:$0xf]
    %v717 = vld [vmem:[#allocation6 + $0x280] sm:$0xf]
    %v718 = vld [vmem:[#allocation6 + $0x284] sm:$0xf]
    %v719 = vld [vmem:[#allocation6 + $0x288] sm:$0xf]
    %v720 = vld [vmem:[#allocation6 + $0x28c] sm:$0xf]
    %v721 = vld [vmem:[#allocation6 + $0x290] sm:$0xf]
    %v722 = vld [vmem:[#allocation6 + $0x294] sm:$0xf]
    %v723 = vld [vmem:[#allocation6 + $0x298] sm:$0xf]
    %v724 = vld [vmem:[#allocation6 + $0x29c] sm:$0xf]
    %v725 = vld [vmem:[#allocation6 + $0x2a0] sm:$0xf]
    %v726 = vld [vmem:[#allocation6 + $0x2a4] sm:$0xf]
    %v727 = vld [vmem:[#allocation6 + $0x2a8] sm:$0xf]
    %v728 = vld [vmem:[#allocation6 + $0x2ac] sm:$0xf]
    %v729 = vld [vmem:[#allocation6 + $0x2b0] sm:$0xf]
    %v730 = vld [vmem:[#allocation6 + $0x2b4] sm:$0xf]
    %v731 = vld [vmem:[#allocation6 + $0x2b8] sm:$0xf]
    %v732 = vld [vmem:[#allocation6 + $0x2bc] sm:$0xf]
    %v733 = vld [vmem:[#allocation6 + $0x2c0] sm:$0xf]
    %v734 = vld [vmem:[#allocation6 + $0x2c4] sm:$0xf]
    %v735 = vld [vmem:[#allocation6 + $0x2c8] sm:$0xf]
    %v736 = vld [vmem:[#allocation6 + $0x2cc] sm:$0xf]
    %v737 = vld [vmem:[#allocation6 + $0x2d0] sm:$0xf]
    %v738 = vld [vmem:[#allocation6 + $0x2d4] sm:$0xf]
    %v739 = vld [vmem:[#allocation6 + $0x2d8] sm:$0xf]
    %v740 = vld [vmem:[#allocation6 + $0x2dc] sm:$0xf]
    %v741 = vld [vmem:[#allocation6 + $0x2e0] sm:$0xf]
    %v742 = vld [vmem:[#allocation6 + $0x2e4] sm:$0xf]
    %v743 = vld [vmem:[#allocation6 + $0x2e8] sm:$0xf]
    %v744 = vld [vmem:[#allocation6 + $0x2ec] sm:$0xf]
    %v745 = vld [vmem:[#allocation6 + $0x2f0] sm:$0xf]
    %v746 = vld [vmem:[#allocation6 + $0x2f4] sm:$0xf]
    %v747 = vld [vmem:[#allocation6 + $0x2f8] sm:$0xf]
    %v748 = vld [vmem:[#allocation6 + $0x2fc] sm:$0xf]
    %v749 = vld [vmem:[#allocation6 + $0x300] sm:$0xf]
    %v750 = vld [vmem:[#allocation6 + $0x304] sm:$0xf]
    %v751 = vld [vmem:[#allocation6 + $0x308] sm:$0xf]
    %v752 = vld [vmem:[#allocation6 + $0x30c] sm:$0xf]
    %v753 = vld [vmem:[#allocation6 + $0x310] sm:$0xf]
    %v754 = vld [vmem:[#allocation6 + $0x314] sm:$0xf]
    %v755 = vld [vmem:[#allocation6 + $0x318] sm:$0xf]
    %v756 = vld [vmem:[#allocation6 + $0x31c] sm:$0xf]
    %v757 = vld [vmem:[#allocation6 + $0x320] sm:$0xf]
    %v758 = vld [vmem:[#allocation6 + $0x324] sm:$0xf]
    %v759 = vld [vmem:[#allocation6 + $0x328] sm:$0xf]
    %v760 = vld [vmem:[#allocation6 + $0x32c] sm:$0xf]
    %v761 = vld [vmem:[#allocation6 + $0x330] sm:$0xf]
    %v762 = vld [vmem:[#allocation6 + $0x334] sm:$0xf]
    %v763 = vld [vmem:[#allocation6 + $0x338] sm:$0xf]
    %v764 = vld [vmem:[#allocation6 + $0x33c] sm:$0xf]
    %v765 = vld [vmem:[#allocation6 + $0x340] sm:$0xf]
    %v766 = vld [vmem:[#allocation6 + $0x344] sm:$0xf]
    %v767 = vld [vmem:[#allocation6 + $0x348] sm:$0xf]
    %v768 = vld [vmem:[#allocation6 + $0x34c] sm:$0xf]
    %v769 = vld [vmem:[#allocation6 + $0x350] sm:$0xf]
    %v770 = vld [vmem:[#allocation6 + $0x354] sm:$0xf]
    %v771 = vld [vmem:[#allocation6 + $0x358] sm:$0xf]
    %v772 = vld [vmem:[#allocation6 + $0x35c] sm:$0xf]
    %v773 = vld [vmem:[#allocation6 + $0x360] sm:$0xf]
    %v774 = vld [vmem:[#allocation6 + $0x364] sm:$0xf]
    %v775 = vld [vmem:[#allocation6 + $0x368] sm:$0xf]
    %v776 = vld [vmem:[#allocation6 + $0x36c] sm:$0xf]
    %v777 = vld [vmem:[#allocation6 + $0x370] sm:$0xf]
    %v778 = vld [vmem:[#allocation6 + $0x374] sm:$0xf]
    %v779 = vld [vmem:[#allocation6 + $0x378] sm:$0xf]
    %v780 = vld [vmem:[#allocation6 + $0x37c] sm:$0xf]
    %v781 = vld [vmem:[#allocation6 + $0x380] sm:$0xf]
    %v782 = vld [vmem:[#allocation6 + $0x384] sm:$0xf]
    %v783 = vld [vmem:[#allocation6 + $0x388] sm:$0xf]
    %v784 = vld [vmem:[#allocation6 + $0x38c] sm:$0xf]
    %v785 = vld [vmem:[#allocation6 + $0x390] sm:$0xf]
    %v786 = vld [vmem:[#allocation6 + $0x394] sm:$0xf]
    %v787 = vld [vmem:[#allocation6 + $0x398] sm:$0xf]
    %v788 = vld [vmem:[#allocation6 + $0x39c] sm:$0xf]
    %v789 = vld [vmem:[#allocation6 + $0x3a0] sm:$0xf]
    %v790 = vld [vmem:[#allocation6 + $0x3a4] sm:$0xf]
    %v791 = vld [vmem:[#allocation6 + $0x3a8] sm:$0xf]
    %v792 = vld [vmem:[#allocation6 + $0x3ac] sm:$0xf]
    %v793 = vld [vmem:[#allocation6 + $0x3b0] sm:$0xf]
    %v794 = vld [vmem:[#allocation6 + $0x3b4] sm:$0xf]
    %v795 = vld [vmem:[#allocation6 + $0x3b8] sm:$0xf]
    %v796 = vld [vmem:[#allocation6 + $0x3bc] sm:$0xf]
    %v797 = vld [vmem:[#allocation6 + $0x3c0] sm:$0xf]
    %v798 = vld [vmem:[#allocation6 + $0x3c4] sm:$0xf]
    %v799 = vld [vmem:[#allocation6 + $0x3c8] sm:$0xf]
    %v800 = vld [vmem:[#allocation6 + $0x3cc] sm:$0xf]
    %v801 = vld [vmem:[#allocation6 + $0x3d0] sm:$0xf]
    %v802 = vld [vmem:[#allocation6 + $0x3d4] sm:$0xf]
    %v803 = vld [vmem:[#allocation6 + $0x3d8] sm:$0xf]
    %v804 = vld [vmem:[#allocation6 + $0x3dc] sm:$0xf]
    %v805 = vld [vmem:[#allocation6 + $0x3e0] sm:$0xf]
    %v806 = vld [vmem:[#allocation6 + $0x3e4] sm:$0xf]
    %v807 = vld [vmem:[#allocation6 + $0x3e8] sm:$0xf]
    %v808 = vld [vmem:[#allocation6 + $0x3ec] sm:$0xf]
    %v809 = vld [vmem:[#allocation6 + $0x3f0] sm:$0xf]
    %v810 = vld [vmem:[#allocation6 + $0x3f4] sm:$0xf]
    %v811 = vld [vmem:[#allocation6 + $0x3f8] sm:$0xf]
    %v812 = vld [vmem:[#allocation6 + $0x3fc] sm:$0xf]
    %v813 = vld [vmem:[#allocation6 + $0x400] sm:$0xf]
    %v814 = vld [vmem:[#allocation6 + $0x404] sm:$0xf]
    %v815 = vld [vmem:[#allocation6 + $0x408] sm:$0xf]
    %v816 = vld [vmem:[#allocation6 + $0x40c] sm:$0xf]
    %v817 = vld [vmem:[#allocation6 + $0x410] sm:$0xf]
    %v818 = vld [vmem:[#allocation6 + $0x414] sm:$0xf]
    %v819 = vld [vmem:[#allocation6 + $0x418] sm:$0xf]
    %v820 = vld [vmem:[#allocation6 + $0x41c] sm:$0xf]
    %v821 = vld [vmem:[#allocation6 + $0x420] sm:$0xf]
    %v822 = vld [vmem:[#allocation6 + $0x424] sm:$0xf]
    %v823 = vld [vmem:[#allocation6 + $0x428] sm:$0xf]
    %v824 = vld [vmem:[#allocation6 + $0x42c] sm:$0xf]
    %v825 = vld [vmem:[#allocation6 + $0x430] sm:$0xf]
    %v826 = vld [vmem:[#allocation6 + $0x434] sm:$0xf]
    %v827 = vld [vmem:[#allocation6 + $0x438] sm:$0xf]
    %v828 = vld [vmem:[#allocation6 + $0x43c] sm:$0xf]
    %v829 = vld [vmem:[#allocation6 + $0x440] sm:$0xf]
    %v830 = vld [vmem:[#allocation6 + $0x444] sm:$0xf]
    %v831 = vld [vmem:[#allocation6 + $0x448] sm:$0xf]
    %v832 = vld [vmem:[#allocation6 + $0x44c] sm:$0xf]
    %v833 = vld [vmem:[#allocation6 + $0x450] sm:$0xf]
    %v834 = vld [vmem:[#allocation6 + $0x454] sm:$0xf]
    %v835 = vld [vmem:[#allocation6 + $0x458] sm:$0xf]
    %v836 = vld [vmem:[#allocation6 + $0x45c] sm:$0xf]
    %v837 = vld [vmem:[#allocation6 + $0x460] sm:$0xf]
    %v838 = vld [vmem:[#allocation6 + $0x464] sm:$0xf]
    %v839 = vld [vmem:[#allocation6 + $0x468] sm:$0xf]
    %v840 = vld [vmem:[#allocation6 + $0x46c] sm:$0xf]
    %v841 = vld [vmem:[#allocation6 + $0x470] sm:$0xf]
    %v842 = vld [vmem:[#allocation6 + $0x474] sm:$0xf]
    %v843 = vld [vmem:[#allocation6 + $0x478] sm:$0xf]
    %v844 = vld [vmem:[#allocation6 + $0x47c] sm:$0xf]
    %v845 = vld [vmem:[#allocation6 + $0x480] sm:$0xf]
    %v846 = vld [vmem:[#allocation6 + $0x484] sm:$0xf]
    %v847 = vld [vmem:[#allocation6 + $0x488] sm:$0xf]
    %v848 = vld [vmem:[#allocation6 + $0x48c] sm:$0xf]
    %v849 = vld [vmem:[#allocation6 + $0x490] sm:$0xf]
    %v850 = vld [vmem:[#allocation6 + $0x494] sm:$0xf]
    %v851 = vld [vmem:[#allocation6 + $0x498] sm:$0xf]
    %v852 = vld [vmem:[#allocation6 + $0x49c] sm:$0xf]
    %v853 = vld [vmem:[#allocation6 + $0x4a0] sm:$0xf]
    %v854 = vld [vmem:[#allocation6 + $0x4a4] sm:$0xf]
    %v855 = vld [vmem:[#allocation6 + $0x4a8] sm:$0xf]
    %v856 = vld [vmem:[#allocation6 + $0x4ac] sm:$0xf]
    %v857 = vld [vmem:[#allocation6 + $0x4b0] sm:$0xf]
    %v858 = vld [vmem:[#allocation6 + $0x4b4] sm:$0xf]
    %v859 = vld [vmem:[#allocation6 + $0x4b8] sm:$0xf]
    %v860 = vld [vmem:[#allocation6 + $0x4bc] sm:$0xf]
    %v861 = vld [vmem:[#allocation6 + $0x4c0] sm:$0xf]
    %v862 = vld [vmem:[#allocation6 + $0x4c4] sm:$0xf]
    %v863 = vld [vmem:[#allocation6 + $0x4c8] sm:$0xf]
    %v864 = vld [vmem:[#allocation6 + $0x4cc] sm:$0xf]
    %v865 = vld [vmem:[#allocation6 + $0x4d0] sm:$0xf]
    %v866 = vld [vmem:[#allocation6 + $0x4d4] sm:$0xf]
    %v867 = vld [vmem:[#allocation6 + $0x4d8] sm:$0xf]
    %v868 = vld [vmem:[#allocation6 + $0x4dc] sm:$0xf]
    %v869 = vld [vmem:[#allocation6 + $0x4e0] sm:$0xf]
    %v870 = vld [vmem:[#allocation6 + $0x4e4] sm:$0xf]
    %v871 = vld [vmem:[#allocation6 + $0x4e8] sm:$0xf]
    %v872 = vld [vmem:[#allocation6 + $0x4ec] sm:$0xf]
    %v873 = vld [vmem:[#allocation6 + $0x4f0] sm:$0xf]
    %v874 = vld [vmem:[#allocation6 + $0x4f4] sm:$0xf]
    %v875 = vld [vmem:[#allocation6 + $0x4f8] sm:$0xf]
    %v876 = vld [vmem:[#allocation6 + $0x4fc] sm:$0xf]
    %v877 = vld [vmem:[#allocation6 + $0x500] sm:$0xf]
    %v878 = vld [vmem:[#allocation6 + $0x504] sm:$0xf]
    %v879 = vld [vmem:[#allocation6 + $0x508] sm:$0xf]
    %v880 = vld [vmem:[#allocation6 + $0x50c] sm:$0xf]
    %v881 = vld [vmem:[#allocation6 + $0x510] sm:$0xf]
    %v882 = vld [vmem:[#allocation6 + $0x514] sm:$0xf]
    %v883 = vld [vmem:[#allocation6 + $0x518] sm:$0xf]
    %v884 = vld [vmem:[#allocation6 + $0x51c] sm:$0xf]
    %v885 = vld [vmem:[#allocation6 + $0x520] sm:$0xf]
    %v886 = vld [vmem:[#allocation6 + $0x524] sm:$0xf]
    %v887 = vld [vmem:[#allocation6 + $0x528] sm:$0xf]
    %v888 = vld [vmem:[#allocation6 + $0x52c] sm:$0xf]
    %v889 = vld [vmem:[#allocation6 + $0x530] sm:$0xf]
    %v890 = vld [vmem:[#allocation6 + $0x534] sm:$0xf]
    %v891 = vld [vmem:[#allocation6 + $0x538] sm:$0xf]
    %v892 = vld [vmem:[#allocation6 + $0x53c] sm:$0xf]
    %v893 = vld [vmem:[#allocation6 + $0x540] sm:$0xf]
    %v894 = vld [vmem:[#allocation6 + $0x544] sm:$0xf]
    %v895 = vld [vmem:[#allocation6 + $0x548] sm:$0xf]
    %v896 = vld [vmem:[#allocation6 + $0x54c] sm:$0xf]
    %v897 = vld [vmem:[#allocation6 + $0x550] sm:$0xf]
    %v898 = vld [vmem:[#allocation6 + $0x554] sm:$0xf]
    %v899 = vld [vmem:[#allocation6 + $0x558] sm:$0xf]
    %v900 = vld [vmem:[#allocation6 + $0x55c] sm:$0xf]
    %v901 = vld [vmem:[#allocation6 + $0x560] sm:$0xf]
    %v902 = vld [vmem:[#allocation6 + $0x564] sm:$0xf]
    %v903 = vld [vmem:[#allocation6 + $0x568] sm:$0xf]
    %v904 = vld [vmem:[#allocation6 + $0x56c] sm:$0xf]
    %v905 = vld [vmem:[#allocation6 + $0x570] sm:$0xf]
    %v906 = vld [vmem:[#allocation6 + $0x574] sm:$0xf]
    %v907 = vld [vmem:[#allocation6 + $0x578] sm:$0xf]
    %v908 = vld [vmem:[#allocation6 + $0x57c] sm:$0xf]
    %v909 = vld [vmem:[#allocation6 + $0x580] sm:$0xf]
    %v910 = vld [vmem:[#allocation6 + $0x584] sm:$0xf]
    %v911 = vld [vmem:[#allocation6 + $0x588] sm:$0xf]
    %v912 = vld [vmem:[#allocation6 + $0x58c] sm:$0xf]
    %v913 = vld [vmem:[#allocation6 + $0x590] sm:$0xf]
    %v914 = vld [vmem:[#allocation6 + $0x594] sm:$0xf]
    %v915 = vld [vmem:[#allocation6 + $0x598] sm:$0xf]
    %v916 = vld [vmem:[#allocation6 + $0x59c] sm:$0xf]
    %v917 = vld [vmem:[#allocation6 + $0x5a0] sm:$0xf]
    %v918 = vld [vmem:[#allocation6 + $0x5a4] sm:$0xf]
    %v919 = vld [vmem:[#allocation6 + $0x5a8] sm:$0xf]
    %v920 = vld [vmem:[#allocation6 + $0x5ac] sm:$0xf]
    %v921 = vld [vmem:[#allocation6 + $0x5b0] sm:$0xf]
    %v922 = vld [vmem:[#allocation6 + $0x5b4] sm:$0xf]
    %v923 = vld [vmem:[#allocation6 + $0x5b8] sm:$0xf]
    %v924 = vld [vmem:[#allocation6 + $0x5bc] sm:$0xf]
    %v925 = vld [vmem:[#allocation6 + $0x5c0] sm:$0xf]
    %v926 = vld [vmem:[#allocation6 + $0x5c4] sm:$0xf]
    %v927 = vld [vmem:[#allocation6 + $0x5c8] sm:$0xf]
    %v928 = vld [vmem:[#allocation6 + $0x5cc] sm:$0xf]
    %v929 = vld [vmem:[#allocation6 + $0x5d0] sm:$0xf]
    %v930 = vld [vmem:[#allocation6 + $0x5d4] sm:$0xf]
    %v931 = vld [vmem:[#allocation6 + $0x5d8] sm:$0xf]
    %v932 = vld [vmem:[#allocation6 + $0x5dc] sm:$0xf]
    %v933 = vld [vmem:[#allocation6 + $0x5e0] sm:$0xf]
    %v934 = vld [vmem:[#allocation6 + $0x5e4] sm:$0xf]
    %v935 = vld [vmem:[#allocation6 + $0x5e8] sm:$0xf]
    %v936 = vld [vmem:[#allocation6 + $0x5ec] sm:$0xf]
    %v937 = vld [vmem:[#allocation6 + $0x5f0] sm:$0xf]
    %v938 = vld [vmem:[#allocation6 + $0x5f4] sm:$0xf]
    %v939 = vld [vmem:[#allocation6 + $0x5f8] sm:$0xf]
    %v940 = vld [vmem:[#allocation6 + $0x5fc] sm:$0xf]
    %v941 = vld [vmem:[#allocation6 + $0x600] sm:$0xf]
    %v942 = vld [vmem:[#allocation6 + $0x604] sm:$0xf]
    %v943 = vld [vmem:[#allocation6 + $0x608] sm:$0xf]
    %v944 = vld [vmem:[#allocation6 + $0x60c] sm:$0xf]
    %v945 = vld [vmem:[#allocation6 + $0x610] sm:$0xf]
    %v946 = vld [vmem:[#allocation6 + $0x614] sm:$0xf]
    %v947 = vld [vmem:[#allocation6 + $0x618] sm:$0xf]
    %v948 = vld [vmem:[#allocation6 + $0x61c] sm:$0xf]
    %v949 = vld [vmem:[#allocation6 + $0x620] sm:$0xf]
    %v950 = vld [vmem:[#allocation6 + $0x624] sm:$0xf]
    %v951 = vld [vmem:[#allocation6 + $0x628] sm:$0xf]
    %v952 = vld [vmem:[#allocation6 + $0x62c] sm:$0xf]
    %v953 = vld [vmem:[#allocation6 + $0x630] sm:$0xf]
    %v954 = vld [vmem:[#allocation6 + $0x634] sm:$0xf]
    %v955 = vld [vmem:[#allocation6 + $0x638] sm:$0xf]
    %v956 = vld [vmem:[#allocation6 + $0x63c] sm:$0xf]
    %v957 = vld [vmem:[#allocation6 + $0x640] sm:$0xf]
    %v958 = vld [vmem:[#allocation6 + $0x644] sm:$0xf]
    %v959 = vld [vmem:[#allocation6 + $0x648] sm:$0xf]
    %v960 = vld [vmem:[#allocation6 + $0x64c] sm:$0xf]
    %v961 = vld [vmem:[#allocation6 + $0x650] sm:$0xf]
    %v962 = vld [vmem:[#allocation6 + $0x654] sm:$0xf]
    %v963 = vld [vmem:[#allocation6 + $0x658] sm:$0xf]
    %v964 = vld [vmem:[#allocation6 + $0x65c] sm:$0xf]
    %v965 = vld [vmem:[#allocation6 + $0x660] sm:$0xf]
    %v966 = vld [vmem:[#allocation6 + $0x664] sm:$0xf]
    %v967 = vld [vmem:[#allocation6 + $0x668] sm:$0xf]
    %v968 = vld [vmem:[#allocation6 + $0x66c] sm:$0xf]
    %v969 = vld [vmem:[#allocation6 + $0x670] sm:$0xf]
    %v970 = vld [vmem:[#allocation6 + $0x674] sm:$0xf]
    %v971 = vld [vmem:[#allocation6 + $0x678] sm:$0xf]
    %v972 = vld [vmem:[#allocation6 + $0x67c] sm:$0xf]
    %v973 = vld [vmem:[#allocation6 + $0x680] sm:$0xf]
    %v974 = vld [vmem:[#allocation6 + $0x684] sm:$0xf]
    %v975 = vld [vmem:[#allocation6 + $0x688] sm:$0xf]
    %v976 = vld [vmem:[#allocation6 + $0x68c] sm:$0xf]
    %v977 = vld [vmem:[#allocation6 + $0x690] sm:$0xf]
    %v978 = vld [vmem:[#allocation6 + $0x694] sm:$0xf]
    %v979 = vld [vmem:[#allocation6 + $0x698] sm:$0xf]
    %v980 = vld [vmem:[#allocation6 + $0x69c] sm:$0xf]
    %v981 = vld [vmem:[#allocation6 + $0x6a0] sm:$0xf]
    %v982 = vld [vmem:[#allocation6 + $0x6a4] sm:$0xf]
    %v983 = vld [vmem:[#allocation6 + $0x6a8] sm:$0xf]
    %v984 = vld [vmem:[#allocation6 + $0x6ac] sm:$0xf]
    %v985 = vld [vmem:[#allocation6 + $0x6b0] sm:$0xf]
    %v986 = vld [vmem:[#allocation6 + $0x6b4] sm:$0xf]
    %v987 = vld [vmem:[#allocation6 + $0x6b8] sm:$0xf]
    %v988 = vld [vmem:[#allocation6 + $0x6bc] sm:$0xf]
    %v989 = vld [vmem:[#allocation6 + $0x6c0] sm:$0xf]
    %v990 = vld [vmem:[#allocation6 + $0x6c4] sm:$0xf]
    %v991 = vld [vmem:[#allocation6 + $0x6c8] sm:$0xf]
    %v992 = vld [vmem:[#allocation6 + $0x6cc] sm:$0xf]
    %v993 = vld [vmem:[#allocation6 + $0x6d0] sm:$0xf]
    %v994 = vld [vmem:[#allocation6 + $0x6d4] sm:$0xf]
    %v995 = vld [vmem:[#allocation6 + $0x6d8] sm:$0xf]
    %v996 = vld [vmem:[#allocation6 + $0x6dc] sm:$0xf]
    %v997 = vld [vmem:[#allocation6 + $0x6e0] sm:$0xf]
    %v998 = vld [vmem:[#allocation6 + $0x6e4] sm:$0xf]
    %v999 = vld [vmem:[#allocation6 + $0x6e8] sm:$0xf]
    %v1000 = vld [vmem:[#allocation6 + $0x6ec] sm:$0xf]
    %v1001 = vld [vmem:[#allocation6 + $0x6f0] sm:$0xf]
    %v1002 = vld [vmem:[#allocation6 + $0x6f4] sm:$0xf]
    %v1003 = vld [vmem:[#allocation6 + $0x6f8] sm:$0xf]
    %v1004 = vld [vmem:[#allocation6 + $0x6fc] sm:$0xf]
    %v1005 = vld [vmem:[#allocation6 + $0x700] sm:$0xf]
    %v1006 = vld [vmem:[#allocation6 + $0x704] sm:$0xf]
    %v1007 = vld [vmem:[#allocation6 + $0x708] sm:$0xf]
    %v1008 = vld [vmem:[#allocation6 + $0x70c] sm:$0xf]
    %v1009 = vld [vmem:[#allocation6 + $0x710] sm:$0xf]
    %v1010 = vld [vmem:[#allocation6 + $0x714] sm:$0xf]
    %v1011 = vld [vmem:[#allocation6 + $0x718] sm:$0xf]
    %v1012 = vld [vmem:[#allocation6 + $0x71c] sm:$0xf]
    %v1013 = vld [vmem:[#allocation6 + $0x720] sm:$0xf]
    %v1014 = vld [vmem:[#allocation6 + $0x724] sm:$0xf]
    %v1015 = vld [vmem:[#allocation6 + $0x728] sm:$0xf]
    %v1016 = vld [vmem:[#allocation6 + $0x72c] sm:$0xf]
    %v1017 = vld [vmem:[#allocation6 + $0x730] sm:$0xf]
    %v1018 = vld [vmem:[#allocation6 + $0x734] sm:$0xf]
    %v1019 = vld [vmem:[#allocation6 + $0x738] sm:$0xf]
    %v1020 = vld [vmem:[#allocation6 + $0x73c] sm:$0xf]
    %v1021 = vld [vmem:[#allocation6 + $0x740] sm:$0xf]
    %v1022 = vld [vmem:[#allocation6 + $0x744] sm:$0xf]
    %v1023 = vld [vmem:[#allocation6 + $0x748] sm:$0xf]
    %v1024 = vld [vmem:[#allocation6 + $0x74c] sm:$0xf]
    %v1025 = vld [vmem:[#allocation6 + $0x750] sm:$0xf]
    %v1026 = vld [vmem:[#allocation6 + $0x754] sm:$0xf]
    %v1027 = vld [vmem:[#allocation6 + $0x758] sm:$0xf]
    %v1028 = vld [vmem:[#allocation6 + $0x75c] sm:$0xf]
    %v1029 = vld [vmem:[#allocation6 + $0x760] sm:$0xf]
    %v1030 = vld [vmem:[#allocation6 + $0x764] sm:$0xf]
    %v1031 = vld [vmem:[#allocation6 + $0x768] sm:$0xf]
    %v1032 = vld [vmem:[#allocation6 + $0x76c] sm:$0xf]
    %v1033 = vld [vmem:[#allocation6 + $0x770] sm:$0xf]
    %v1034 = vld [vmem:[#allocation6 + $0x774] sm:$0xf]
    %v1035 = vld [vmem:[#allocation6 + $0x778] sm:$0xf]
    %v1036 = vld [vmem:[#allocation6 + $0x77c] sm:$0xf]
    %v1037 = vld [vmem:[#allocation6 + $0x780] sm:$0xf]
    %v1038 = vld [vmem:[#allocation6 + $0x784] sm:$0xf]
    %v1039 = vld [vmem:[#allocation6 + $0x788] sm:$0xf]
    %v1040 = vld [vmem:[#allocation6 + $0x78c] sm:$0xf]
    %v1041 = vld [vmem:[#allocation6 + $0x790] sm:$0xf]
    %v1042 = vld [vmem:[#allocation6 + $0x794] sm:$0xf]
    %v1043 = vld [vmem:[#allocation6 + $0x798] sm:$0xf]
    %v1044 = vld [vmem:[#allocation6 + $0x79c] sm:$0xf]
    %v1045 = vld [vmem:[#allocation6 + $0x7a0] sm:$0xf]
    %v1046 = vld [vmem:[#allocation6 + $0x7a4] sm:$0xf]
    %v1047 = vld [vmem:[#allocation6 + $0x7a8] sm:$0xf]
    %v1048 = vld [vmem:[#allocation6 + $0x7ac] sm:$0xf]
    %v1049 = vld [vmem:[#allocation6 + $0x7b0] sm:$0xf]
    %v1050 = vld [vmem:[#allocation6 + $0x7b4] sm:$0xf]
    %v1051 = vld [vmem:[#allocation6 + $0x7b8] sm:$0xf]
    %v1052 = vld [vmem:[#allocation6 + $0x7bc] sm:$0xf]
    %v1053 = vld [vmem:[#allocation6 + $0x7c0] sm:$0xf]
    %v1054 = vld [vmem:[#allocation6 + $0x7c4] sm:$0xf]
    %v1055 = vld [vmem:[#allocation6 + $0x7c8] sm:$0xf]
    %v1056 = vld [vmem:[#allocation6 + $0x7cc] sm:$0xf]
    %v1057 = vld [vmem:[#allocation6 + $0x7d0] sm:$0xf]
    %v1058 = vld [vmem:[#allocation6 + $0x7d4] sm:$0xf]
    %v1059 = vld [vmem:[#allocation6 + $0x7d8] sm:$0xf]
    %v1060 = vld [vmem:[#allocation6 + $0x7dc] sm:$0xf]
    %v1061 = vld [vmem:[#allocation6 + $0x7e0] sm:$0xf]
    %v1062 = vld [vmem:[#allocation6 + $0x7e4] sm:$0xf]
    %v1063 = vld [vmem:[#allocation6 + $0x7e8] sm:$0xf]
    %v1064 = vld [vmem:[#allocation6 + $0x7ec] sm:$0xf]
    %v1065 = vld [vmem:[#allocation6 + $0x7f0] sm:$0xf]
    %v1066 = vld [vmem:[#allocation6 + $0x7f4] sm:$0xf]
    %v1067 = vld [vmem:[#allocation6 + $0x7f8] sm:$0xf]
    %v1068 = vld [vmem:[#allocation6 + $0x7fc] sm:$0xf]
    %v1069 = vld [vmem:[#allocation6 + $0x800] sm:$0xf]
    %v1070 = vld [vmem:[#allocation6 + $0x804] sm:$0xf]
    %v1071 = vld [vmem:[#allocation6 + $0x808] sm:$0xf]
    %v1072 = vld [vmem:[#allocation6 + $0x80c] sm:$0xf]
    %v1073 = vld [vmem:[#allocation6 + $0x810] sm:$0xf]
    %v1074 = vld [vmem:[#allocation6 + $0x814] sm:$0xf]
    %v1075 = vld [vmem:[#allocation6 + $0x818] sm:$0xf]
    %v1076 = vld [vmem:[#allocation6 + $0x81c] sm:$0xf]
    %v1077 = vld [vmem:[#allocation6 + $0x820] sm:$0xf]
    %v1078 = vld [vmem:[#allocation6 + $0x824] sm:$0xf]
    %v1079 = vld [vmem:[#allocation6 + $0x828] sm:$0xf]
    %v1080 = vld [vmem:[#allocation6 + $0x82c] sm:$0xf]
    %v1081 = vld [vmem:[#allocation6 + $0x830] sm:$0xf]
    %v1082 = vld [vmem:[#allocation6 + $0x834] sm:$0xf]
    %v1083 = vld [vmem:[#allocation6 + $0x838] sm:$0xf]
    %v1084 = vld [vmem:[#allocation6 + $0x83c] sm:$0xf]
    %v1085 = vld [vmem:[#allocation6 + $0x840] sm:$0xf]
    %v1086 = vld [vmem:[#allocation6 + $0x844] sm:$0xf]
    %v1087 = vld [vmem:[#allocation6 + $0x848] sm:$0xf]
    %v1088 = vld [vmem:[#allocation6 + $0x84c] sm:$0xf]
    %v1089 = vld [vmem:[#allocation6 + $0x850] sm:$0xf]
    %v1090 = vld [vmem:[#allocation6 + $0x854] sm:$0xf]
    %v1091 = vld [vmem:[#allocation6 + $0x858] sm:$0xf]
    %v1092 = vld [vmem:[#allocation6 + $0x85c] sm:$0xf]
    %v1093 = vld [vmem:[#allocation6 + $0x860] sm:$0xf]
    %v1094 = vld [vmem:[#allocation6 + $0x864] sm:$0xf]
    %v1095 = vld [vmem:[#allocation6 + $0x868] sm:$0xf]
    %v1096 = vld [vmem:[#allocation6 + $0x86c] sm:$0xf]
    %v1097 = vld [vmem:[#allocation6 + $0x870] sm:$0xf]
    %v1098 = vld [vmem:[#allocation6 + $0x874] sm:$0xf]
    %v1099 = vld [vmem:[#allocation6 + $0x878] sm:$0xf]
    %v1100 = vld [vmem:[#allocation6 + $0x87c] sm:$0xf]
    %v1101 = vld [vmem:[#allocation6 + $0x880] sm:$0xf]
    %v1102 = vld [vmem:[#allocation6 + $0x884] sm:$0xf]
    %v1103 = vld [vmem:[#allocation6 + $0x888] sm:$0xf]
    %v1104 = vld [vmem:[#allocation6 + $0x88c] sm:$0xf]
    %v1105 = vld [vmem:[#allocation6 + $0x890] sm:$0xf]
    %v1106 = vld [vmem:[#allocation6 + $0x894] sm:$0xf]
    %v1107 = vld [vmem:[#allocation6 + $0x898] sm:$0xf]
    %v1108 = vld [vmem:[#allocation6 + $0x89c] sm:$0xf]
    %v1109 = vld [vmem:[#allocation6 + $0x8a0] sm:$0xf]
    %v1110 = vld [vmem:[#allocation6 + $0x8a4] sm:$0xf]
    %v1111 = vld [vmem:[#allocation6 + $0x8a8] sm:$0xf]
    %v1112 = vld [vmem:[#allocation6 + $0x8ac] sm:$0xf]
    %v1113 = vld [vmem:[#allocation6 + $0x8b0] sm:$0xf]
    %v1114 = vld [vmem:[#allocation6 + $0x8b4] sm:$0xf]
    %v1115 = vld [vmem:[#allocation6 + $0x8b8] sm:$0xf]
    %v1116 = vld [vmem:[#allocation6 + $0x8bc] sm:$0xf]
    %v1117 = vld [vmem:[#allocation6 + $0x8c0] sm:$0xf]
    %v1118 = vld [vmem:[#allocation6 + $0x8c4] sm:$0xf]
    %v1119 = vld [vmem:[#allocation6 + $0x8c8] sm:$0xf]
    %v1120 = vld [vmem:[#allocation6 + $0x8cc] sm:$0xf]
    %v1121 = vld [vmem:[#allocation6 + $0x8d0] sm:$0xf]
    %v1122 = vld [vmem:[#allocation6 + $0x8d4] sm:$0xf]
    %v1123 = vld [vmem:[#allocation6 + $0x8d8] sm:$0xf]
    %v1124 = vld [vmem:[#allocation6 + $0x8dc] sm:$0xf]
    %v1125 = vld [vmem:[#allocation6 + $0x8e0] sm:$0xf]
    %v1126 = vld [vmem:[#allocation6 + $0x8e4] sm:$0xf]
    %v1127 = vld [vmem:[#allocation6 + $0x8e8] sm:$0xf]
    %v1128 = vld [vmem:[#allocation6 + $0x8ec] sm:$0xf]
    %v1129 = vld [vmem:[#allocation6 + $0x8f0] sm:$0xf]
    %v1130 = vld [vmem:[#allocation6 + $0x8f4] sm:$0xf]
    %v1131 = vld [vmem:[#allocation6 + $0x8f8] sm:$0xf]
    %v1132 = vld [vmem:[#allocation6 + $0x8fc] sm:$0xf]
    %v1133 = vld [vmem:[#allocation6 + $0x900] sm:$0xf]
    %v1134 = vld [vmem:[#allocation6 + $0x904] sm:$0xf]
    %v1135 = vld [vmem:[#allocation6 + $0x908] sm:$0xf]
    %v1136 = vld [vmem:[#allocation6 + $0x90c] sm:$0xf]
    %v1137 = vld [vmem:[#allocation6 + $0x910] sm:$0xf]
    %v1138 = vld [vmem:[#allocation6 + $0x914] sm:$0xf]
    %v1139 = vld [vmem:[#allocation6 + $0x918] sm:$0xf]
    %v1140 = vld [vmem:[#allocation6 + $0x91c] sm:$0xf]
    %v1141 = vld [vmem:[#allocation6 + $0x920] sm:$0xf]
    %v1142 = vld [vmem:[#allocation6 + $0x924] sm:$0xf]
    %v1143 = vld [vmem:[#allocation6 + $0x928] sm:$0xf]
    %v1144 = vld [vmem:[#allocation6 + $0x92c] sm:$0xf]
    %v1145 = vld [vmem:[#allocation6 + $0x930] sm:$0xf]
    %v1146 = vld [vmem:[#allocation6 + $0x934] sm:$0xf]
    %v1147 = vld [vmem:[#allocation6 + $0x938] sm:$0xf]
    %v1148 = vld [vmem:[#allocation6 + $0x93c] sm:$0xf]
    %v1149 = vld [vmem:[#allocation6 + $0x940] sm:$0xf]
    %v1150 = vld [vmem:[#allocation6 + $0x944] sm:$0xf]
    %v1151 = vld [vmem:[#allocation6 + $0x948] sm:$0xf]
    %v1152 = vld [vmem:[#allocation6 + $0x94c] sm:$0xf]
    %v1153 = vld [vmem:[#allocation6 + $0x950] sm:$0xf]
    %v1154 = vld [vmem:[#allocation6 + $0x954] sm:$0xf]
    %v1155 = vld [vmem:[#allocation6 + $0x958] sm:$0xf]
    %v1156 = vld [vmem:[#allocation6 + $0x95c] sm:$0xf]
    %v1157 = vld [vmem:[#allocation6 + $0x960] sm:$0xf]
    %v1158 = vld [vmem:[#allocation6 + $0x964] sm:$0xf]
    %v1159 = vld [vmem:[#allocation6 + $0x968] sm:$0xf]
    %v1160 = vld [vmem:[#allocation6 + $0x96c] sm:$0xf]
    %v1161 = vld [vmem:[#allocation6 + $0x970] sm:$0xf]
    %v1162 = vld [vmem:[#allocation6 + $0x974] sm:$0xf]
    %v1163 = vld [vmem:[#allocation6 + $0x978] sm:$0xf]
    %v1164 = vld [vmem:[#allocation6 + $0x97c] sm:$0xf]
    %v1165 = vld [vmem:[#allocation6 + $0x980] sm:$0xf]
    %v1166 = vld [vmem:[#allocation6 + $0x984] sm:$0xf]
    %v1167 = vld [vmem:[#allocation6 + $0x988] sm:$0xf]
    %v1168 = vld [vmem:[#allocation6 + $0x98c] sm:$0xf]
    %v1169 = vld [vmem:[#allocation6 + $0x990] sm:$0xf]
    %v1170 = vld [vmem:[#allocation6 + $0x994] sm:$0xf]
    %v1171 = vld [vmem:[#allocation6 + $0x998] sm:$0xf]
    %v1172 = vld [vmem:[#allocation6 + $0x99c] sm:$0xf]
    %v1173 = vld [vmem:[#allocation6 + $0x9a0] sm:$0xf]
    %v1174 = vld [vmem:[#allocation6 + $0x9a4] sm:$0xf]
    %v1175 = vld [vmem:[#allocation6 + $0x9a8] sm:$0xf]
    %v1176 = vld [vmem:[#allocation6 + $0x9ac] sm:$0xf]
    %v1177 = vld [vmem:[#allocation6 + $0x9b0] sm:$0xf]
    %v1178 = vld [vmem:[#allocation6 + $0x9b4] sm:$0xf]
    %v1179 = vld [vmem:[#allocation6 + $0x9b8] sm:$0xf]
    %v1180 = vld [vmem:[#allocation6 + $0x9bc] sm:$0xf]
    %v1181 = vld [vmem:[#allocation6 + $0x9c0] sm:$0xf]
    %v1182 = vld [vmem:[#allocation6 + $0x9c4] sm:$0xf]
    %v1183 = vld [vmem:[#allocation6 + $0x9c8] sm:$0xf]
    %v1184 = vld [vmem:[#allocation6 + $0x9cc] sm:$0xf]
    %v1185 = vld [vmem:[#allocation6 + $0x9d0] sm:$0xf]
    %v1186 = vld [vmem:[#allocation6 + $0x9d4] sm:$0xf]
    %v1187 = vld [vmem:[#allocation6 + $0x9d8] sm:$0xf]
    %v1188 = vld [vmem:[#allocation6 + $0x9dc] sm:$0xf]
    %v1189 = vld [vmem:[#allocation6 + $0x9e0] sm:$0xf]
    %v1190 = vld [vmem:[#allocation6 + $0x9e4] sm:$0xf]
    %v1191 = vld [vmem:[#allocation6 + $0x9e8] sm:$0xf]
    %v1192 = vld [vmem:[#allocation6 + $0x9ec] sm:$0xf]
    %v1193 = vld [vmem:[#allocation6 + $0x9f0] sm:$0xf]
    %v1194 = vld [vmem:[#allocation6 + $0x9f4] sm:$0xf]
    %v1195 = vld [vmem:[#allocation6 + $0x9f8] sm:$0xf]
    %v1196 = vld [vmem:[#allocation6 + $0x9fc] sm:$0xf]
    %v1197 = vld [vmem:[#allocation6 + $0xa00] sm:$0xf]
    %v1198 = vld [vmem:[#allocation6 + $0xa04] sm:$0xf]
    %v1199 = vld [vmem:[#allocation6 + $0xa08] sm:$0xf]
    %v1200 = vld [vmem:[#allocation6 + $0xa0c] sm:$0xf]
    %v1201 = vld [vmem:[#allocation6 + $0xa10] sm:$0xf]
    %v1202 = vld [vmem:[#allocation6 + $0xa14] sm:$0xf]
    %v1203 = vld [vmem:[#allocation6 + $0xa18] sm:$0xf]
    %v1204 = vld [vmem:[#allocation6 + $0xa1c] sm:$0xf]
    %v1205 = vld [vmem:[#allocation6 + $0xa20] sm:$0xf]
    %v1206 = vld [vmem:[#allocation6 + $0xa24] sm:$0xf]
    %v1207 = vld [vmem:[#allocation6 + $0xa28] sm:$0xf]
    %v1208 = vld [vmem:[#allocation6 + $0xa2c] sm:$0xf]
    %v1209 = vld [vmem:[#allocation6 + $0xa30] sm:$0xf]
    %v1210 = vld [vmem:[#allocation6 + $0xa34] sm:$0xf]
    %v1211 = vld [vmem:[#allocation6 + $0xa38] sm:$0xf]
    %v1212 = vld [vmem:[#allocation6 + $0xa3c] sm:$0xf]
    %v1213 = vld [vmem:[#allocation6 + $0xa40] sm:$0xf]
    %v1214 = vld [vmem:[#allocation6 + $0xa44] sm:$0xf]
    %v1215 = vld [vmem:[#allocation6 + $0xa48] sm:$0xf]
    %v1216 = vld [vmem:[#allocation6 + $0xa4c] sm:$0xf]
    %v1217 = vld [vmem:[#allocation6 + $0xa50] sm:$0xf]
    %v1218 = vld [vmem:[#allocation6 + $0xa54] sm:$0xf]
    %v1219 = vld [vmem:[#allocation6 + $0xa58] sm:$0xf]
    %v1220 = vld [vmem:[#allocation6 + $0xa5c] sm:$0xf]
    %v1221 = vld [vmem:[#allocation6 + $0xa60] sm:$0xf]
    %v1222 = vld [vmem:[#allocation6 + $0xa64] sm:$0xf]
    %v1223 = vld [vmem:[#allocation6 + $0xa68] sm:$0xf]
    %v1224 = vld [vmem:[#allocation6 + $0xa6c] sm:$0xf]
    %v1225 = vld [vmem:[#allocation6 + $0xa70] sm:$0xf]
    %v1226 = vld [vmem:[#allocation6 + $0xa74] sm:$0xf]
    %v1227 = vld [vmem:[#allocation6 + $0xa78] sm:$0xf]
    %v1228 = vld [vmem:[#allocation6 + $0xa7c] sm:$0xf]
    %v1229 = vld [vmem:[#allocation6 + $0xa80] sm:$0xf]
    %v1230 = vld [vmem:[#allocation6 + $0xa84] sm:$0xf]
    %v1231 = vld [vmem:[#allocation6 + $0xa88] sm:$0xf]
    %v1232 = vld [vmem:[#allocation6 + $0xa8c] sm:$0xf]
    %v1233 = vld [vmem:[#allocation6 + $0xa90] sm:$0xf]
    %v1234 = vld [vmem:[#allocation6 + $0xa94] sm:$0xf]
    %v1235 = vld [vmem:[#allocation6 + $0xa98] sm:$0xf]
    %v1236 = vld [vmem:[#allocation6 + $0xa9c] sm:$0xf]
    %v1237 = vld [vmem:[#allocation6 + $0xaa0] sm:$0xf]
    %v1238 = vld [vmem:[#allocation6 + $0xaa4] sm:$0xf]
    %v1239 = vld [vmem:[#allocation6 + $0xaa8] sm:$0xf]
    %v1240 = vld [vmem:[#allocation6 + $0xaac] sm:$0xf]
    %v1241 = vld [vmem:[#allocation6 + $0xab0] sm:$0xf]
    %v1242 = vld [vmem:[#allocation6 + $0xab4] sm:$0xf]
    %v1243 = vld [vmem:[#allocation6 + $0xab8] sm:$0xf]
    %v1244 = vld [vmem:[#allocation6 + $0xabc] sm:$0xf]
    %v1245 = vld [vmem:[#allocation6 + $0xac0] sm:$0xf]
    %v1246 = vld [vmem:[#allocation6 + $0xac4] sm:$0xf]
    %v1247 = vld [vmem:[#allocation6 + $0xac8] sm:$0xf]
    %v1248 = vld [vmem:[#allocation6 + $0xacc] sm:$0xf]
    %v1249 = vld [vmem:[#allocation6 + $0xad0] sm:$0xf]
    %v1250 = vld [vmem:[#allocation6 + $0xad4] sm:$0xf]
    %v1251 = vld [vmem:[#allocation6 + $0xad8] sm:$0xf]
    %v1252 = vld [vmem:[#allocation6 + $0xadc] sm:$0xf]
    %v1253 = vld [vmem:[#allocation6 + $0xae0] sm:$0xf]
    %v1254 = vld [vmem:[#allocation6 + $0xae4] sm:$0xf]
    %v1255 = vld [vmem:[#allocation6 + $0xae8] sm:$0xf]
    %v1256 = vld [vmem:[#allocation6 + $0xaec] sm:$0xf]
    %v1257 = vld [vmem:[#allocation6 + $0xaf0] sm:$0xf]
    %v1258 = vld [vmem:[#allocation6 + $0xaf4] sm:$0xf]
    %v1259 = vld [vmem:[#allocation6 + $0xaf8] sm:$0xf]
    %v1260 = vld [vmem:[#allocation6 + $0xafc] sm:$0xf]
    %v1261 = vld [vmem:[#allocation6 + $0xb00] sm:$0xf]
    %v1262 = vld [vmem:[#allocation6 + $0xb04] sm:$0xf]
    %v1263 = vld [vmem:[#allocation6 + $0xb08] sm:$0xf]
    %v1264 = vld [vmem:[#allocation6 + $0xb0c] sm:$0xf]
    %v1265 = vld [vmem:[#allocation6 + $0xb10] sm:$0xf]
    %v1266 = vld [vmem:[#allocation6 + $0xb14] sm:$0xf]
    %v1267 = vld [vmem:[#allocation6 + $0xb18] sm:$0xf]
    %v1268 = vld [vmem:[#allocation6 + $0xb1c] sm:$0xf]
    %v1269 = vld [vmem:[#allocation6 + $0xb20] sm:$0xf]
    %v1270 = vld [vmem:[#allocation6 + $0xb24] sm:$0xf]
    %v1271 = vld [vmem:[#allocation6 + $0xb28] sm:$0xf]
    %v1272 = vld [vmem:[#allocation6 + $0xb2c] sm:$0xf]
    %v1273 = vld [vmem:[#allocation6 + $0xb30] sm:$0xf]
    %v1274 = vld [vmem:[#allocation6 + $0xb34] sm:$0xf]
    %v1275 = vld [vmem:[#allocation6 + $0xb38] sm:$0xf]
    %v1276 = vld [vmem:[#allocation6 + $0xb3c] sm:$0xf]
    %v1277 = vld [vmem:[#allocation6 + $0xb40] sm:$0xf]
    %v1278 = vld [vmem:[#allocation6 + $0xb44] sm:$0xf]
    %v1279 = vld [vmem:[#allocation6 + $0xb48] sm:$0xf]
    %v1280 = vld [vmem:[#allocation6 + $0xb4c] sm:$0xf]
    %v1281 = vld [vmem:[#allocation6 + $0xb50] sm:$0xf]
    %v1282 = vld [vmem:[#allocation6 + $0xb54] sm:$0xf]
    %v1283 = vld [vmem:[#allocation6 + $0xb58] sm:$0xf]
    %v1284 = vld [vmem:[#allocation6 + $0xb5c] sm:$0xf]
    %v1285 = vld [vmem:[#allocation6 + $0xb60] sm:$0xf]
    %v1286 = vld [vmem:[#allocation6 + $0xb64] sm:$0xf]
    %v1287 = vld [vmem:[#allocation6 + $0xb68] sm:$0xf]
    %v1288 = vld [vmem:[#allocation6 + $0xb6c] sm:$0xf]
    %v1289 = vld [vmem:[#allocation6 + $0xb70] sm:$0xf]
    %v1290 = vld [vmem:[#allocation6 + $0xb74] sm:$0xf]
    %v1291 = vld [vmem:[#allocation6 + $0xb78] sm:$0xf]
    %v1292 = vld [vmem:[#allocation6 + $0xb7c] sm:$0xf]
    %v1293 = vld [vmem:[#allocation6 + $0xb80] sm:$0xf]
    %v1294 = vld [vmem:[#allocation6 + $0xb84] sm:$0xf]
    %v1295 = vld [vmem:[#allocation6 + $0xb88] sm:$0xf]
    %v1296 = vld [vmem:[#allocation6 + $0xb8c] sm:$0xf]
    %v1297 = vld [vmem:[#allocation6 + $0xb90] sm:$0xf]
    %v1298 = vld [vmem:[#allocation6 + $0xb94] sm:$0xf]
    %v1299 = vld [vmem:[#allocation6 + $0xb98] sm:$0xf]
    %v1300 = vld [vmem:[#allocation6 + $0xb9c] sm:$0xf]
    %v1301 = vld [vmem:[#allocation6 + $0xba0] sm:$0xf]
    %v1302 = vld [vmem:[#allocation6 + $0xba4] sm:$0xf]
    %v1303 = vld [vmem:[#allocation6 + $0xba8] sm:$0xf]
    %v1304 = vld [vmem:[#allocation6 + $0xbac] sm:$0xf]
    %v1305 = vld [vmem:[#allocation6 + $0xbb0] sm:$0xf]
    %v1306 = vld [vmem:[#allocation6 + $0xbb4] sm:$0xf]
    %v1307 = vld [vmem:[#allocation6 + $0xbb8] sm:$0xf]
    %v1308 = vld [vmem:[#allocation6 + $0xbbc] sm:$0xf]
    %v1309 = vld [vmem:[#allocation6 + $0xbc0] sm:$0xf]
    %v1310 = vld [vmem:[#allocation6 + $0xbc4] sm:$0xf]
    %v1311 = vld [vmem:[#allocation6 + $0xbc8] sm:$0xf]
    %v1312 = vld [vmem:[#allocation6 + $0xbcc] sm:$0xf]
    %v1313 = vld [vmem:[#allocation6 + $0xbd0] sm:$0xf]
    %v1314 = vld [vmem:[#allocation6 + $0xbd4] sm:$0xf]
    %v1315 = vld [vmem:[#allocation6 + $0xbd8] sm:$0xf]
    %v1316 = vld [vmem:[#allocation6 + $0xbdc] sm:$0xf]
    %v1317 = vld [vmem:[#allocation6 + $0xbe0] sm:$0xf]
    %v1318 = vld [vmem:[#allocation6 + $0xbe4] sm:$0xf]
    %v1319 = vld [vmem:[#allocation6 + $0xbe8] sm:$0xf]
    %v1320 = vld [vmem:[#allocation6 + $0xbec] sm:$0xf]
    %v1321 = vld [vmem:[#allocation6 + $0xbf0] sm:$0xf]
    %v1322 = vld [vmem:[#allocation6 + $0xbf4] sm:$0xf]
    %v1323 = vld [vmem:[#allocation6 + $0xbf8] sm:$0xf]
    %v1324 = vld [vmem:[#allocation6 + $0xbfc] sm:$0xf]
    %v1325 = vld [vmem:[#allocation6 + $0xc00] sm:$0xf]
    %v1326 = vld [vmem:[#allocation6 + $0xc04] sm:$0xf]
    %v1327 = vld [vmem:[#allocation6 + $0xc08] sm:$0xf]
    %v1328 = vld [vmem:[#allocation6 + $0xc0c] sm:$0xf]
    %v1329 = vld [vmem:[#allocation6 + $0xc10] sm:$0xf]
    %v1330 = vld [vmem:[#allocation6 + $0xc14] sm:$0xf]
    %v1331 = vld [vmem:[#allocation6 + $0xc18] sm:$0xf]
    %v1332 = vld [vmem:[#allocation6 + $0xc1c] sm:$0xf]
    %v1333 = vld [vmem:[#allocation6 + $0xc20] sm:$0xf]
    %v1334 = vld [vmem:[#allocation6 + $0xc24] sm:$0xf]
    %v1335 = vld [vmem:[#allocation6 + $0xc28] sm:$0xf]
    %v1336 = vld [vmem:[#allocation6 + $0xc2c] sm:$0xf]
    %v1337 = vld [vmem:[#allocation6 + $0xc30] sm:$0xf]
    %v1338 = vld [vmem:[#allocation6 + $0xc34] sm:$0xf]
    %v1339 = vld [vmem:[#allocation6 + $0xc38] sm:$0xf]
    %v1340 = vld [vmem:[#allocation6 + $0xc3c] sm:$0xf]
    %v1341 = vld [vmem:[#allocation6 + $0xc40] sm:$0xf]
    %v1342 = vld [vmem:[#allocation6 + $0xc44] sm:$0xf]
    %v1343 = vld [vmem:[#allocation6 + $0xc48] sm:$0xf]
    %v1344 = vld [vmem:[#allocation6 + $0xc4c] sm:$0xf]
    %v1345 = vld [vmem:[#allocation6 + $0xc50] sm:$0xf]
    %v1346 = vld [vmem:[#allocation6 + $0xc54] sm:$0xf]
    %v1347 = vld [vmem:[#allocation6 + $0xc58] sm:$0xf]
    %v1348 = vld [vmem:[#allocation6 + $0xc5c] sm:$0xf]
    %v1349 = vld [vmem:[#allocation6 + $0xc60] sm:$0xf]
    %v1350 = vld [vmem:[#allocation6 + $0xc64] sm:$0xf]
    %v1351 = vld [vmem:[#allocation6 + $0xc68] sm:$0xf]
    %v1352 = vld [vmem:[#allocation6 + $0xc6c] sm:$0xf]
    %v1353 = vld [vmem:[#allocation6 + $0xc70] sm:$0xf]
    %v1354 = vld [vmem:[#allocation6 + $0xc74] sm:$0xf]
    %v1355 = vld [vmem:[#allocation6 + $0xc78] sm:$0xf]
    %v1356 = vld [vmem:[#allocation6 + $0xc7c] sm:$0xf]
    %v1357 = vld [vmem:[#allocation6 + $0xc80] sm:$0xf]
    %v1358 = vld [vmem:[#allocation6 + $0xc84] sm:$0xf]
    %v1359 = vld [vmem:[#allocation6 + $0xc88] sm:$0xf]
    %v1360 = vld [vmem:[#allocation6 + $0xc8c] sm:$0xf]
    %v1361 = vld [vmem:[#allocation6 + $0xc90] sm:$0xf]
    %v1362 = vld [vmem:[#allocation6 + $0xc94] sm:$0xf]
    %v1363 = vld [vmem:[#allocation6 + $0xc98] sm:$0xf]
    %v1364 = vld [vmem:[#allocation6 + $0xc9c] sm:$0xf]
    %v1365 = vld [vmem:[#allocation6 + $0xca0] sm:$0xf]
    %v1366 = vld [vmem:[#allocation6 + $0xca4] sm:$0xf]
    %v1367 = vld [vmem:[#allocation6 + $0xca8] sm:$0xf]
    %v1368 = vld [vmem:[#allocation6 + $0xcac] sm:$0xf]
    %v1369 = vld [vmem:[#allocation6 + $0xcb0] sm:$0xf]
    %v1370 = vld [vmem:[#allocation6 + $0xcb4] sm:$0xf]
    %v1371 = vld [vmem:[#allocation6 + $0xcb8] sm:$0xf]
    %v1372 = vld [vmem:[#allocation6 + $0xcbc] sm:$0xf]
    %v1373 = vld [vmem:[#allocation6 + $0xcc0] sm:$0xf]
    %v1374 = vld [vmem:[#allocation6 + $0xcc4] sm:$0xf]
    %v1375 = vld [vmem:[#allocation6 + $0xcc8] sm:$0xf]
    %v1376 = vld [vmem:[#allocation6 + $0xccc] sm:$0xf]
    %v1377 = vld [vmem:[#allocation6 + $0xcd0] sm:$0xf]
    %v1378 = vld [vmem:[#allocation6 + $0xcd4] sm:$0xf]
    %v1379 = vld [vmem:[#allocation6 + $0xcd8] sm:$0xf]
    %v1380 = vld [vmem:[#allocation6 + $0xcdc] sm:$0xf]
    %v1381 = vld [vmem:[#allocation6 + $0xce0] sm:$0xf]
    %v1382 = vld [vmem:[#allocation6 + $0xce4] sm:$0xf]
    %v1383 = vld [vmem:[#allocation6 + $0xce8] sm:$0xf]
    %v1384 = vld [vmem:[#allocation6 + $0xcec] sm:$0xf]
    %v1385 = vld [vmem:[#allocation6 + $0xcf0] sm:$0xf]
    %v1386 = vld [vmem:[#allocation6 + $0xcf4] sm:$0xf]
    %v1387 = vld [vmem:[#allocation6 + $0xcf8] sm:$0xf]
    %v1388 = vld [vmem:[#allocation6 + $0xcfc] sm:$0xf]
    %v1389 = vld [vmem:[#allocation6 + $0xd00] sm:$0xf]
    %v1390 = vld [vmem:[#allocation6 + $0xd04] sm:$0xf]
    %v1391 = vld [vmem:[#allocation6 + $0xd08] sm:$0xf]
    %v1392 = vld [vmem:[#allocation6 + $0xd0c] sm:$0xf]
    %v1393 = vld [vmem:[#allocation6 + $0xd10] sm:$0xf]
    %v1394 = vld [vmem:[#allocation6 + $0xd14] sm:$0xf]
    %v1395 = vld [vmem:[#allocation6 + $0xd18] sm:$0xf]
    %v1396 = vld [vmem:[#allocation6 + $0xd1c] sm:$0xf]
    %v1397 = vld [vmem:[#allocation6 + $0xd20] sm:$0xf]
    %v1398 = vld [vmem:[#allocation6 + $0xd24] sm:$0xf]
    %v1399 = vld [vmem:[#allocation6 + $0xd28] sm:$0xf]
    %v1400 = vld [vmem:[#allocation6 + $0xd2c] sm:$0xf]
    %v1401 = vld [vmem:[#allocation6 + $0xd30] sm:$0xf]
    %v1402 = vld [vmem:[#allocation6 + $0xd34] sm:$0xf]
    %v1403 = vld [vmem:[#allocation6 + $0xd38] sm:$0xf]
    %v1404 = vld [vmem:[#allocation6 + $0xd3c] sm:$0xf]
    %v1405 = vld [vmem:[#allocation6 + $0xd40] sm:$0xf]
    %v1406 = vld [vmem:[#allocation6 + $0xd44] sm:$0xf]
    %v1407 = vld [vmem:[#allocation6 + $0xd48] sm:$0xf]
    %v1408 = vld [vmem:[#allocation6 + $0xd4c] sm:$0xf]
    %v1409 = vld [vmem:[#allocation6 + $0xd50] sm:$0xf]
    %v1410 = vld [vmem:[#allocation6 + $0xd54] sm:$0xf]
    %v1411 = vld [vmem:[#allocation6 + $0xd58] sm:$0xf]
    %v1412 = vld [vmem:[#allocation6 + $0xd5c] sm:$0xf]
    %v1413 = vld [vmem:[#allocation6 + $0xd60] sm:$0xf]
    %v1414 = vld [vmem:[#allocation6 + $0xd64] sm:$0xf]
    %v1415 = vld [vmem:[#allocation6 + $0xd68] sm:$0xf]
    %v1416 = vld [vmem:[#allocation6 + $0xd6c] sm:$0xf]
    %v1417 = vld [vmem:[#allocation6 + $0xd70] sm:$0xf]
    %v1418 = vld [vmem:[#allocation6 + $0xd74] sm:$0xf]
    %v1419 = vld [vmem:[#allocation6 + $0xd78] sm:$0xf]
    %v1420 = vld [vmem:[#allocation6 + $0xd7c] sm:$0xf]
    %v1421 = vld [vmem:[#allocation6 + $0xd80] sm:$0xf]
    %v1422 = vld [vmem:[#allocation6 + $0xd84] sm:$0xf]
    %v1423 = vld [vmem:[#allocation6 + $0xd88] sm:$0xf]
    %v1424 = vld [vmem:[#allocation6 + $0xd8c] sm:$0xf]
    %v1425 = vld [vmem:[#allocation6 + $0xd90] sm:$0xf]
    %v1426 = vld [vmem:[#allocation6 + $0xd94] sm:$0xf]
    %v1427 = vld [vmem:[#allocation6 + $0xd98] sm:$0xf]
    %v1428 = vld [vmem:[#allocation6 + $0xd9c] sm:$0xf]
    %v1429 = vld [vmem:[#allocation6 + $0xda0] sm:$0xf]
    %v1430 = vld [vmem:[#allocation6 + $0xda4] sm:$0xf]
    %v1431 = vld [vmem:[#allocation6 + $0xda8] sm:$0xf]
    %v1432 = vld [vmem:[#allocation6 + $0xdac] sm:$0xf]
    %v1433 = vld [vmem:[#allocation6 + $0xdb0] sm:$0xf]
    %v1434 = vld [vmem:[#allocation6 + $0xdb4] sm:$0xf]
    %v1435 = vld [vmem:[#allocation6 + $0xdb8] sm:$0xf]
    %v1436 = vld [vmem:[#allocation6 + $0xdbc] sm:$0xf]
    %v1437 = vld [vmem:[#allocation6 + $0xdc0] sm:$0xf]
    %v1438 = vld [vmem:[#allocation6 + $0xdc4] sm:$0xf]
    %v1439 = vld [vmem:[#allocation6 + $0xdc8] sm:$0xf]
    %v1440 = vld [vmem:[#allocation6 + $0xdcc] sm:$0xf]
    %v1441 = vld [vmem:[#allocation6 + $0xdd0] sm:$0xf]
    %v1442 = vld [vmem:[#allocation6 + $0xdd4] sm:$0xf]
    %v1443 = vld [vmem:[#allocation6 + $0xdd8] sm:$0xf]
    %v1444 = vld [vmem:[#allocation6 + $0xddc] sm:$0xf]
    %v1445 = vld [vmem:[#allocation6 + $0xde0] sm:$0xf]
    %v1446 = vld [vmem:[#allocation6 + $0xde4] sm:$0xf]
    %v1447 = vld [vmem:[#allocation6 + $0xde8] sm:$0xf]
    %v1448 = vld [vmem:[#allocation6 + $0xdec] sm:$0xf]
    %v1449 = vld [vmem:[#allocation6 + $0xdf0] sm:$0xf]
    %v1450 = vld [vmem:[#allocation6 + $0xdf4] sm:$0xf]
    %v1451 = vld [vmem:[#allocation6 + $0xdf8] sm:$0xf]
    %v1452 = vld [vmem:[#allocation6 + $0xdfc] sm:$0xf]
    %v1453 = vld [vmem:[#allocation6 + $0xe00] sm:$0xf]
    %v1454 = vld [vmem:[#allocation6 + $0xe04] sm:$0xf]
    %v1455 = vld [vmem:[#allocation6 + $0xe08] sm:$0xf]
    %v1456 = vld [vmem:[#allocation6 + $0xe0c] sm:$0xf]
    %v1457 = vld [vmem:[#allocation6 + $0xe10] sm:$0xf]
    %v1458 = vld [vmem:[#allocation6 + $0xe14] sm:$0xf]
    %v1459 = vld [vmem:[#allocation6 + $0xe18] sm:$0xf]
    %v1460 = vld [vmem:[#allocation6 + $0xe1c] sm:$0xf]
    %v1461 = vld [vmem:[#allocation6 + $0xe20] sm:$0xf]
    %v1462 = vld [vmem:[#allocation6 + $0xe24] sm:$0xf]
    %v1463 = vld [vmem:[#allocation6 + $0xe28] sm:$0xf]
    %v1464 = vld [vmem:[#allocation6 + $0xe2c] sm:$0xf]
    %v1465 = vld [vmem:[#allocation6 + $0xe30] sm:$0xf]
    %v1466 = vld [vmem:[#allocation6 + $0xe34] sm:$0xf]
    %v1467 = vld [vmem:[#allocation6 + $0xe38] sm:$0xf]
    %v1468 = vld [vmem:[#allocation6 + $0xe3c] sm:$0xf]
    %v1469 = vld [vmem:[#allocation6 + $0xe40] sm:$0xf]
    %v1470 = vld [vmem:[#allocation6 + $0xe44] sm:$0xf]
    %v1471 = vld [vmem:[#allocation6 + $0xe48] sm:$0xf]
    %v1472 = vld [vmem:[#allocation6 + $0xe4c] sm:$0xf]
    %v1473 = vld [vmem:[#allocation6 + $0xe50] sm:$0xf]
    %v1474 = vld [vmem:[#allocation6 + $0xe54] sm:$0xf]
    %v1475 = vld [vmem:[#allocation6 + $0xe58] sm:$0xf]
    %v1476 = vld [vmem:[#allocation6 + $0xe5c] sm:$0xf]
    %v1477 = vld [vmem:[#allocation6 + $0xe60] sm:$0xf]
    %v1478 = vld [vmem:[#allocation6 + $0xe64] sm:$0xf]
    %v1479 = vld [vmem:[#allocation6 + $0xe68] sm:$0xf]
    %v1480 = vld [vmem:[#allocation6 + $0xe6c] sm:$0xf]
    %v1481 = vld [vmem:[#allocation6 + $0xe70] sm:$0xf]
    %v1482 = vld [vmem:[#allocation6 + $0xe74] sm:$0xf]
    %v1483 = vld [vmem:[#allocation6 + $0xe78] sm:$0xf]
    %v1484 = vld [vmem:[#allocation6 + $0xe7c] sm:$0xf]
    %v1485 = vld [vmem:[#allocation6 + $0xe80] sm:$0xf]
    %v1486 = vld [vmem:[#allocation6 + $0xe84] sm:$0xf]
    %v1487 = vld [vmem:[#allocation6 + $0xe88] sm:$0xf]
    %v1488 = vld [vmem:[#allocation6 + $0xe8c] sm:$0xf]
    %v1489 = vld [vmem:[#allocation6 + $0xe90] sm:$0xf]
    %v1490 = vld [vmem:[#allocation6 + $0xe94] sm:$0xf]
    %v1491 = vld [vmem:[#allocation6 + $0xe98] sm:$0xf]
    %v1492 = vld [vmem:[#allocation6 + $0xe9c] sm:$0xf]
    %v1493 = vld [vmem:[#allocation6 + $0xea0] sm:$0xf]
    %v1494 = vld [vmem:[#allocation6 + $0xea4] sm:$0xf]
    %v1495 = vld [vmem:[#allocation6 + $0xea8] sm:$0xf]
    %v1496 = vld [vmem:[#allocation6 + $0xeac] sm:$0xf]
    %v1497 = vld [vmem:[#allocation6 + $0xeb0] sm:$0xf]
    %v1498 = vld [vmem:[#allocation6 + $0xeb4] sm:$0xf]
    %v1499 = vld [vmem:[#allocation6 + $0xeb8] sm:$0xf]
    %v1500 = vld [vmem:[#allocation6 + $0xebc] sm:$0xf]
    %v1501 = vld [vmem:[#allocation6 + $0xec0] sm:$0xf]
    %v1502 = vld [vmem:[#allocation6 + $0xec4] sm:$0xf]
    %v1503 = vld [vmem:[#allocation6 + $0xec8] sm:$0xf]
    %v1504 = vld [vmem:[#allocation6 + $0xecc] sm:$0xf]
    %v1505 = vld [vmem:[#allocation6 + $0xed0] sm:$0xf]
    %v1506 = vld [vmem:[#allocation6 + $0xed4] sm:$0xf]
    %v1507 = vld [vmem:[#allocation6 + $0xed8] sm:$0xf]
    %v1508 = vld [vmem:[#allocation6 + $0xedc] sm:$0xf]
    %v1509 = vld [vmem:[#allocation6 + $0xee0] sm:$0xf]
    %v1510 = vld [vmem:[#allocation6 + $0xee4] sm:$0xf]
    %v1511 = vld [vmem:[#allocation6 + $0xee8] sm:$0xf]
    %v1512 = vld [vmem:[#allocation6 + $0xeec] sm:$0xf]
    %v1513 = vld [vmem:[#allocation6 + $0xef0] sm:$0xf]
    %v1514 = vld [vmem:[#allocation6 + $0xef4] sm:$0xf]
    %v1515 = vld [vmem:[#allocation6 + $0xef8] sm:$0xf]
    %v1516 = vld [vmem:[#allocation6 + $0xefc] sm:$0xf]
    %v1517 = vld [vmem:[#allocation6 + $0xf00] sm:$0xf]
    %v1518 = vld [vmem:[#allocation6 + $0xf04] sm:$0xf]
    %v1519 = vld [vmem:[#allocation6 + $0xf08] sm:$0xf]
    %v1520 = vld [vmem:[#allocation6 + $0xf0c] sm:$0xf]
    %v1521 = vld [vmem:[#allocation6 + $0xf10] sm:$0xf]
    %v1522 = vld [vmem:[#allocation6 + $0xf14] sm:$0xf]
    %v1523 = vld [vmem:[#allocation6 + $0xf18] sm:$0xf]
    %v1524 = vld [vmem:[#allocation6 + $0xf1c] sm:$0xf]
    %v1525 = vld [vmem:[#allocation6 + $0xf20] sm:$0xf]
    %v1526 = vld [vmem:[#allocation6 + $0xf24] sm:$0xf]
    %v1527 = vld [vmem:[#allocation6 + $0xf28] sm:$0xf]
    %v1528 = vld [vmem:[#allocation6 + $0xf2c] sm:$0xf]
    %v1529 = vld [vmem:[#allocation6 + $0xf30] sm:$0xf]
    %v1530 = vld [vmem:[#allocation6 + $0xf34] sm:$0xf]
    %v1531 = vld [vmem:[#allocation6 + $0xf38] sm:$0xf]
    %v1532 = vld [vmem:[#allocation6 + $0xf3c] sm:$0xf]
    %v1533 = vld [vmem:[#allocation6 + $0xf40] sm:$0xf]
    %v1534 = vld [vmem:[#allocation6 + $0xf44] sm:$0xf]
    %v1535 = vld [vmem:[#allocation6 + $0xf48] sm:$0xf]
    %v1536 = vld [vmem:[#allocation6 + $0xf4c] sm:$0xf]
    %v1537 = vld [vmem:[#allocation6 + $0xf50] sm:$0xf]
    %v1538 = vld [vmem:[#allocation6 + $0xf54] sm:$0xf]
    %v1539 = vld [vmem:[#allocation6 + $0xf58] sm:$0xf]
    %v1540 = vld [vmem:[#allocation6 + $0xf5c] sm:$0xf]
    %v1541 = vld [vmem:[#allocation6 + $0xf60] sm:$0xf]
    %v1542 = vld [vmem:[#allocation6 + $0xf64] sm:$0xf]
    %v1543 = vld [vmem:[#allocation6 + $0xf68] sm:$0xf]
    %v1544 = vld [vmem:[#allocation6 + $0xf6c] sm:$0xf]
    %v1545 = vld [vmem:[#allocation6 + $0xf70] sm:$0xf]
    %v1546 = vld [vmem:[#allocation6 + $0xf74] sm:$0xf]
    %v1547 = vld [vmem:[#allocation6 + $0xf78] sm:$0xf]
    %v1548 = vld [vmem:[#allocation6 + $0xf7c] sm:$0xf]
    %v1549 = vld [vmem:[#allocation6 + $0xf80] sm:$0xf]
    %v1550 = vld [vmem:[#allocation6 + $0xf84] sm:$0xf]
    %v1551 = vld [vmem:[#allocation6 + $0xf88] sm:$0xf]
    %v1552 = vld [vmem:[#allocation6 + $0xf8c] sm:$0xf]
    %v1553 = vld [vmem:[#allocation6 + $0xf90] sm:$0xf]
    %v1554 = vld [vmem:[#allocation6 + $0xf94] sm:$0xf]
    %v1555 = vld [vmem:[#allocation6 + $0xf98] sm:$0xf]
    %v1556 = vld [vmem:[#allocation6 + $0xf9c] sm:$0xf]
    %v1557 = vld [vmem:[#allocation6 + $0xfa0] sm:$0xf]
    %v1558 = vld [vmem:[#allocation6 + $0xfa4] sm:$0xf]
    %v1559 = vld [vmem:[#allocation6 + $0xfa8] sm:$0xf]
    %v1560 = vld [vmem:[#allocation6 + $0xfac] sm:$0xf]
    %v1561 = vld [vmem:[#allocation6 + $0xfb0] sm:$0xf]
    %v1562 = vld [vmem:[#allocation6 + $0xfb4] sm:$0xf]
    %v1563 = vld [vmem:[#allocation6 + $0xfb8] sm:$0xf]
    %v1564 = vld [vmem:[#allocation6 + $0xfbc] sm:$0xf]
    %v1565 = vld [vmem:[#allocation6 + $0xfc0] sm:$0xf]
    %v1566 = vld [vmem:[#allocation6 + $0xfc4] sm:$0xf]
    %v1567 = vld [vmem:[#allocation6 + $0xfc8] sm:$0xf]
    %v1568 = vld [vmem:[#allocation6 + $0xfcc] sm:$0xf]
    %v1569 = vld [vmem:[#allocation6 + $0xfd0] sm:$0xf]
    %v1570 = vld [vmem:[#allocation6 + $0xfd4] sm:$0xf]
    %v1571 = vld [vmem:[#allocation6 + $0xfd8] sm:$0xf]
    %v1572 = vld [vmem:[#allocation6 + $0xfdc] sm:$0xf]
    %v1573 = vld [vmem:[#allocation6 + $0xfe0] sm:$0xf]
    %v1574 = vld [vmem:[#allocation6 + $0xfe4] sm:$0xf]
    %v1575 = vld [vmem:[#allocation6 + $0xfe8] sm:$0xf]
    %v1576 = vld [vmem:[#allocation6 + $0xfec] sm:$0xf]
    %v1577 = vld [vmem:[#allocation6 + $0xff0] sm:$0xf]
    %v1578 = vld [vmem:[#allocation6 + $0xff4] sm:$0xf]
    %v1579 = vld [vmem:[#allocation6 + $0xff8] sm:$0xf]
    %v1580 = vld [vmem:[#allocation6 + $0xffc] sm:$0xf]
    %v1581 = vld [vmem:[#allocation6 + $0x1000] sm:$0xf]
    %v1582 = vld [vmem:[#allocation6 + $0x1004] sm:$0xf]
    %v1583 = vld [vmem:[#allocation6 + $0x1008] sm:$0xf]
    %v1584 = vld [vmem:[#allocation6 + $0x100c] sm:$0xf]
    %v1585 = vld [vmem:[#allocation6 + $0x1010] sm:$0xf]
    %v1586 = vld [vmem:[#allocation6 + $0x1014] sm:$0xf]
    %v1587 = vld [vmem:[#allocation6 + $0x1018] sm:$0xf]
    %v1588 = vld [vmem:[#allocation6 + $0x101c] sm:$0xf]
    %v1589 = vld [vmem:[#allocation6 + $0x1020] sm:$0xf]
    %v1590 = vld [vmem:[#allocation6 + $0x1024] sm:$0xf]
    %v1591 = vld [vmem:[#allocation6 + $0x1028] sm:$0xf]
    %v1592 = vld [vmem:[#allocation6 + $0x102c] sm:$0xf]
    %v1593 = vld [vmem:[#allocation6 + $0x1030] sm:$0xf]
    %v1594 = vld [vmem:[#allocation6 + $0x1034] sm:$0xf]
    %v1595 = vld [vmem:[#allocation6 + $0x1038] sm:$0xf]
    %v1596 = vld [vmem:[#allocation6 + $0x103c] sm:$0xf]
    %v1597 = vld [vmem:[#allocation6 + $0x1040] sm:$0xf]
    %v1598 = vld [vmem:[#allocation6 + $0x1044] sm:$0xf]
    %v1599 = vld [vmem:[#allocation6 + $0x1048] sm:$0xf]
    %v1600 = vld [vmem:[#allocation6 + $0x104c] sm:$0xf]
    %v1601 = vld [vmem:[#allocation6 + $0x1050] sm:$0xf]
    %v1602 = vld [vmem:[#allocation6 + $0x1054] sm:$0xf]
    %v1603 = vld [vmem:[#allocation6 + $0x1058] sm:$0xf]
    %v1604 = vld [vmem:[#allocation6 + $0x105c] sm:$0xf]
    %v1605 = vld [vmem:[#allocation6 + $0x1060] sm:$0xf]
    %v1606 = vld [vmem:[#allocation6 + $0x1064] sm:$0xf]
    %v1607 = vld [vmem:[#allocation6 + $0x1068] sm:$0xf]
    %v1608 = vld [vmem:[#allocation6 + $0x106c] sm:$0xf]
    %v1609 = vld [vmem:[#allocation6 + $0x1070] sm:$0xf]
    %v1610 = vld [vmem:[#allocation6 + $0x1074] sm:$0xf]
    %v1611 = vld [vmem:[#allocation6 + $0x1078] sm:$0xf]
    %v1612 = vld [vmem:[#allocation6 + $0x107c] sm:$0xf]
    %v1613 = vld [vmem:[#allocation6 + $0x1080] sm:$0xf]
    %v1614 = vld [vmem:[#allocation6 + $0x1084] sm:$0xf]
    %v1615 = vld [vmem:[#allocation6 + $0x1088] sm:$0xf]
    %v1616 = vld [vmem:[#allocation6 + $0x108c] sm:$0xf]
    %v1617 = vld [vmem:[#allocation6 + $0x1090] sm:$0xf]
    %v1618 = vld [vmem:[#allocation6 + $0x1094] sm:$0xf]
    %v1619 = vld [vmem:[#allocation6 + $0x1098] sm:$0xf]
    %v1620 = vld [vmem:[#allocation6 + $0x109c] sm:$0xf]
    %v1621 = vld [vmem:[#allocation6 + $0x10a0] sm:$0xf]
    %v1622 = vld [vmem:[#allocation6 + $0x10a4] sm:$0xf]
    %v1623 = vld [vmem:[#allocation6 + $0x10a8] sm:$0xf]
    %v1624 = vld [vmem:[#allocation6 + $0x10ac] sm:$0xf]
    %v1625 = vld [vmem:[#allocation6 + $0x10b0] sm:$0xf]
    %v1626 = vld [vmem:[#allocation6 + $0x10b4] sm:$0xf]
    %v1627 = vld [vmem:[#allocation6 + $0x10b8] sm:$0xf]
    %v1628 = vld [vmem:[#allocation6 + $0x10bc] sm:$0xf]
    %v1629 = vld [vmem:[#allocation6 + $0x10c0] sm:$0xf]
    %v1630 = vld [vmem:[#allocation6 + $0x10c4] sm:$0xf]
    %v1631 = vld [vmem:[#allocation6 + $0x10c8] sm:$0xf]
    %v1632 = vld [vmem:[#allocation6 + $0x10cc] sm:$0xf]
    %v1633 = vld [vmem:[#allocation6 + $0x10d0] sm:$0xf]
    %v1634 = vld [vmem:[#allocation6 + $0x10d4] sm:$0xf]
    %v1635 = vld [vmem:[#allocation6 + $0x10d8] sm:$0xf]
    %v1636 = vld [vmem:[#allocation6 + $0x10dc] sm:$0xf]
    %v1637 = vld [vmem:[#allocation6 + $0x10e0] sm:$0xf]
    %v1638 = vld [vmem:[#allocation6 + $0x10e4] sm:$0xf]
    %v1639 = vld [vmem:[#allocation6 + $0x10e8] sm:$0xf]
    %v1640 = vld [vmem:[#allocation6 + $0x10ec] sm:$0xf]
    %v1641 = vld [vmem:[#allocation6 + $0x10f0] sm:$0xf]
    %v1642 = vld [vmem:[#allocation6 + $0x10f4] sm:$0xf]
    %v1643 = vld [vmem:[#allocation6 + $0x10f8] sm:$0xf]
    %v1644 = vld [vmem:[#allocation6 + $0x10fc] sm:$0xf]
    %v1645 = vld [vmem:[#allocation6 + $0x1100] sm:$0xf]
    %v1646 = vld [vmem:[#allocation6 + $0x1104] sm:$0xf]
    %v1647 = vld [vmem:[#allocation6 + $0x1108] sm:$0xf]
    %v1648 = vld [vmem:[#allocation6 + $0x110c] sm:$0xf]
    %v1649 = vld [vmem:[#allocation6 + $0x1110] sm:$0xf]
    %v1650 = vld [vmem:[#allocation6 + $0x1114] sm:$0xf]
    %v1651 = vld [vmem:[#allocation6 + $0x1118] sm:$0xf]
    %v1652 = vld [vmem:[#allocation6 + $0x111c] sm:$0xf]
    %v1653 = vld [vmem:[#allocation6 + $0x1120] sm:$0xf]
    %v1654 = vld [vmem:[#allocation6 + $0x1124] sm:$0xf]
    %v1655 = vld [vmem:[#allocation6 + $0x1128] sm:$0xf]
    %v1656 = vld [vmem:[#allocation6 + $0x112c] sm:$0xf]
    %v1657 = vld [vmem:[#allocation6 + $0x1130] sm:$0xf]
    %v1658 = vld [vmem:[#allocation6 + $0x1134] sm:$0xf]
    %v1659 = vld [vmem:[#allocation6 + $0x1138] sm:$0xf]
    %v1660 = vld [vmem:[#allocation6 + $0x113c] sm:$0xf]
    %v1661 = vld [vmem:[#allocation6 + $0x1140] sm:$0xf]
    %v1662 = vld [vmem:[#allocation6 + $0x1144] sm:$0xf]
    %v1663 = vld [vmem:[#allocation6 + $0x1148] sm:$0xf]
    %v1664 = vld [vmem:[#allocation6 + $0x114c] sm:$0xf]
    %v1665 = vld [vmem:[#allocation6 + $0x1150] sm:$0xf]
    %v1666 = vld [vmem:[#allocation6 + $0x1154] sm:$0xf]
    %v1667 = vld [vmem:[#allocation6 + $0x1158] sm:$0xf]
    %v1668 = vld [vmem:[#allocation6 + $0x115c] sm:$0xf]
    %v1669 = vld [vmem:[#allocation6 + $0x1160] sm:$0xf]
    %v1670 = vld [vmem:[#allocation6 + $0x1164] sm:$0xf]
    %v1671 = vld [vmem:[#allocation6 + $0x1168] sm:$0xf]
    %v1672 = vld [vmem:[#allocation6 + $0x116c] sm:$0xf]
    %v1673 = vld [vmem:[#allocation6 + $0x1170] sm:$0xf]
    %v1674 = vld [vmem:[#allocation6 + $0x1174] sm:$0xf]
    %v1675 = vld [vmem:[#allocation6 + $0x1178] sm:$0xf]
    %v1676 = vld [vmem:[#allocation6 + $0x117c] sm:$0xf]
    %v1677 = vld [vmem:[#allocation6 + $0x1180] sm:$0xf]
    %v1678 = vld [vmem:[#allocation6 + $0x1184] sm:$0xf]
    %v1679 = vld [vmem:[#allocation6 + $0x1188] sm:$0xf]
    %v1680 = vld [vmem:[#allocation6 + $0x118c] sm:$0xf]
    %v1681 = vld [vmem:[#allocation6 + $0x1190] sm:$0xf]
    %v1682 = vld [vmem:[#allocation6 + $0x1194] sm:$0xf]
    %v1683 = vld [vmem:[#allocation6 + $0x1198] sm:$0xf]
    %v1684 = vld [vmem:[#allocation6 + $0x119c] sm:$0xf]
    %v1685 = vld [vmem:[#allocation6 + $0x11a0] sm:$0xf]
    %v1686 = vld [vmem:[#allocation6 + $0x11a4] sm:$0xf]
    %v1687 = vld [vmem:[#allocation6 + $0x11a8] sm:$0xf]
    %v1688 = vld [vmem:[#allocation6 + $0x11ac] sm:$0xf]
    %v1689 = vld [vmem:[#allocation6 + $0x11b0] sm:$0xf]
    %v1690 = vld [vmem:[#allocation6 + $0x11b4] sm:$0xf]
    %v1691 = vld [vmem:[#allocation6 + $0x11b8] sm:$0xf]
    %v1692 = vld [vmem:[#allocation6 + $0x11bc] sm:$0xf]
    %v1693 = vld [vmem:[#allocation6 + $0x11c0] sm:$0xf]
    %v1694 = vld [vmem:[#allocation6 + $0x11c4] sm:$0xf]
    %v1695 = vld [vmem:[#allocation6 + $0x11c8] sm:$0xf]
    %v1696 = vld [vmem:[#allocation6 + $0x11cc] sm:$0xf]
    %v1697 = vld [vmem:[#allocation6 + $0x11d0] sm:$0xf]
    %v1698 = vld [vmem:[#allocation6 + $0x11d4] sm:$0xf]
    %v1699 = vld [vmem:[#allocation6 + $0x11d8] sm:$0xf]
    %v1700 = vld [vmem:[#allocation6 + $0x11dc] sm:$0xf]
    %v1701 = vld [vmem:[#allocation6 + $0x11e0] sm:$0xf]
    %v1702 = vld [vmem:[#allocation6 + $0x11e4] sm:$0xf]
    %v1703 = vld [vmem:[#allocation6 + $0x11e8] sm:$0xf]
    %v1704 = vld [vmem:[#allocation6 + $0x11ec] sm:$0xf]
    %v1705 = vld [vmem:[#allocation6 + $0x11f0] sm:$0xf]
    %v1706 = vld [vmem:[#allocation6 + $0x11f4] sm:$0xf]
    %v1707 = vld [vmem:[#allocation6 + $0x11f8] sm:$0xf]
    %v1708 = vld [vmem:[#allocation6 + $0x11fc] sm:$0xf]
    %v1709 = vld [vmem:[#allocation6 + $0x1200] sm:$0xf]
    %v1710 = vld [vmem:[#allocation6 + $0x1204] sm:$0xf]
    %v1711 = vld [vmem:[#allocation6 + $0x1208] sm:$0xf]
    %v1712 = vld [vmem:[#allocation6 + $0x120c] sm:$0xf]
    %v1713 = vld [vmem:[#allocation6 + $0x1210] sm:$0xf]
    %v1714 = vld [vmem:[#allocation6 + $0x1214] sm:$0xf]
    %v1715 = vld [vmem:[#allocation6 + $0x1218] sm:$0xf]
    %v1716 = vld [vmem:[#allocation6 + $0x121c] sm:$0xf]
    %v1717 = vld [vmem:[#allocation6 + $0x1220] sm:$0xf]
    %v1718 = vld [vmem:[#allocation6 + $0x1224] sm:$0xf]
    %v1719 = vld [vmem:[#allocation6 + $0x1228] sm:$0xf]
    %v1720 = vld [vmem:[#allocation6 + $0x122c] sm:$0xf]
    %v1721 = vld [vmem:[#allocation6 + $0x1230] sm:$0xf]
    %v1722 = vld [vmem:[#allocation6 + $0x1234] sm:$0xf]
    %v1723 = vld [vmem:[#allocation6 + $0x1238] sm:$0xf]
    %v1724 = vld [vmem:[#allocation6 + $0x123c] sm:$0xf]
    %v1725 = vld [vmem:[#allocation6 + $0x1240] sm:$0xf]
    %v1726 = vld [vmem:[#allocation6 + $0x1244] sm:$0xf]
    %v1727 = vld [vmem:[#allocation6 + $0x1248] sm:$0xf]
    %v1728 = vld [vmem:[#allocation6 + $0x124c] sm:$0xf]
    %v1729 = vld [vmem:[#allocation6 + $0x1250] sm:$0xf]
    %v1730 = vld [vmem:[#allocation6 + $0x1254] sm:$0xf]
    %v1731 = vld [vmem:[#allocation6 + $0x1258] sm:$0xf]
    %v1732 = vld [vmem:[#allocation6 + $0x125c] sm:$0xf]
    %v1733 = vld [vmem:[#allocation8] sm:$0x1]
    %v1735 = vperm.slane %v1733, 0
    %v2913 = vunpack.c.l.b16 %v557
    %v2914 = vunpack.c.l.b16 %v558
    %v2915 = vunpack.c.l.b16 %v559
    %v2916 = vunpack.c.l.b16 %v560
    %v2917 = vunpack.c.l.b16 %v561
    %v2918 = vunpack.c.l.b16 %v562
    %v2919 = vunpack.c.l.b16 %v563
    %v2920 = vunpack.c.l.b16 %v564
    %v2921 = vunpack.c.l.b16 %v565
    %v2922 = vunpack.c.l.b16 %v566
    %v2923 = vunpack.c.l.b16 %v567
    %v2924 = vunpack.c.l.b16 %v568
    %v2925 = vunpack.c.l.b16 %v569
    %v2926 = vunpack.c.l.b16 %v570
    %v2927 = vunpack.c.l.b16 %v571
    %v2928 = vunpack.c.l.b16 %v572
    %v2929 = vunpack.c.l.b16 %v573
    %v2930 = vunpack.c.l.b16 %v574
    %v2931 = vunpack.c.l.b16 %v575
    %v2932 = vunpack.c.l.b16 %v576
    %v2933 = vunpack.c.l.b16 %v577
    %v2934 = vunpack.c.l.b16 %v578
    %v2935 = vunpack.c.l.b16 %v579
    %v2936 = vunpack.c.l.b16 %v580
    %v2937 = vunpack.c.l.b16 %v581
    %v2938 = vunpack.c.l.b16 %v582
    %v2939 = vunpack.c.l.b16 %v583
    %v2940 = vunpack.c.l.b16 %v584
    %v2941 = vunpack.c.l.b16 %v585
    %v2942 = vunpack.c.l.b16 %v586
    %v2943 = vunpack.c.l.b16 %v587
    %v2944 = vunpack.c.l.b16 %v588
    %v2945 = vunpack.c.l.b16 %v589
    %v2946 = vunpack.c.l.b16 %v590
    %v2947 = vunpack.c.l.b16 %v591
    %v2948 = vunpack.c.l.b16 %v592
    %v2949 = vunpack.c.l.b16 %v593
    %v2950 = vunpack.c.l.b16 %v594
    %v2951 = vunpack.c.l.b16 %v595
    %v2952 = vunpack.c.l.b16 %v596
    %v2953 = vunpack.c.l.b16 %v597
    %v2954 = vunpack.c.l.b16 %v598
    %v2955 = vunpack.c.l.b16 %v599
    %v2956 = vunpack.c.l.b16 %v600
    %v2957 = vunpack.c.l.b16 %v601
    %v2958 = vunpack.c.l.b16 %v602
    %v2959 = vunpack.c.l.b16 %v603
    %v2960 = vunpack.c.l.b16 %v604
    %v2961 = vunpack.c.l.b16 %v605
    %v2962 = vunpack.c.l.b16 %v606
    %v2963 = vunpack.c.l.b16 %v607
    %v2964 = vunpack.c.l.b16 %v608
    %v2965 = vunpack.c.l.b16 %v609
    %v2966 = vunpack.c.l.b16 %v610
    %v2967 = vunpack.c.l.b16 %v611
    %v2968 = vunpack.c.l.b16 %v612
    %v2969 = vunpack.c.l.b16 %v613
    %v2970 = vunpack.c.l.b16 %v614
    %v2971 = vunpack.c.l.b16 %v615
    %v2972 = vunpack.c.l.b16 %v616
    %v2973 = vunpack.c.l.b16 %v617
    %v2974 = vunpack.c.l.b16 %v618
    %v2975 = vunpack.c.l.b16 %v619
    %v2976 = vunpack.c.l.b16 %v620
    %v2977 = vunpack.c.l.b16 %v621
    %v2978 = vunpack.c.l.b16 %v622
    %v2979 = vunpack.c.l.b16 %v623
    %v2980 = vunpack.c.l.b16 %v624
    %v2981 = vunpack.c.l.b16 %v625
    %v2982 = vunpack.c.l.b16 %v626
    %v2983 = vunpack.c.l.b16 %v627
    %v2984 = vunpack.c.l.b16 %v628
    %v2985 = vunpack.c.l.b16 %v629
    %v2986 = vunpack.c.l.b16 %v630
    %v2987 = vunpack.c.l.b16 %v631
    %v2988 = vunpack.c.l.b16 %v632
    %v2989 = vunpack.c.l.b16 %v633
    %v2990 = vunpack.c.l.b16 %v634
    %v2991 = vunpack.c.l.b16 %v635
    %v2992 = vunpack.c.l.b16 %v636
    %v2993 = vunpack.c.l.b16 %v637
    %v2994 = vunpack.c.l.b16 %v638
    %v2995 = vunpack.c.l.b16 %v639
    %v2996 = vunpack.c.l.b16 %v640
    %v2997 = vunpack.c.l.b16 %v641
    %v2998 = vunpack.c.l.b16 %v642
    %v2999 = vunpack.c.l.b16 %v643
    %v3000 = vunpack.c.l.b16 %v644
    %v3001 = vunpack.c.l.b16 %v645
    %v3002 = vunpack.c.l.b16 %v646
    %v3003 = vunpack.c.l.b16 %v647
    %v3004 = vunpack.c.l.b16 %v648
    %v3005 = vunpack.c.l.b16 %v649
    %v3006 = vunpack.c.l.b16 %v650
    %v3007 = vunpack.c.l.b16 %v651
    %v3008 = vunpack.c.l.b16 %v652
    %v3009 = vunpack.c.l.b16 %v653
    %v3010 = vunpack.c.l.b16 %v654
    %v3011 = vunpack.c.l.b16 %v655
    %v3012 = vunpack.c.l.b16 %v656
    %v3013 = vunpack.c.l.b16 %v657
    %v3014 = vunpack.c.l.b16 %v658
    %v3015 = vunpack.c.l.b16 %v659
    %v3016 = vunpack.c.l.b16 %v660
    %v3017 = vunpack.c.l.b16 %v661
    %v3018 = vunpack.c.l.b16 %v662
    %v3019 = vunpack.c.l.b16 %v663
    %v3020 = vunpack.c.l.b16 %v664
    %v3021 = vunpack.c.l.b16 %v665
    %v3022 = vunpack.c.l.b16 %v666
    %v3023 = vunpack.c.l.b16 %v667
    %v3024 = vunpack.c.l.b16 %v668
    %v3025 = vunpack.c.l.b16 %v669
    %v3026 = vunpack.c.l.b16 %v670
    %v3027 = vunpack.c.l.b16 %v671
    %v3028 = vunpack.c.l.b16 %v672
    %v3029 = vunpack.c.l.b16 %v673
    %v3030 = vunpack.c.l.b16 %v674
    %v3031 = vunpack.c.l.b16 %v675
    %v3032 = vunpack.c.l.b16 %v676
    %v3033 = vunpack.c.l.b16 %v677
    %v3034 = vunpack.c.l.b16 %v678
    %v3035 = vunpack.c.l.b16 %v679
    %v3036 = vunpack.c.l.b16 %v680
    %v3037 = vunpack.c.l.b16 %v681
    %v3038 = vunpack.c.l.b16 %v682
    %v3039 = vunpack.c.l.b16 %v683
    %v3040 = vunpack.c.l.b16 %v684
    %v3041 = vunpack.c.l.b16 %v685
    %v3042 = vunpack.c.l.b16 %v686
    %v3043 = vunpack.c.l.b16 %v687
    %v3044 = vunpack.c.l.b16 %v688
    %v3045 = vunpack.c.l.b16 %v689
    %v3046 = vunpack.c.l.b16 %v690
    %v3047 = vunpack.c.l.b16 %v691
    %v3048 = vunpack.c.l.b16 %v692
    %v3049 = vunpack.c.l.b16 %v693
    %v3050 = vunpack.c.l.b16 %v694
    %v3051 = vunpack.c.l.b16 %v695
    %v3052 = vunpack.c.l.b16 %v696
    %v3053 = vunpack.c.l.b16 %v697
    %v3054 = vunpack.c.l.b16 %v698
    %v3055 = vunpack.c.l.b16 %v699
    %v3056 = vunpack.c.l.b16 %v700
    %v3057 = vunpack.c.l.b16 %v701
    %v3058 = vunpack.c.l.b16 %v702
    %v3059 = vunpack.c.l.b16 %v703
    %v3060 = vunpack.c.l.b16 %v704
    %v3061 = vunpack.c.l.b16 %v705
    %v3062 = vunpack.c.l.b16 %v706
    %v3063 = vunpack.c.l.b16 %v707
    %v3064 = vunpack.c.l.b16 %v708
    %v3065 = vunpack.c.l.b16 %v709
    %v3066 = vunpack.c.l.b16 %v710
    %v3067 = vunpack.c.l.b16 %v711
    %v3068 = vunpack.c.l.b16 %v712
    %v3069 = vunpack.c.l.b16 %v713
    %v3070 = vunpack.c.l.b16 %v714
    %v3071 = vunpack.c.l.b16 %v715
    %v3072 = vunpack.c.l.b16 %v716
    %v3073 = vunpack.c.l.b16 %v717
    %v3074 = vunpack.c.l.b16 %v718
    %v3075 = vunpack.c.l.b16 %v719
    %v3076 = vunpack.c.l.b16 %v720
    %v3077 = vunpack.c.l.b16 %v721
    %v3078 = vunpack.c.l.b16 %v722
    %v3079 = vunpack.c.l.b16 %v723
    %v3080 = vunpack.c.l.b16 %v724
    %v3081 = vunpack.c.l.b16 %v725
    %v3082 = vunpack.c.l.b16 %v726
    %v3083 = vunpack.c.l.b16 %v727
    %v3084 = vunpack.c.l.b16 %v728
    %v3085 = vunpack.c.l.b16 %v729
    %v3086 = vunpack.c.l.b16 %v730
    %v3087 = vunpack.c.l.b16 %v731
    %v3088 = vunpack.c.l.b16 %v732
    %v3089 = vunpack.c.l.b16 %v733
    %v3090 = vunpack.c.l.b16 %v734
    %v3091 = vunpack.c.l.b16 %v735
    %v3092 = vunpack.c.l.b16 %v736
    %v3093 = vunpack.c.l.b16 %v737
    %v3094 = vunpack.c.l.b16 %v738
    %v3095 = vunpack.c.l.b16 %v739
    %v3096 = vunpack.c.l.b16 %v740
    %v3097 = vunpack.c.l.b16 %v741
    %v3098 = vunpack.c.l.b16 %v742
    %v3099 = vunpack.c.l.b16 %v743
    %v3100 = vunpack.c.l.b16 %v744
    %v3101 = vunpack.c.l.b16 %v745
    %v3102 = vunpack.c.l.b16 %v746
    %v3103 = vunpack.c.l.b16 %v747
    %v3104 = vunpack.c.l.b16 %v748
    %v3105 = vunpack.c.l.b16 %v749
    %v3106 = vunpack.c.l.b16 %v750
    %v3107 = vunpack.c.l.b16 %v751
    %v3108 = vunpack.c.l.b16 %v752
    %v3109 = vunpack.c.l.b16 %v753
    %v3110 = vunpack.c.l.b16 %v754
    %v3111 = vunpack.c.l.b16 %v755
    %v3112 = vunpack.c.l.b16 %v756
    %v3113 = vunpack.c.l.b16 %v757
    %v3114 = vunpack.c.l.b16 %v758
    %v3115 = vunpack.c.l.b16 %v759
    %v3116 = vunpack.c.l.b16 %v760
    %v3117 = vunpack.c.l.b16 %v761
    %v3118 = vunpack.c.l.b16 %v762
    %v3119 = vunpack.c.l.b16 %v763
    %v3120 = vunpack.c.l.b16 %v764
    %v3121 = vunpack.c.l.b16 %v765
    %v3122 = vunpack.c.l.b16 %v766
    %v3123 = vunpack.c.l.b16 %v767
    %v3124 = vunpack.c.l.b16 %v768
    %v3125 = vunpack.c.l.b16 %v769
    %v3126 = vunpack.c.l.b16 %v770
    %v3127 = vunpack.c.l.b16 %v771
    %v3128 = vunpack.c.l.b16 %v772
    %v3129 = vunpack.c.l.b16 %v773
    %v3130 = vunpack.c.l.b16 %v774
    %v3131 = vunpack.c.l.b16 %v775
    %v3132 = vunpack.c.l.b16 %v776
    %v3133 = vunpack.c.l.b16 %v777
    %v3134 = vunpack.c.l.b16 %v778
    %v3135 = vunpack.c.l.b16 %v779
    %v3136 = vunpack.c.l.b16 %v780
    %v3137 = vunpack.c.l.b16 %v781
    %v3138 = vunpack.c.l.b16 %v782
    %v3139 = vunpack.c.l.b16 %v783
    %v3140 = vunpack.c.l.b16 %v784
    %v3141 = vunpack.c.l.b16 %v785
    %v3142 = vunpack.c.l.b16 %v786
    %v3143 = vunpack.c.l.b16 %v787
    %v3144 = vunpack.c.l.b16 %v788
    %v3145 = vunpack.c.l.b16 %v789
    %v3146 = vunpack.c.l.b16 %v790
    %v3147 = vunpack.c.l.b16 %v791
    %v3148 = vunpack.c.l.b16 %v792
    %v3149 = vunpack.c.l.b16 %v793
    %v3150 = vunpack.c.l.b16 %v794
    %v3151 = vunpack.c.l.b16 %v795
    %v3152 = vunpack.c.l.b16 %v796
    %v3153 = vunpack.c.l.b16 %v797
    %v3154 = vunpack.c.l.b16 %v798
    %v3155 = vunpack.c.l.b16 %v799
    %v3156 = vunpack.c.l.b16 %v800
    %v3157 = vunpack.c.l.b16 %v801
    %v3158 = vunpack.c.l.b16 %v802
    %v3159 = vunpack.c.l.b16 %v803
    %v3160 = vunpack.c.l.b16 %v804
    %v3161 = vunpack.c.l.b16 %v805
    %v3162 = vunpack.c.l.b16 %v806
    %v3163 = vunpack.c.l.b16 %v807
    %v3164 = vunpack.c.l.b16 %v808
    %v3165 = vunpack.c.l.b16 %v809
    %v3166 = vunpack.c.l.b16 %v810
    %v3167 = vunpack.c.l.b16 %v811
    %v3168 = vunpack.c.l.b16 %v812
    %v3169 = vunpack.c.l.b16 %v813
    %v3170 = vunpack.c.l.b16 %v814
    %v3171 = vunpack.c.l.b16 %v815
    %v3172 = vunpack.c.l.b16 %v816
    %v3173 = vunpack.c.l.b16 %v817
    %v3174 = vunpack.c.l.b16 %v818
    %v3175 = vunpack.c.l.b16 %v819
    %v3176 = vunpack.c.l.b16 %v820
    %v3177 = vunpack.c.l.b16 %v821
    %v3178 = vunpack.c.l.b16 %v822
    %v3179 = vunpack.c.l.b16 %v823
    %v3180 = vunpack.c.l.b16 %v824
    %v3181 = vunpack.c.l.b16 %v825
    %v3182 = vunpack.c.l.b16 %v826
    %v3183 = vunpack.c.l.b16 %v827
    %v3184 = vunpack.c.l.b16 %v828
    %v3185 = vunpack.c.l.b16 %v829
    %v3186 = vunpack.c.l.b16 %v830
    %v3187 = vunpack.c.l.b16 %v831
    %v3188 = vunpack.c.l.b16 %v832
    %v3189 = vunpack.c.l.b16 %v833
    %v3190 = vunpack.c.l.b16 %v834
    %v3191 = vunpack.c.l.b16 %v835
    %v3192 = vunpack.c.l.b16 %v836
    %v3193 = vunpack.c.l.b16 %v837
    %v3194 = vunpack.c.l.b16 %v838
    %v3195 = vunpack.c.l.b16 %v839
    %v3196 = vunpack.c.l.b16 %v840
    %v3197 = vunpack.c.l.b16 %v841
    %v3198 = vunpack.c.l.b16 %v842
    %v3199 = vunpack.c.l.b16 %v843
    %v3200 = vunpack.c.l.b16 %v844
    %v3201 = vunpack.c.l.b16 %v845
    %v3202 = vunpack.c.l.b16 %v846
    %v3203 = vunpack.c.l.b16 %v847
    %v3204 = vunpack.c.l.b16 %v848
    %v3205 = vunpack.c.l.b16 %v849
    %v3206 = vunpack.c.l.b16 %v850
    %v3207 = vunpack.c.l.b16 %v851
    %v3208 = vunpack.c.l.b16 %v852
    %v3209 = vunpack.c.l.b16 %v853
    %v3210 = vunpack.c.l.b16 %v854
    %v3211 = vunpack.c.l.b16 %v855
    %v3212 = vunpack.c.l.b16 %v856
    %v3213 = vunpack.c.l.b16 %v857
    %v3214 = vunpack.c.l.b16 %v858
    %v3215 = vunpack.c.l.b16 %v859
    %v3216 = vunpack.c.l.b16 %v860
    %v3217 = vunpack.c.l.b16 %v861
    %v3218 = vunpack.c.l.b16 %v862
    %v3219 = vunpack.c.l.b16 %v863
    %v3220 = vunpack.c.l.b16 %v864
    %v3221 = vunpack.c.l.b16 %v865
    %v3222 = vunpack.c.l.b16 %v866
    %v3223 = vunpack.c.l.b16 %v867
    %v3224 = vunpack.c.l.b16 %v868
    %v3225 = vunpack.c.l.b16 %v869
    %v3226 = vunpack.c.l.b16 %v870
    %v3227 = vunpack.c.l.b16 %v871
    %v3228 = vunpack.c.l.b16 %v872
    %v3229 = vunpack.c.l.b16 %v873
    %v3230 = vunpack.c.l.b16 %v874
    %v3231 = vunpack.c.l.b16 %v875
    %v3232 = vunpack.c.l.b16 %v876
    %v3233 = vunpack.c.l.b16 %v877
    %v3234 = vunpack.c.l.b16 %v878
    %v3235 = vunpack.c.l.b16 %v879
    %v3236 = vunpack.c.l.b16 %v880
    %v3237 = vunpack.c.l.b16 %v881
    %v3238 = vunpack.c.l.b16 %v882
    %v3239 = vunpack.c.l.b16 %v883
    %v3240 = vunpack.c.l.b16 %v884
    %v3241 = vunpack.c.l.b16 %v885
    %v3242 = vunpack.c.l.b16 %v886
    %v3243 = vunpack.c.l.b16 %v887
    %v3244 = vunpack.c.l.b16 %v888
    %v3245 = vunpack.c.l.b16 %v889
    %v3246 = vunpack.c.l.b16 %v890
    %v3247 = vunpack.c.l.b16 %v891
    %v3248 = vunpack.c.l.b16 %v892
    %v3249 = vunpack.c.l.b16 %v893
    %v3250 = vunpack.c.l.b16 %v894
    %v3251 = vunpack.c.l.b16 %v895
    %v3252 = vunpack.c.l.b16 %v896
    %v3253 = vunpack.c.l.b16 %v897
    %v3254 = vunpack.c.l.b16 %v898
    %v3255 = vunpack.c.l.b16 %v899
    %v3256 = vunpack.c.l.b16 %v900
    %v3257 = vunpack.c.l.b16 %v901
    %v3258 = vunpack.c.l.b16 %v902
    %v3259 = vunpack.c.l.b16 %v903
    %v3260 = vunpack.c.l.b16 %v904
    %v3261 = vunpack.c.l.b16 %v905
    %v3262 = vunpack.c.l.b16 %v906
    %v3263 = vunpack.c.l.b16 %v907
    %v3264 = vunpack.c.l.b16 %v908
    %v3265 = vunpack.c.l.b16 %v909
    %v3266 = vunpack.c.l.b16 %v910
    %v3267 = vunpack.c.l.b16 %v911
    %v3268 = vunpack.c.l.b16 %v912
    %v3269 = vunpack.c.l.b16 %v913
    %v3270 = vunpack.c.l.b16 %v914
    %v3271 = vunpack.c.l.b16 %v915
    %v3272 = vunpack.c.l.b16 %v916
    %v3273 = vunpack.c.l.b16 %v917
    %v3274 = vunpack.c.l.b16 %v918
    %v3275 = vunpack.c.l.b16 %v919
    %v3276 = vunpack.c.l.b16 %v920
    %v3277 = vunpack.c.l.b16 %v921
    %v3278 = vunpack.c.l.b16 %v922
    %v3279 = vunpack.c.l.b16 %v923
    %v3280 = vunpack.c.l.b16 %v924
    %v3281 = vunpack.c.l.b16 %v925
    %v3282 = vunpack.c.l.b16 %v926
    %v3283 = vunpack.c.l.b16 %v927
    %v3284 = vunpack.c.l.b16 %v928
    %v3285 = vunpack.c.l.b16 %v929
    %v3286 = vunpack.c.l.b16 %v930
    %v3287 = vunpack.c.l.b16 %v931
    %v3288 = vunpack.c.l.b16 %v932
    %v3289 = vunpack.c.l.b16 %v933
    %v3290 = vunpack.c.l.b16 %v934
    %v3291 = vunpack.c.l.b16 %v935
    %v3292 = vunpack.c.l.b16 %v936
    %v3293 = vunpack.c.l.b16 %v937
    %v3294 = vunpack.c.l.b16 %v938
    %v3295 = vunpack.c.l.b16 %v939
    %v3296 = vunpack.c.l.b16 %v940
    %v3297 = vunpack.c.l.b16 %v941
    %v3298 = vunpack.c.l.b16 %v942
    %v3299 = vunpack.c.l.b16 %v943
    %v3300 = vunpack.c.l.b16 %v944
    %v3301 = vunpack.c.l.b16 %v945
    %v3302 = vunpack.c.l.b16 %v946
    %v3303 = vunpack.c.l.b16 %v947
    %v3304 = vunpack.c.l.b16 %v948
    %v3305 = vunpack.c.l.b16 %v949
    %v3306 = vunpack.c.l.b16 %v950
    %v3307 = vunpack.c.l.b16 %v951
    %v3308 = vunpack.c.l.b16 %v952
    %v3309 = vunpack.c.l.b16 %v953
    %v3310 = vunpack.c.l.b16 %v954
    %v3311 = vunpack.c.l.b16 %v955
    %v3312 = vunpack.c.l.b16 %v956
    %v3313 = vunpack.c.l.b16 %v957
    %v3314 = vunpack.c.l.b16 %v958
    %v3315 = vunpack.c.l.b16 %v959
    %v3316 = vunpack.c.l.b16 %v960
    %v3317 = vunpack.c.l.b16 %v961
    %v3318 = vunpack.c.l.b16 %v962
    %v3319 = vunpack.c.l.b16 %v963
    %v3320 = vunpack.c.l.b16 %v964
    %v3321 = vunpack.c.l.b16 %v965
    %v3322 = vunpack.c.l.b16 %v966
    %v3323 = vunpack.c.l.b16 %v967
    %v3324 = vunpack.c.l.b16 %v968
    %v3325 = vunpack.c.l.b16 %v969
    %v3326 = vunpack.c.l.b16 %v970
    %v3327 = vunpack.c.l.b16 %v971
    %v3328 = vunpack.c.l.b16 %v972
    %v3329 = vunpack.c.l.b16 %v973
    %v3330 = vunpack.c.l.b16 %v974
    %v3331 = vunpack.c.l.b16 %v975
    %v3332 = vunpack.c.l.b16 %v976
    %v3333 = vunpack.c.l.b16 %v977
    %v3334 = vunpack.c.l.b16 %v978
    %v3335 = vunpack.c.l.b16 %v979
    %v3336 = vunpack.c.l.b16 %v980
    %v3337 = vunpack.c.l.b16 %v981
    %v3338 = vunpack.c.l.b16 %v982
    %v3339 = vunpack.c.l.b16 %v983
    %v3340 = vunpack.c.l.b16 %v984
    %v3341 = vunpack.c.l.b16 %v985
    %v3342 = vunpack.c.l.b16 %v986
    %v3343 = vunpack.c.l.b16 %v987
    %v3344 = vunpack.c.l.b16 %v988
    %v3345 = vunpack.c.l.b16 %v989
    %v3346 = vunpack.c.l.b16 %v990
    %v3347 = vunpack.c.l.b16 %v991
    %v3348 = vunpack.c.l.b16 %v992
    %v3349 = vunpack.c.l.b16 %v993
    %v3350 = vunpack.c.l.b16 %v994
    %v3351 = vunpack.c.l.b16 %v995
    %v3352 = vunpack.c.l.b16 %v996
    %v3353 = vunpack.c.l.b16 %v997
    %v3354 = vunpack.c.l.b16 %v998
    %v3355 = vunpack.c.l.b16 %v999
    %v3356 = vunpack.c.l.b16 %v1000
    %v3357 = vunpack.c.l.b16 %v1001
    %v3358 = vunpack.c.l.b16 %v1002
    %v3359 = vunpack.c.l.b16 %v1003
    %v3360 = vunpack.c.l.b16 %v1004
    %v3361 = vunpack.c.l.b16 %v1005
    %v3362 = vunpack.c.l.b16 %v1006
    %v3363 = vunpack.c.l.b16 %v1007
    %v3364 = vunpack.c.l.b16 %v1008
    %v3365 = vunpack.c.l.b16 %v1009
    %v3366 = vunpack.c.l.b16 %v1010
    %v3367 = vunpack.c.l.b16 %v1011
    %v3368 = vunpack.c.l.b16 %v1012
    %v3369 = vunpack.c.l.b16 %v1013
    %v3370 = vunpack.c.l.b16 %v1014
    %v3371 = vunpack.c.l.b16 %v1015
    %v3372 = vunpack.c.l.b16 %v1016
    %v3373 = vunpack.c.l.b16 %v1017
    %v3374 = vunpack.c.l.b16 %v1018
    %v3375 = vunpack.c.l.b16 %v1019
    %v3376 = vunpack.c.l.b16 %v1020
    %v3377 = vunpack.c.l.b16 %v1021
    %v3378 = vunpack.c.l.b16 %v1022
    %v3379 = vunpack.c.l.b16 %v1023
    %v3380 = vunpack.c.l.b16 %v1024
    %v3381 = vunpack.c.l.b16 %v1025
    %v3382 = vunpack.c.l.b16 %v1026
    %v3383 = vunpack.c.l.b16 %v1027
    %v3384 = vunpack.c.l.b16 %v1028
    %v3385 = vunpack.c.l.b16 %v1029
    %v3386 = vunpack.c.l.b16 %v1030
    %v3387 = vunpack.c.l.b16 %v1031
    %v3388 = vunpack.c.l.b16 %v1032
    %v3389 = vunpack.c.l.b16 %v1033
    %v3390 = vunpack.c.l.b16 %v1034
    %v3391 = vunpack.c.l.b16 %v1035
    %v3392 = vunpack.c.l.b16 %v1036
    %v3393 = vunpack.c.l.b16 %v1037
    %v3394 = vunpack.c.l.b16 %v1038
    %v3395 = vunpack.c.l.b16 %v1039
    %v3396 = vunpack.c.l.b16 %v1040
    %v3397 = vunpack.c.l.b16 %v1041
    %v3398 = vunpack.c.l.b16 %v1042
    %v3399 = vunpack.c.l.b16 %v1043
    %v3400 = vunpack.c.l.b16 %v1044
    %v3401 = vunpack.c.l.b16 %v1045
    %v3402 = vunpack.c.l.b16 %v1046
    %v3403 = vunpack.c.l.b16 %v1047
    %v3404 = vunpack.c.l.b16 %v1048
    %v3405 = vunpack.c.l.b16 %v1049
    %v3406 = vunpack.c.l.b16 %v1050
    %v3407 = vunpack.c.l.b16 %v1051
    %v3408 = vunpack.c.l.b16 %v1052
    %v3409 = vunpack.c.l.b16 %v1053
    %v3410 = vunpack.c.l.b16 %v1054
    %v3411 = vunpack.c.l.b16 %v1055
    %v3412 = vunpack.c.l.b16 %v1056
    %v3413 = vunpack.c.l.b16 %v1057
    %v3414 = vunpack.c.l.b16 %v1058
    %v3415 = vunpack.c.l.b16 %v1059
    %v3416 = vunpack.c.l.b16 %v1060
    %v3417 = vunpack.c.l.b16 %v1061
    %v3418 = vunpack.c.l.b16 %v1062
    %v3419 = vunpack.c.l.b16 %v1063
    %v3420 = vunpack.c.l.b16 %v1064
    %v3421 = vunpack.c.l.b16 %v1065
    %v3422 = vunpack.c.l.b16 %v1066
    %v3423 = vunpack.c.l.b16 %v1067
    %v3424 = vunpack.c.l.b16 %v1068
    %v3425 = vunpack.c.l.b16 %v1069
    %v3426 = vunpack.c.l.b16 %v1070
    %v3427 = vunpack.c.l.b16 %v1071
    %v3428 = vunpack.c.l.b16 %v1072
    %v3429 = vunpack.c.l.b16 %v1073
    %v3430 = vunpack.c.l.b16 %v1074
    %v3431 = vunpack.c.l.b16 %v1075
    %v3432 = vunpack.c.l.b16 %v1076
    %v3433 = vunpack.c.l.b16 %v1077
    %v3434 = vunpack.c.l.b16 %v1078
    %v3435 = vunpack.c.l.b16 %v1079
    %v3436 = vunpack.c.l.b16 %v1080
    %v3437 = vunpack.c.l.b16 %v1081
    %v3438 = vunpack.c.l.b16 %v1082
    %v3439 = vunpack.c.l.b16 %v1083
    %v3440 = vunpack.c.l.b16 %v1084
    %v3441 = vunpack.c.l.b16 %v1085
    %v3442 = vunpack.c.l.b16 %v1086
    %v3443 = vunpack.c.l.b16 %v1087
    %v3444 = vunpack.c.l.b16 %v1088
    %v3445 = vunpack.c.l.b16 %v1089
    %v3446 = vunpack.c.l.b16 %v1090
    %v3447 = vunpack.c.l.b16 %v1091
    %v3448 = vunpack.c.l.b16 %v1092
    %v3449 = vunpack.c.l.b16 %v1093
    %v3450 = vunpack.c.l.b16 %v1094
    %v3451 = vunpack.c.l.b16 %v1095
    %v3452 = vunpack.c.l.b16 %v1096
    %v3453 = vunpack.c.l.b16 %v1097
    %v3454 = vunpack.c.l.b16 %v1098
    %v3455 = vunpack.c.l.b16 %v1099
    %v3456 = vunpack.c.l.b16 %v1100
    %v3457 = vunpack.c.l.b16 %v1101
    %v3458 = vunpack.c.l.b16 %v1102
    %v3459 = vunpack.c.l.b16 %v1103
    %v3460 = vunpack.c.l.b16 %v1104
    %v3461 = vunpack.c.l.b16 %v1105
    %v3462 = vunpack.c.l.b16 %v1106
    %v3463 = vunpack.c.l.b16 %v1107
    %v3464 = vunpack.c.l.b16 %v1108
    %v3465 = vunpack.c.l.b16 %v1109
    %v3466 = vunpack.c.l.b16 %v1110
    %v3467 = vunpack.c.l.b16 %v1111
    %v3468 = vunpack.c.l.b16 %v1112
    %v3469 = vunpack.c.l.b16 %v1113
    %v3470 = vunpack.c.l.b16 %v1114
    %v3471 = vunpack.c.l.b16 %v1115
    %v3472 = vunpack.c.l.b16 %v1116
    %v3473 = vunpack.c.l.b16 %v1117
    %v3474 = vunpack.c.l.b16 %v1118
    %v3475 = vunpack.c.l.b16 %v1119
    %v3476 = vunpack.c.l.b16 %v1120
    %v3477 = vunpack.c.l.b16 %v1121
    %v3478 = vunpack.c.l.b16 %v1122
    %v3479 = vunpack.c.l.b16 %v1123
    %v3480 = vunpack.c.l.b16 %v1124
    %v3481 = vunpack.c.l.b16 %v1125
    %v3482 = vunpack.c.l.b16 %v1126
    %v3483 = vunpack.c.l.b16 %v1127
    %v3484 = vunpack.c.l.b16 %v1128
    %v3485 = vunpack.c.l.b16 %v1129
    %v3486 = vunpack.c.l.b16 %v1130
    %v3487 = vunpack.c.l.b16 %v1131
    %v3488 = vunpack.c.l.b16 %v1132
    %v3489 = vunpack.c.l.b16 %v1133
    %v3490 = vunpack.c.l.b16 %v1134
    %v3491 = vunpack.c.l.b16 %v1135
    %v3492 = vunpack.c.l.b16 %v1136
    %v3493 = vunpack.c.l.b16 %v1137
    %v3494 = vunpack.c.l.b16 %v1138
    %v3495 = vunpack.c.l.b16 %v1139
    %v3496 = vunpack.c.l.b16 %v1140
    %v3497 = vunpack.c.l.b16 %v1141
    %v3498 = vunpack.c.l.b16 %v1142
    %v3499 = vunpack.c.l.b16 %v1143
    %v3500 = vunpack.c.l.b16 %v1144
    %v3501 = vunpack.c.l.b16 %v1145
    %v3502 = vunpack.c.l.b16 %v1146
    %v3503 = vunpack.c.l.b16 %v1147
    %v3504 = vunpack.c.l.b16 %v1148
    %v3505 = vunpack.c.l.b16 %v1149
    %v3506 = vunpack.c.l.b16 %v1150
    %v3507 = vunpack.c.l.b16 %v1151
    %v3508 = vunpack.c.l.b16 %v1152
    %v3509 = vunpack.c.l.b16 %v1153
    %v3510 = vunpack.c.l.b16 %v1154
    %v3511 = vunpack.c.l.b16 %v1155
    %v3512 = vunpack.c.l.b16 %v1156
    %v3513 = vunpack.c.l.b16 %v1157
    %v3514 = vunpack.c.l.b16 %v1158
    %v3515 = vunpack.c.l.b16 %v1159
    %v3516 = vunpack.c.l.b16 %v1160
    %v3517 = vunpack.c.l.b16 %v1161
    %v3518 = vunpack.c.l.b16 %v1162
    %v3519 = vunpack.c.l.b16 %v1163
    %v3520 = vunpack.c.l.b16 %v1164
    %v3521 = vunpack.c.l.b16 %v1165
    %v3522 = vunpack.c.l.b16 %v1166
    %v3523 = vunpack.c.l.b16 %v1167
    %v3524 = vunpack.c.l.b16 %v1168
    %v3525 = vunpack.c.l.b16 %v1169
    %v3526 = vunpack.c.l.b16 %v1170
    %v3527 = vunpack.c.l.b16 %v1171
    %v3528 = vunpack.c.l.b16 %v1172
    %v3529 = vunpack.c.l.b16 %v1173
    %v3530 = vunpack.c.l.b16 %v1174
    %v3531 = vunpack.c.l.b16 %v1175
    %v3532 = vunpack.c.l.b16 %v1176
    %v3533 = vunpack.c.l.b16 %v1177
    %v3534 = vunpack.c.l.b16 %v1178
    %v3535 = vunpack.c.l.b16 %v1179
    %v3536 = vunpack.c.l.b16 %v1180
    %v3537 = vunpack.c.l.b16 %v1181
    %v3538 = vunpack.c.l.b16 %v1182
    %v3539 = vunpack.c.l.b16 %v1183
    %v3540 = vunpack.c.l.b16 %v1184
    %v3541 = vunpack.c.l.b16 %v1185
    %v3542 = vunpack.c.l.b16 %v1186
    %v3543 = vunpack.c.l.b16 %v1187
    %v3544 = vunpack.c.l.b16 %v1188
    %v3545 = vunpack.c.l.b16 %v1189
    %v3546 = vunpack.c.l.b16 %v1190
    %v3547 = vunpack.c.l.b16 %v1191
    %v3548 = vunpack.c.l.b16 %v1192
    %v3549 = vunpack.c.l.b16 %v1193
    %v3550 = vunpack.c.l.b16 %v1194
    %v3551 = vunpack.c.l.b16 %v1195
    %v3552 = vunpack.c.l.b16 %v1196
    %v3553 = vunpack.c.l.b16 %v1197
    %v3554 = vunpack.c.l.b16 %v1198
    %v3555 = vunpack.c.l.b16 %v1199
    %v3556 = vunpack.c.l.b16 %v1200
    %v3557 = vunpack.c.l.b16 %v1201
    %v3558 = vunpack.c.l.b16 %v1202
    %v3559 = vunpack.c.l.b16 %v1203
    %v3560 = vunpack.c.l.b16 %v1204
    %v3561 = vunpack.c.l.b16 %v1205
    %v3562 = vunpack.c.l.b16 %v1206
    %v3563 = vunpack.c.l.b16 %v1207
    %v3564 = vunpack.c.l.b16 %v1208
    %v3565 = vunpack.c.l.b16 %v1209
    %v3566 = vunpack.c.l.b16 %v1210
    %v3567 = vunpack.c.l.b16 %v1211
    %v3568 = vunpack.c.l.b16 %v1212
    %v3569 = vunpack.c.l.b16 %v1213
    %v3570 = vunpack.c.l.b16 %v1214
    %v3571 = vunpack.c.l.b16 %v1215
    %v3572 = vunpack.c.l.b16 %v1216
    %v3573 = vunpack.c.l.b16 %v1217
    %v3574 = vunpack.c.l.b16 %v1218
    %v3575 = vunpack.c.l.b16 %v1219
    %v3576 = vunpack.c.l.b16 %v1220
    %v3577 = vunpack.c.l.b16 %v1221
    %v3578 = vunpack.c.l.b16 %v1222
    %v3579 = vunpack.c.l.b16 %v1223
    %v3580 = vunpack.c.l.b16 %v1224
    %v3581 = vunpack.c.l.b16 %v1225
    %v3582 = vunpack.c.l.b16 %v1226
    %v3583 = vunpack.c.l.b16 %v1227
    %v3584 = vunpack.c.l.b16 %v1228
    %v3585 = vunpack.c.l.b16 %v1229
    %v3586 = vunpack.c.l.b16 %v1230
    %v3587 = vunpack.c.l.b16 %v1231
    %v3588 = vunpack.c.l.b16 %v1232
    %v3589 = vunpack.c.l.b16 %v1233
    %v3590 = vunpack.c.l.b16 %v1234
    %v3591 = vunpack.c.l.b16 %v1235
    %v3592 = vunpack.c.l.b16 %v1236
    %v3593 = vunpack.c.l.b16 %v1237
    %v3594 = vunpack.c.l.b16 %v1238
    %v3595 = vunpack.c.l.b16 %v1239
    %v3596 = vunpack.c.l.b16 %v1240
    %v3597 = vunpack.c.l.b16 %v1241
    %v3598 = vunpack.c.l.b16 %v1242
    %v3599 = vunpack.c.l.b16 %v1243
    %v3600 = vunpack.c.l.b16 %v1244
    %v3601 = vunpack.c.l.b16 %v1245
    %v3602 = vunpack.c.l.b16 %v1246
    %v3603 = vunpack.c.l.b16 %v1247
    %v3604 = vunpack.c.l.b16 %v1248
    %v3605 = vunpack.c.l.b16 %v1249
    %v3606 = vunpack.c.l.b16 %v1250
    %v3607 = vunpack.c.l.b16 %v1251
    %v3608 = vunpack.c.l.b16 %v1252
    %v3609 = vunpack.c.l.b16 %v1253
    %v3610 = vunpack.c.l.b16 %v1254
    %v3611 = vunpack.c.l.b16 %v1255
    %v3612 = vunpack.c.l.b16 %v1256
    %v3613 = vunpack.c.l.b16 %v1257
    %v3614 = vunpack.c.l.b16 %v1258
    %v3615 = vunpack.c.l.b16 %v1259
    %v3616 = vunpack.c.l.b16 %v1260
    %v3617 = vunpack.c.l.b16 %v1261
    %v3618 = vunpack.c.l.b16 %v1262
    %v3619 = vunpack.c.l.b16 %v1263
    %v3620 = vunpack.c.l.b16 %v1264
    %v3621 = vunpack.c.l.b16 %v1265
    %v3622 = vunpack.c.l.b16 %v1266
    %v3623 = vunpack.c.l.b16 %v1267
    %v3624 = vunpack.c.l.b16 %v1268
    %v3625 = vunpack.c.l.b16 %v1269
    %v3626 = vunpack.c.l.b16 %v1270
    %v3627 = vunpack.c.l.b16 %v1271
    %v3628 = vunpack.c.l.b16 %v1272
    %v3629 = vunpack.c.l.b16 %v1273
    %v3630 = vunpack.c.l.b16 %v1274
    %v3631 = vunpack.c.l.b16 %v1275
    %v3632 = vunpack.c.l.b16 %v1276
    %v3633 = vunpack.c.l.b16 %v1277
    %v3634 = vunpack.c.l.b16 %v1278
    %v3635 = vunpack.c.l.b16 %v1279
    %v3636 = vunpack.c.l.b16 %v1280
    %v3637 = vunpack.c.l.b16 %v1281
    %v3638 = vunpack.c.l.b16 %v1282
    %v3639 = vunpack.c.l.b16 %v1283
    %v3640 = vunpack.c.l.b16 %v1284
    %v3641 = vunpack.c.l.b16 %v1285
    %v3642 = vunpack.c.l.b16 %v1286
    %v3643 = vunpack.c.l.b16 %v1287
    %v3644 = vunpack.c.l.b16 %v1288
    %v3645 = vunpack.c.l.b16 %v1289
    %v3646 = vunpack.c.l.b16 %v1290
    %v3647 = vunpack.c.l.b16 %v1291
    %v3648 = vunpack.c.l.b16 %v1292
    %v3649 = vunpack.c.l.b16 %v1293
    %v3650 = vunpack.c.l.b16 %v1294
    %v3651 = vunpack.c.l.b16 %v1295
    %v3652 = vunpack.c.l.b16 %v1296
    %v3653 = vunpack.c.l.b16 %v1297
    %v3654 = vunpack.c.l.b16 %v1298
    %v3655 = vunpack.c.l.b16 %v1299
    %v3656 = vunpack.c.l.b16 %v1300
    %v3657 = vunpack.c.l.b16 %v1301
    %v3658 = vunpack.c.l.b16 %v1302
    %v3659 = vunpack.c.l.b16 %v1303
    %v3660 = vunpack.c.l.b16 %v1304
    %v3661 = vunpack.c.l.b16 %v1305
    %v3662 = vunpack.c.l.b16 %v1306
    %v3663 = vunpack.c.l.b16 %v1307
    %v3664 = vunpack.c.l.b16 %v1308
    %v3665 = vunpack.c.l.b16 %v1309
    %v3666 = vunpack.c.l.b16 %v1310
    %v3667 = vunpack.c.l.b16 %v1311
    %v3668 = vunpack.c.l.b16 %v1312
    %v3669 = vunpack.c.l.b16 %v1313
    %v3670 = vunpack.c.l.b16 %v1314
    %v3671 = vunpack.c.l.b16 %v1315
    %v3672 = vunpack.c.l.b16 %v1316
    %v3673 = vunpack.c.l.b16 %v1317
    %v3674 = vunpack.c.l.b16 %v1318
    %v3675 = vunpack.c.l.b16 %v1319
    %v3676 = vunpack.c.l.b16 %v1320
    %v3677 = vunpack.c.l.b16 %v1321
    %v3678 = vunpack.c.l.b16 %v1322
    %v3679 = vunpack.c.l.b16 %v1323
    %v3680 = vunpack.c.l.b16 %v1324
    %v3681 = vunpack.c.l.b16 %v1325
    %v3682 = vunpack.c.l.b16 %v1326
    %v3683 = vunpack.c.l.b16 %v1327
    %v3684 = vunpack.c.l.b16 %v1328
    %v3685 = vunpack.c.l.b16 %v1329
    %v3686 = vunpack.c.l.b16 %v1330
    %v3687 = vunpack.c.l.b16 %v1331
    %v3688 = vunpack.c.l.b16 %v1332
    %v3689 = vunpack.c.l.b16 %v1333
    %v3690 = vunpack.c.l.b16 %v1334
    %v3691 = vunpack.c.l.b16 %v1335
    %v3692 = vunpack.c.l.b16 %v1336
    %v3693 = vunpack.c.l.b16 %v1337
    %v3694 = vunpack.c.l.b16 %v1338
    %v3695 = vunpack.c.l.b16 %v1339
    %v3696 = vunpack.c.l.b16 %v1340
    %v3697 = vunpack.c.l.b16 %v1341
    %v3698 = vunpack.c.l.b16 %v1342
    %v3699 = vunpack.c.l.b16 %v1343
    %v3700 = vunpack.c.l.b16 %v1344
    %v3701 = vunpack.c.l.b16 %v1345
    %v3702 = vunpack.c.l.b16 %v1346
    %v3703 = vunpack.c.l.b16 %v1347
    %v3704 = vunpack.c.l.b16 %v1348
    %v3705 = vunpack.c.l.b16 %v1349
    %v3706 = vunpack.c.l.b16 %v1350
    %v3707 = vunpack.c.l.b16 %v1351
    %v3708 = vunpack.c.l.b16 %v1352
    %v3709 = vunpack.c.l.b16 %v1353
    %v3710 = vunpack.c.l.b16 %v1354
    %v3711 = vunpack.c.l.b16 %v1355
    %v3712 = vunpack.c.l.b16 %v1356
    %v3713 = vunpack.c.l.b16 %v1357
    %v3714 = vunpack.c.l.b16 %v1358
    %v3715 = vunpack.c.l.b16 %v1359
    %v3716 = vunpack.c.l.b16 %v1360
    %v3717 = vunpack.c.l.b16 %v1361
    %v3718 = vunpack.c.l.b16 %v1362
    %v3719 = vunpack.c.l.b16 %v1363
    %v3720 = vunpack.c.l.b16 %v1364
    %v3721 = vunpack.c.l.b16 %v1365
    %v3722 = vunpack.c.l.b16 %v1366
    %v3723 = vunpack.c.l.b16 %v1367
    %v3724 = vunpack.c.l.b16 %v1368
    %v3725 = vunpack.c.l.b16 %v1369
    %v3726 = vunpack.c.l.b16 %v1370
    %v3727 = vunpack.c.l.b16 %v1371
    %v3728 = vunpack.c.l.b16 %v1372
    %v3729 = vunpack.c.l.b16 %v1373
    %v3730 = vunpack.c.l.b16 %v1374
    %v3731 = vunpack.c.l.b16 %v1375
    %v3732 = vunpack.c.l.b16 %v1376
    %v3733 = vunpack.c.l.b16 %v1377
    %v3734 = vunpack.c.l.b16 %v1378
    %v3735 = vunpack.c.l.b16 %v1379
    %v3736 = vunpack.c.l.b16 %v1380
    %v3737 = vunpack.c.l.b16 %v1381
    %v3738 = vunpack.c.l.b16 %v1382
    %v3739 = vunpack.c.l.b16 %v1383
    %v3740 = vunpack.c.l.b16 %v1384
    %v3741 = vunpack.c.l.b16 %v1385
    %v3742 = vunpack.c.l.b16 %v1386
    %v3743 = vunpack.c.l.b16 %v1387
    %v3744 = vunpack.c.l.b16 %v1388
    %v3745 = vunpack.c.l.b16 %v1389
    %v3746 = vunpack.c.l.b16 %v1390
    %v3747 = vunpack.c.l.b16 %v1391
    %v3748 = vunpack.c.l.b16 %v1392
    %v3749 = vunpack.c.l.b16 %v1393
    %v3750 = vunpack.c.l.b16 %v1394
    %v3751 = vunpack.c.l.b16 %v1395
    %v3752 = vunpack.c.l.b16 %v1396
    %v3753 = vunpack.c.l.b16 %v1397
    %v3754 = vunpack.c.l.b16 %v1398
    %v3755 = vunpack.c.l.b16 %v1399
    %v3756 = vunpack.c.l.b16 %v1400
    %v3757 = vunpack.c.l.b16 %v1401
    %v3758 = vunpack.c.l.b16 %v1402
    %v3759 = vunpack.c.l.b16 %v1403
    %v3760 = vunpack.c.l.b16 %v1404
    %v3761 = vunpack.c.l.b16 %v1405
    %v3762 = vunpack.c.l.b16 %v1406
    %v3763 = vunpack.c.l.b16 %v1407
    %v3764 = vunpack.c.l.b16 %v1408
    %v3765 = vunpack.c.l.b16 %v1409
    %v3766 = vunpack.c.l.b16 %v1410
    %v3767 = vunpack.c.l.b16 %v1411
    %v3768 = vunpack.c.l.b16 %v1412
    %v3769 = vunpack.c.l.b16 %v1413
    %v3770 = vunpack.c.l.b16 %v1414
    %v3771 = vunpack.c.l.b16 %v1415
    %v3772 = vunpack.c.l.b16 %v1416
    %v3773 = vunpack.c.l.b16 %v1417
    %v3774 = vunpack.c.l.b16 %v1418
    %v3775 = vunpack.c.l.b16 %v1419
    %v3776 = vunpack.c.l.b16 %v1420
    %v3777 = vunpack.c.l.b16 %v1421
    %v3778 = vunpack.c.l.b16 %v1422
    %v3779 = vunpack.c.l.b16 %v1423
    %v3780 = vunpack.c.l.b16 %v1424
    %v3781 = vunpack.c.l.b16 %v1425
    %v3782 = vunpack.c.l.b16 %v1426
    %v3783 = vunpack.c.l.b16 %v1427
    %v3784 = vunpack.c.l.b16 %v1428
    %v3785 = vunpack.c.l.b16 %v1429
    %v3786 = vunpack.c.l.b16 %v1430
    %v3787 = vunpack.c.l.b16 %v1431
    %v3788 = vunpack.c.l.b16 %v1432
    %v3789 = vunpack.c.l.b16 %v1433
    %v3790 = vunpack.c.l.b16 %v1434
    %v3791 = vunpack.c.l.b16 %v1435
    %v3792 = vunpack.c.l.b16 %v1436
    %v3793 = vunpack.c.l.b16 %v1437
    %v3794 = vunpack.c.l.b16 %v1438
    %v3795 = vunpack.c.l.b16 %v1439
    %v3796 = vunpack.c.l.b16 %v1440
    %v3797 = vunpack.c.l.b16 %v1441
    %v3798 = vunpack.c.l.b16 %v1442
    %v3799 = vunpack.c.l.b16 %v1443
    %v3800 = vunpack.c.l.b16 %v1444
    %v3801 = vunpack.c.l.b16 %v1445
    %v3802 = vunpack.c.l.b16 %v1446
    %v3803 = vunpack.c.l.b16 %v1447
    %v3804 = vunpack.c.l.b16 %v1448
    %v3805 = vunpack.c.l.b16 %v1449
    %v3806 = vunpack.c.l.b16 %v1450
    %v3807 = vunpack.c.l.b16 %v1451
    %v3808 = vunpack.c.l.b16 %v1452
    %v3809 = vunpack.c.l.b16 %v1453
    %v3810 = vunpack.c.l.b16 %v1454
    %v3811 = vunpack.c.l.b16 %v1455
    %v3812 = vunpack.c.l.b16 %v1456
    %v3813 = vunpack.c.l.b16 %v1457
    %v3814 = vunpack.c.l.b16 %v1458
    %v3815 = vunpack.c.l.b16 %v1459
    %v3816 = vunpack.c.l.b16 %v1460
    %v3817 = vunpack.c.l.b16 %v1461
    %v3818 = vunpack.c.l.b16 %v1462
    %v3819 = vunpack.c.l.b16 %v1463
    %v3820 = vunpack.c.l.b16 %v1464
    %v3821 = vunpack.c.l.b16 %v1465
    %v3822 = vunpack.c.l.b16 %v1466
    %v3823 = vunpack.c.l.b16 %v1467
    %v3824 = vunpack.c.l.b16 %v1468
    %v3825 = vunpack.c.l.b16 %v1469
    %v3826 = vunpack.c.l.b16 %v1470
    %v3827 = vunpack.c.l.b16 %v1471
    %v3828 = vunpack.c.l.b16 %v1472
    %v3829 = vunpack.c.l.b16 %v1473
    %v3830 = vunpack.c.l.b16 %v1474
    %v3831 = vunpack.c.l.b16 %v1475
    %v3832 = vunpack.c.l.b16 %v1476
    %v3833 = vunpack.c.l.b16 %v1477
    %v3834 = vunpack.c.l.b16 %v1478
    %v3835 = vunpack.c.l.b16 %v1479
    %v3836 = vunpack.c.l.b16 %v1480
    %v3837 = vunpack.c.l.b16 %v1481
    %v3838 = vunpack.c.l.b16 %v1482
    %v3839 = vunpack.c.l.b16 %v1483
    %v3840 = vunpack.c.l.b16 %v1484
    %v3841 = vunpack.c.l.b16 %v1485
    %v3842 = vunpack.c.l.b16 %v1486
    %v3843 = vunpack.c.l.b16 %v1487
    %v3844 = vunpack.c.l.b16 %v1488
    %v3845 = vunpack.c.l.b16 %v1489
    %v3846 = vunpack.c.l.b16 %v1490
    %v3847 = vunpack.c.l.b16 %v1491
    %v3848 = vunpack.c.l.b16 %v1492
    %v3849 = vunpack.c.l.b16 %v1493
    %v3850 = vunpack.c.l.b16 %v1494
    %v3851 = vunpack.c.l.b16 %v1495
    %v3852 = vunpack.c.l.b16 %v1496
    %v3853 = vunpack.c.l.b16 %v1497
    %v3854 = vunpack.c.l.b16 %v1498
    %v3855 = vunpack.c.l.b16 %v1499
    %v3856 = vunpack.c.l.b16 %v1500
    %v3857 = vunpack.c.l.b16 %v1501
    %v3858 = vunpack.c.l.b16 %v1502
    %v3859 = vunpack.c.l.b16 %v1503
    %v3860 = vunpack.c.l.b16 %v1504
    %v3861 = vunpack.c.l.b16 %v1505
    %v3862 = vunpack.c.l.b16 %v1506
    %v3863 = vunpack.c.l.b16 %v1507
    %v3864 = vunpack.c.l.b16 %v1508
    %v3865 = vunpack.c.l.b16 %v1509
    %v3866 = vunpack.c.l.b16 %v1510
    %v3867 = vunpack.c.l.b16 %v1511
    %v3868 = vunpack.c.l.b16 %v1512
    %v3869 = vunpack.c.l.b16 %v1513
    %v3870 = vunpack.c.l.b16 %v1514
    %v3871 = vunpack.c.l.b16 %v1515
    %v3872 = vunpack.c.l.b16 %v1516
    %v3873 = vunpack.c.l.b16 %v1517
    %v3874 = vunpack.c.l.b16 %v1518
    %v3875 = vunpack.c.l.b16 %v1519
    %v3876 = vunpack.c.l.b16 %v1520
    %v3877 = vunpack.c.l.b16 %v1521
    %v3878 = vunpack.c.l.b16 %v1522
    %v3879 = vunpack.c.l.b16 %v1523
    %v3880 = vunpack.c.l.b16 %v1524
    %v3881 = vunpack.c.l.b16 %v1525
    %v3882 = vunpack.c.l.b16 %v1526
    %v3883 = vunpack.c.l.b16 %v1527
    %v3884 = vunpack.c.l.b16 %v1528
    %v3885 = vunpack.c.l.b16 %v1529
    %v3886 = vunpack.c.l.b16 %v1530
    %v3887 = vunpack.c.l.b16 %v1531
    %v3888 = vunpack.c.l.b16 %v1532
    %v3889 = vunpack.c.l.b16 %v1533
    %v3890 = vunpack.c.l.b16 %v1534
    %v3891 = vunpack.c.l.b16 %v1535
    %v3892 = vunpack.c.l.b16 %v1536
    %v3893 = vunpack.c.l.b16 %v1537
    %v3894 = vunpack.c.l.b16 %v1538
    %v3895 = vunpack.c.l.b16 %v1539
    %v3896 = vunpack.c.l.b16 %v1540
    %v3897 = vunpack.c.l.b16 %v1541
    %v3898 = vunpack.c.l.b16 %v1542
    %v3899 = vunpack.c.l.b16 %v1543
    %v3900 = vunpack.c.l.b16 %v1544
    %v3901 = vunpack.c.l.b16 %v1545
    %v3902 = vunpack.c.l.b16 %v1546
    %v3903 = vunpack.c.l.b16 %v1547
    %v3904 = vunpack.c.l.b16 %v1548
    %v3905 = vunpack.c.l.b16 %v1549
    %v3906 = vunpack.c.l.b16 %v1550
    %v3907 = vunpack.c.l.b16 %v1551
    %v3908 = vunpack.c.l.b16 %v1552
    %v3909 = vunpack.c.l.b16 %v1553
    %v3910 = vunpack.c.l.b16 %v1554
    %v3911 = vunpack.c.l.b16 %v1555
    %v3912 = vunpack.c.l.b16 %v1556
    %v3913 = vunpack.c.l.b16 %v1557
    %v3914 = vunpack.c.l.b16 %v1558
    %v3915 = vunpack.c.l.b16 %v1559
    %v3916 = vunpack.c.l.b16 %v1560
    %v3917 = vunpack.c.l.b16 %v1561
    %v3918 = vunpack.c.l.b16 %v1562
    %v3919 = vunpack.c.l.b16 %v1563
    %v3920 = vunpack.c.l.b16 %v1564
    %v3921 = vunpack.c.l.b16 %v1565
    %v3922 = vunpack.c.l.b16 %v1566
    %v3923 = vunpack.c.l.b16 %v1567
    %v3924 = vunpack.c.l.b16 %v1568
    %v3925 = vunpack.c.l.b16 %v1569
    %v3926 = vunpack.c.l.b16 %v1570
    %v3927 = vunpack.c.l.b16 %v1571
    %v3928 = vunpack.c.l.b16 %v1572
    %v3929 = vunpack.c.l.b16 %v1573
    %v3930 = vunpack.c.l.b16 %v1574
    %v3931 = vunpack.c.l.b16 %v1575
    %v3932 = vunpack.c.l.b16 %v1576
    %v3933 = vunpack.c.l.b16 %v1577
    %v3934 = vunpack.c.l.b16 %v1578
    %v3935 = vunpack.c.l.b16 %v1579
    %v3936 = vunpack.c.l.b16 %v1580
    %v3937 = vunpack.c.l.b16 %v1581
    %v3938 = vunpack.c.l.b16 %v1582
    %v3939 = vunpack.c.l.b16 %v1583
    %v3940 = vunpack.c.l.b16 %v1584
    %v3941 = vunpack.c.l.b16 %v1585
    %v3942 = vunpack.c.l.b16 %v1586
    %v3943 = vunpack.c.l.b16 %v1587
    %v3944 = vunpack.c.l.b16 %v1588
    %v3945 = vunpack.c.l.b16 %v1589
    %v3946 = vunpack.c.l.b16 %v1590
    %v3947 = vunpack.c.l.b16 %v1591
    %v3948 = vunpack.c.l.b16 %v1592
    %v3949 = vunpack.c.l.b16 %v1593
    %v3950 = vunpack.c.l.b16 %v1594
    %v3951 = vunpack.c.l.b16 %v1595
    %v3952 = vunpack.c.l.b16 %v1596
    %v3953 = vunpack.c.l.b16 %v1597
    %v3954 = vunpack.c.l.b16 %v1598
    %v3955 = vunpack.c.l.b16 %v1599
    %v3956 = vunpack.c.l.b16 %v1600
    %v3957 = vunpack.c.l.b16 %v1601
    %v3958 = vunpack.c.l.b16 %v1602
    %v3959 = vunpack.c.l.b16 %v1603
    %v3960 = vunpack.c.l.b16 %v1604
    %v3961 = vunpack.c.l.b16 %v1605
    %v3962 = vunpack.c.l.b16 %v1606
    %v3963 = vunpack.c.l.b16 %v1607
    %v3964 = vunpack.c.l.b16 %v1608
    %v3965 = vunpack.c.l.b16 %v1609
    %v3966 = vunpack.c.l.b16 %v1610
    %v3967 = vunpack.c.l.b16 %v1611
    %v3968 = vunpack.c.l.b16 %v1612
    %v3969 = vunpack.c.l.b16 %v1613
    %v3970 = vunpack.c.l.b16 %v1614
    %v3971 = vunpack.c.l.b16 %v1615
    %v3972 = vunpack.c.l.b16 %v1616
    %v3973 = vunpack.c.l.b16 %v1617
    %v3974 = vunpack.c.l.b16 %v1618
    %v3975 = vunpack.c.l.b16 %v1619
    %v3976 = vunpack.c.l.b16 %v1620
    %v3977 = vunpack.c.l.b16 %v1621
    %v3978 = vunpack.c.l.b16 %v1622
    %v3979 = vunpack.c.l.b16 %v1623
    %v3980 = vunpack.c.l.b16 %v1624
    %v3981 = vunpack.c.l.b16 %v1625
    %v3982 = vunpack.c.l.b16 %v1626
    %v3983 = vunpack.c.l.b16 %v1627
    %v3984 = vunpack.c.l.b16 %v1628
    %v3985 = vunpack.c.l.b16 %v1629
    %v3986 = vunpack.c.l.b16 %v1630
    %v3987 = vunpack.c.l.b16 %v1631
    %v3988 = vunpack.c.l.b16 %v1632
    %v3989 = vunpack.c.l.b16 %v1633
    %v3990 = vunpack.c.l.b16 %v1634
    %v3991 = vunpack.c.l.b16 %v1635
    %v3992 = vunpack.c.l.b16 %v1636
    %v3993 = vunpack.c.l.b16 %v1637
    %v3994 = vunpack.c.l.b16 %v1638
    %v3995 = vunpack.c.l.b16 %v1639
    %v3996 = vunpack.c.l.b16 %v1640
    %v3997 = vunpack.c.l.b16 %v1641
    %v3998 = vunpack.c.l.b16 %v1642
    %v3999 = vunpack.c.l.b16 %v1643
    %v4000 = vunpack.c.l.b16 %v1644
    %v4001 = vunpack.c.l.b16 %v1645
    %v4002 = vunpack.c.l.b16 %v1646
    %v4003 = vunpack.c.l.b16 %v1647
    %v4004 = vunpack.c.l.b16 %v1648
    %v4005 = vunpack.c.l.b16 %v1649
    %v4006 = vunpack.c.l.b16 %v1650
    %v4007 = vunpack.c.l.b16 %v1651
    %v4008 = vunpack.c.l.b16 %v1652
    %v4009 = vunpack.c.l.b16 %v1653
    %v4010 = vunpack.c.l.b16 %v1654
    %v4011 = vunpack.c.l.b16 %v1655
    %v4012 = vunpack.c.l.b16 %v1656
    %v4013 = vunpack.c.l.b16 %v1657
    %v4014 = vunpack.c.l.b16 %v1658
    %v4015 = vunpack.c.l.b16 %v1659
    %v4016 = vunpack.c.l.b16 %v1660
    %v4017 = vunpack.c.l.b16 %v1661
    %v4018 = vunpack.c.l.b16 %v1662
    %v4019 = vunpack.c.l.b16 %v1663
    %v4020 = vunpack.c.l.b16 %v1664
    %v4021 = vunpack.c.l.b16 %v1665
    %v4022 = vunpack.c.l.b16 %v1666
    %v4023 = vunpack.c.l.b16 %v1667
    %v4024 = vunpack.c.l.b16 %v1668
    %v4025 = vunpack.c.l.b16 %v1669
    %v4026 = vunpack.c.l.b16 %v1670
    %v4027 = vunpack.c.l.b16 %v1671
    %v4028 = vunpack.c.l.b16 %v1672
    %v4029 = vunpack.c.l.b16 %v1673
    %v4030 = vunpack.c.l.b16 %v1674
    %v4031 = vunpack.c.l.b16 %v1675
    %v4032 = vunpack.c.l.b16 %v1676
    %v4033 = vunpack.c.l.b16 %v1677
    %v4034 = vunpack.c.l.b16 %v1678
    %v4035 = vunpack.c.l.b16 %v1679
    %v4036 = vunpack.c.l.b16 %v1680
    %v4037 = vunpack.c.l.b16 %v1681
    %v4038 = vunpack.c.l.b16 %v1682
    %v4039 = vunpack.c.l.b16 %v1683
    %v4040 = vunpack.c.l.b16 %v1684
    %v4041 = vunpack.c.l.b16 %v1685
    %v4042 = vunpack.c.l.b16 %v1686
    %v4043 = vunpack.c.l.b16 %v1687
    %v4044 = vunpack.c.l.b16 %v1688
    %v4045 = vunpack.c.l.b16 %v1689
    %v4046 = vunpack.c.l.b16 %v1690
    %v4047 = vunpack.c.l.b16 %v1691
    %v4048 = vunpack.c.l.b16 %v1692
    %v4049 = vunpack.c.l.b16 %v1693
    %v4050 = vunpack.c.l.b16 %v1694
    %v4051 = vunpack.c.l.b16 %v1695
    %v4052 = vunpack.c.l.b16 %v1696
    %v4053 = vunpack.c.l.b16 %v1697
    %v4054 = vunpack.c.l.b16 %v1698
    %v4055 = vunpack.c.l.b16 %v1699
    %v4056 = vunpack.c.l.b16 %v1700
    %v4057 = vunpack.c.l.b16 %v1701
    %v4058 = vunpack.c.l.b16 %v1702
    %v4059 = vunpack.c.l.b16 %v1703
    %v4060 = vunpack.c.l.b16 %v1704
    %v4061 = vunpack.c.l.b16 %v1705
    %v4062 = vunpack.c.l.b16 %v1706
    %v4063 = vunpack.c.l.b16 %v1707
    %v4064 = vunpack.c.l.b16 %v1708
    %v4065 = vunpack.c.l.b16 %v1709
    %v4066 = vunpack.c.l.b16 %v1710
    %v4067 = vunpack.c.l.b16 %v1711
    %v4068 = vunpack.c.l.b16 %v1712
    %v4069 = vunpack.c.l.b16 %v1713
    %v4070 = vunpack.c.l.b16 %v1714
    %v4071 = vunpack.c.l.b16 %v1715
    %v4072 = vunpack.c.l.b16 %v1716
    %v4073 = vunpack.c.l.b16 %v1717
    %v4074 = vunpack.c.l.b16 %v1718
    %v4075 = vunpack.c.l.b16 %v1719
    %v4076 = vunpack.c.l.b16 %v1720
    %v4077 = vunpack.c.l.b16 %v1721
    %v4078 = vunpack.c.l.b16 %v1722
    %v4079 = vunpack.c.l.b16 %v1723
    %v4080 = vunpack.c.l.b16 %v1724
    %v4081 = vunpack.c.l.b16 %v1725
    %v4082 = vunpack.c.l.b16 %v1726
    %v4083 = vunpack.c.l.b16 %v1727
    %v4084 = vunpack.c.l.b16 %v1728
    %v4085 = vunpack.c.l.b16 %v1729
    %v4086 = vunpack.c.l.b16 %v1730
    %v4087 = vunpack.c.l.b16 %v1731
    %v4088 = vunpack.c.l.b16 %v1732
    %v4089 = vpack.c.b16 %v2914, %v2913
    %v4090 = vpack.c.b16 %v2916, %v2915
    %v4091 = vpack.c.b16 %v2918, %v2917
    %v4092 = vpack.c.b16 %v2920, %v2919
    %v4093 = vpack.c.b16 %v2922, %v2921
    %v4094 = vpack.c.b16 %v2924, %v2923
    %v4095 = vpack.c.b16 %v2926, %v2925
    %v4096 = vpack.c.b16 %v2928, %v2927
    %v4097 = vpack.c.b16 %v2930, %v2929
    %v4098 = vpack.c.b16 %v2932, %v2931
    %v4099 = vpack.c.b16 %v2934, %v2933
    %v4100 = vpack.c.b16 %v2936, %v2935
    %v4101 = vpack.c.b16 %v2938, %v2937
    %v4102 = vpack.c.b16 %v2940, %v2939
    %v4103 = vpack.c.b16 %v2942, %v2941
    %v4104 = vpack.c.b16 %v2944, %v2943
    %v4105 = vpack.c.b16 %v2946, %v2945
    %v4106 = vpack.c.b16 %v2948, %v2947
    %v4107 = vpack.c.b16 %v2950, %v2949
    %v4108 = vpack.c.b16 %v2952, %v2951
    %v4109 = vpack.c.b16 %v2954, %v2953
    %v4110 = vpack.c.b16 %v2956, %v2955
    %v4111 = vpack.c.b16 %v2958, %v2957
    %v4112 = vpack.c.b16 %v2960, %v2959
    %v4113 = vpack.c.b16 %v2962, %v2961
    %v4114 = vpack.c.b16 %v2964, %v2963
    %v4115 = vpack.c.b16 %v2966, %v2965
    %v4116 = vpack.c.b16 %v2968, %v2967
    %v4117 = vpack.c.b16 %v2970, %v2969
    %v4118 = vpack.c.b16 %v2972, %v2971
    %v4119 = vpack.c.b16 %v2974, %v2973
    %v4120 = vpack.c.b16 %v2976, %v2975
    %v4121 = vpack.c.b16 %v2978, %v2977
    %v4122 = vpack.c.b16 %v2980, %v2979
    %v4123 = vpack.c.b16 %v2982, %v2981
    %v4124 = vpack.c.b16 %v2984, %v2983
    %v4125 = vpack.c.b16 %v2986, %v2985
    %v4126 = vpack.c.b16 %v2988, %v2987
    %v4127 = vpack.c.b16 %v2990, %v2989
    %v4128 = vpack.c.b16 %v2992, %v2991
    %v4129 = vpack.c.b16 %v2994, %v2993
    %v4130 = vpack.c.b16 %v2996, %v2995
    %v4131 = vpack.c.b16 %v2998, %v2997
    %v4132 = vpack.c.b16 %v3000, %v2999
    %v4133 = vpack.c.b16 %v3002, %v3001
    %v4134 = vpack.c.b16 %v3004, %v3003
    %v4135 = vpack.c.b16 %v3006, %v3005
    %v4136 = vpack.c.b16 %v3008, %v3007
    %v4137 = vpack.c.b16 %v3010, %v3009
    %v4138 = vpack.c.b16 %v3012, %v3011
    %v4139 = vpack.c.b16 %v3014, %v3013
    %v4140 = vpack.c.b16 %v3016, %v3015
    %v4141 = vpack.c.b16 %v3018, %v3017
    %v4142 = vpack.c.b16 %v3020, %v3019
    %v4143 = vpack.c.b16 %v3022, %v3021
    %v4144 = vpack.c.b16 %v3024, %v3023
    %v4145 = vpack.c.b16 %v3026, %v3025
    %v4146 = vpack.c.b16 %v3028, %v3027
    %v4147 = vpack.c.b16 %v3030, %v3029
    %v4148 = vpack.c.b16 %v3032, %v3031
    %v4149 = vpack.c.b16 %v3034, %v3033
    %v4150 = vpack.c.b16 %v3036, %v3035
    %v4151 = vpack.c.b16 %v3038, %v3037
    %v4152 = vpack.c.b16 %v3040, %v3039
    %v4153 = vpack.c.b16 %v3042, %v3041
    %v4154 = vpack.c.b16 %v3044, %v3043
    %v4155 = vpack.c.b16 %v3046, %v3045
    %v4156 = vpack.c.b16 %v3048, %v3047
    %v4157 = vpack.c.b16 %v3050, %v3049
    %v4158 = vpack.c.b16 %v3052, %v3051
    %v4159 = vpack.c.b16 %v3054, %v3053
    %v4160 = vpack.c.b16 %v3056, %v3055
    %v4161 = vpack.c.b16 %v3058, %v3057
    %v4162 = vpack.c.b16 %v3060, %v3059
    %v4163 = vpack.c.b16 %v3062, %v3061
    %v4164 = vpack.c.b16 %v3064, %v3063
    %v4165 = vpack.c.b16 %v3066, %v3065
    %v4166 = vpack.c.b16 %v3068, %v3067
    %v4167 = vpack.c.b16 %v3070, %v3069
    %v4168 = vpack.c.b16 %v3072, %v3071
    %v4169 = vpack.c.b16 %v3074, %v3073
    %v4170 = vpack.c.b16 %v3076, %v3075
    %v4171 = vpack.c.b16 %v3078, %v3077
    %v4172 = vpack.c.b16 %v3080, %v3079
    %v4173 = vpack.c.b16 %v3082, %v3081
    %v4174 = vpack.c.b16 %v3084, %v3083
    %v4175 = vpack.c.b16 %v3086, %v3085
    %v4176 = vpack.c.b16 %v3088, %v3087
    %v4177 = vpack.c.b16 %v3090, %v3089
    %v4178 = vpack.c.b16 %v3092, %v3091
    %v4179 = vpack.c.b16 %v3094, %v3093
    %v4180 = vpack.c.b16 %v3096, %v3095
    %v4181 = vpack.c.b16 %v3098, %v3097
    %v4182 = vpack.c.b16 %v3100, %v3099
    %v4183 = vpack.c.b16 %v3102, %v3101
    %v4184 = vpack.c.b16 %v3104, %v3103
    %v4185 = vpack.c.b16 %v3106, %v3105
    %v4186 = vpack.c.b16 %v3108, %v3107
    %v4187 = vpack.c.b16 %v3110, %v3109
    %v4188 = vpack.c.b16 %v3112, %v3111
    %v4189 = vpack.c.b16 %v3114, %v3113
    %v4190 = vpack.c.b16 %v3116, %v3115
    %v4191 = vpack.c.b16 %v3118, %v3117
    %v4192 = vpack.c.b16 %v3120, %v3119
    %v4193 = vpack.c.b16 %v3122, %v3121
    %v4194 = vpack.c.b16 %v3124, %v3123
    %v4195 = vpack.c.b16 %v3126, %v3125
    %v4196 = vpack.c.b16 %v3128, %v3127
    %v4197 = vpack.c.b16 %v3130, %v3129
    %v4198 = vpack.c.b16 %v3132, %v3131
    %v4199 = vpack.c.b16 %v3134, %v3133
    %v4200 = vpack.c.b16 %v3136, %v3135
    %v4201 = vpack.c.b16 %v3138, %v3137
    %v4202 = vpack.c.b16 %v3140, %v3139
    %v4203 = vpack.c.b16 %v3142, %v3141
    %v4204 = vpack.c.b16 %v3144, %v3143
    %v4205 = vpack.c.b16 %v3146, %v3145
    %v4206 = vpack.c.b16 %v3148, %v3147
    %v4207 = vpack.c.b16 %v3150, %v3149
    %v4208 = vpack.c.b16 %v3152, %v3151
    %v4209 = vpack.c.b16 %v3154, %v3153
    %v4210 = vpack.c.b16 %v3156, %v3155
    %v4211 = vpack.c.b16 %v3158, %v3157
    %v4212 = vpack.c.b16 %v3160, %v3159
    %v4213 = vpack.c.b16 %v3162, %v3161
    %v4214 = vpack.c.b16 %v3164, %v3163
    %v4215 = vpack.c.b16 %v3166, %v3165
    %v4216 = vpack.c.b16 %v3168, %v3167
    %v4217 = vpack.c.b16 %v3170, %v3169
    %v4218 = vpack.c.b16 %v3172, %v3171
    %v4219 = vpack.c.b16 %v3174, %v3173
    %v4220 = vpack.c.b16 %v3176, %v3175
    %v4221 = vpack.c.b16 %v3178, %v3177
    %v4222 = vpack.c.b16 %v3180, %v3179
    %v4223 = vpack.c.b16 %v3182, %v3181
    %v4224 = vpack.c.b16 %v3184, %v3183
    %v4225 = vpack.c.b16 %v3186, %v3185
    %v4226 = vpack.c.b16 %v3188, %v3187
    %v4227 = vpack.c.b16 %v3190, %v3189
    %v4228 = vpack.c.b16 %v3192, %v3191
    %v4229 = vpack.c.b16 %v3194, %v3193
    %v4230 = vpack.c.b16 %v3196, %v3195
    %v4231 = vpack.c.b16 %v3198, %v3197
    %v4232 = vpack.c.b16 %v3200, %v3199
    %v4233 = vpack.c.b16 %v3202, %v3201
    %v4234 = vpack.c.b16 %v3204, %v3203
    %v4235 = vpack.c.b16 %v3206, %v3205
    %v4236 = vpack.c.b16 %v3208, %v3207
    %v4237 = vpack.c.b16 %v3210, %v3209
    %v4238 = vpack.c.b16 %v3212, %v3211
    %v4239 = vpack.c.b16 %v3214, %v3213
    %v4240 = vpack.c.b16 %v3216, %v3215
    %v4241 = vpack.c.b16 %v3218, %v3217
    %v4242 = vpack.c.b16 %v3220, %v3219
    %v4243 = vpack.c.b16 %v3222, %v3221
    %v4244 = vpack.c.b16 %v3224, %v3223
    %v4245 = vpack.c.b16 %v3226, %v3225
    %v4246 = vpack.c.b16 %v3228, %v3227
    %v4247 = vpack.c.b16 %v3230, %v3229
    %v4248 = vpack.c.b16 %v3232, %v3231
    %v4249 = vpack.c.b16 %v3234, %v3233
    %v4250 = vpack.c.b16 %v3236, %v3235
    %v4251 = vpack.c.b16 %v3238, %v3237
    %v4252 = vpack.c.b16 %v3240, %v3239
    %v4253 = vpack.c.b16 %v3242, %v3241
    %v4254 = vpack.c.b16 %v3244, %v3243
    %v4255 = vpack.c.b16 %v3246, %v3245
    %v4256 = vpack.c.b16 %v3248, %v3247
    %v4257 = vpack.c.b16 %v3250, %v3249
    %v4258 = vpack.c.b16 %v3252, %v3251
    %v4259 = vpack.c.b16 %v3254, %v3253
    %v4260 = vpack.c.b16 %v3256, %v3255
    %v4261 = vpack.c.b16 %v3258, %v3257
    %v4262 = vpack.c.b16 %v3260, %v3259
    %v4263 = vpack.c.b16 %v3262, %v3261
    %v4264 = vpack.c.b16 %v3264, %v3263
    %v4265 = vpack.c.b16 %v3266, %v3265
    %v4266 = vpack.c.b16 %v3268, %v3267
    %v4267 = vpack.c.b16 %v3270, %v3269
    %v4268 = vpack.c.b16 %v3272, %v3271
    %v4269 = vpack.c.b16 %v3274, %v3273
    %v4270 = vpack.c.b16 %v3276, %v3275
    %v4271 = vpack.c.b16 %v3278, %v3277
    %v4272 = vpack.c.b16 %v3280, %v3279
    %v4273 = vpack.c.b16 %v3282, %v3281
    %v4274 = vpack.c.b16 %v3284, %v3283
    %v4275 = vpack.c.b16 %v3286, %v3285
    %v4276 = vpack.c.b16 %v3288, %v3287
    %v4277 = vpack.c.b16 %v3290, %v3289
    %v4278 = vpack.c.b16 %v3292, %v3291
    %v4279 = vpack.c.b16 %v3294, %v3293
    %v4280 = vpack.c.b16 %v3296, %v3295
    %v4281 = vpack.c.b16 %v3298, %v3297
    %v4282 = vpack.c.b16 %v3300, %v3299
    %v4283 = vpack.c.b16 %v3302, %v3301
    %v4284 = vpack.c.b16 %v3304, %v3303
    %v4285 = vpack.c.b16 %v3306, %v3305
    %v4286 = vpack.c.b16 %v3308, %v3307
    %v4287 = vpack.c.b16 %v3310, %v3309
    %v4288 = vpack.c.b16 %v3312, %v3311
    %v4289 = vpack.c.b16 %v3314, %v3313
    %v4290 = vpack.c.b16 %v3316, %v3315
    %v4291 = vpack.c.b16 %v3318, %v3317
    %v4292 = vpack.c.b16 %v3320, %v3319
    %v4293 = vpack.c.b16 %v3322, %v3321
    %v4294 = vpack.c.b16 %v3324, %v3323
    %v4295 = vpack.c.b16 %v3326, %v3325
    %v4296 = vpack.c.b16 %v3328, %v3327
    %v4297 = vpack.c.b16 %v3330, %v3329
    %v4298 = vpack.c.b16 %v3332, %v3331
    %v4299 = vpack.c.b16 %v3334, %v3333
    %v4300 = vpack.c.b16 %v3336, %v3335
    %v4301 = vpack.c.b16 %v3338, %v3337
    %v4302 = vpack.c.b16 %v3340, %v3339
    %v4303 = vpack.c.b16 %v3342, %v3341
    %v4304 = vpack.c.b16 %v3344, %v3343
    %v4305 = vpack.c.b16 %v3346, %v3345
    %v4306 = vpack.c.b16 %v3348, %v3347
    %v4307 = vpack.c.b16 %v3350, %v3349
    %v4308 = vpack.c.b16 %v3352, %v3351
    %v4309 = vpack.c.b16 %v3354, %v3353
    %v4310 = vpack.c.b16 %v3356, %v3355
    %v4311 = vpack.c.b16 %v3358, %v3357
    %v4312 = vpack.c.b16 %v3360, %v3359
    %v4313 = vpack.c.b16 %v3362, %v3361
    %v4314 = vpack.c.b16 %v3364, %v3363
    %v4315 = vpack.c.b16 %v3366, %v3365
    %v4316 = vpack.c.b16 %v3368, %v3367
    %v4317 = vpack.c.b16 %v3370, %v3369
    %v4318 = vpack.c.b16 %v3372, %v3371
    %v4319 = vpack.c.b16 %v3374, %v3373
    %v4320 = vpack.c.b16 %v3376, %v3375
    %v4321 = vpack.c.b16 %v3378, %v3377
    %v4322 = vpack.c.b16 %v3380, %v3379
    %v4323 = vpack.c.b16 %v3382, %v3381
    %v4324 = vpack.c.b16 %v3384, %v3383
    %v4325 = vpack.c.b16 %v3386, %v3385
    %v4326 = vpack.c.b16 %v3388, %v3387
    %v4327 = vpack.c.b16 %v3390, %v3389
    %v4328 = vpack.c.b16 %v3392, %v3391
    %v4329 = vpack.c.b16 %v3394, %v3393
    %v4330 = vpack.c.b16 %v3396, %v3395
    %v4331 = vpack.c.b16 %v3398, %v3397
    %v4332 = vpack.c.b16 %v3400, %v3399
    %v4333 = vpack.c.b16 %v3402, %v3401
    %v4334 = vpack.c.b16 %v3404, %v3403
    %v4335 = vpack.c.b16 %v3406, %v3405
    %v4336 = vpack.c.b16 %v3408, %v3407
    %v4337 = vpack.c.b16 %v3410, %v3409
    %v4338 = vpack.c.b16 %v3412, %v3411
    %v4339 = vpack.c.b16 %v3414, %v3413
    %v4340 = vpack.c.b16 %v3416, %v3415
    %v4341 = vpack.c.b16 %v3418, %v3417
    %v4342 = vpack.c.b16 %v3420, %v3419
    %v4343 = vpack.c.b16 %v3422, %v3421
    %v4344 = vpack.c.b16 %v3424, %v3423
    %v4345 = vpack.c.b16 %v3426, %v3425
    %v4346 = vpack.c.b16 %v3428, %v3427
    %v4347 = vpack.c.b16 %v3430, %v3429
    %v4348 = vpack.c.b16 %v3432, %v3431
    %v4349 = vpack.c.b16 %v3434, %v3433
    %v4350 = vpack.c.b16 %v3436, %v3435
    %v4351 = vpack.c.b16 %v3438, %v3437
    %v4352 = vpack.c.b16 %v3440, %v3439
    %v4353 = vpack.c.b16 %v3442, %v3441
    %v4354 = vpack.c.b16 %v3444, %v3443
    %v4355 = vpack.c.b16 %v3446, %v3445
    %v4356 = vpack.c.b16 %v3448, %v3447
    %v4357 = vpack.c.b16 %v3450, %v3449
    %v4358 = vpack.c.b16 %v3452, %v3451
    %v4359 = vpack.c.b16 %v3454, %v3453
    %v4360 = vpack.c.b16 %v3456, %v3455
    %v4361 = vpack.c.b16 %v3458, %v3457
    %v4362 = vpack.c.b16 %v3460, %v3459
    %v4363 = vpack.c.b16 %v3462, %v3461
    %v4364 = vpack.c.b16 %v3464, %v3463
    %v4365 = vpack.c.b16 %v3466, %v3465
    %v4366 = vpack.c.b16 %v3468, %v3467
    %v4367 = vpack.c.b16 %v3470, %v3469
    %v4368 = vpack.c.b16 %v3472, %v3471
    %v4369 = vpack.c.b16 %v3474, %v3473
    %v4370 = vpack.c.b16 %v3476, %v3475
    %v4371 = vpack.c.b16 %v3478, %v3477
    %v4372 = vpack.c.b16 %v3480, %v3479
    %v4373 = vpack.c.b16 %v3482, %v3481
    %v4374 = vpack.c.b16 %v3484, %v3483
    %v4375 = vpack.c.b16 %v3486, %v3485
    %v4376 = vpack.c.b16 %v3488, %v3487
    %v4377 = vpack.c.b16 %v3490, %v3489
    %v4378 = vpack.c.b16 %v3492, %v3491
    %v4379 = vpack.c.b16 %v3494, %v3493
    %v4380 = vpack.c.b16 %v3496, %v3495
    %v4381 = vpack.c.b16 %v3498, %v3497
    %v4382 = vpack.c.b16 %v3500, %v3499
    %v4383 = vpack.c.b16 %v3502, %v3501
    %v4384 = vpack.c.b16 %v3504, %v3503
    %v4385 = vpack.c.b16 %v3506, %v3505
    %v4386 = vpack.c.b16 %v3508, %v3507
    %v4387 = vpack.c.b16 %v3510, %v3509
    %v4388 = vpack.c.b16 %v3512, %v3511
    %v4389 = vpack.c.b16 %v3514, %v3513
    %v4390 = vpack.c.b16 %v3516, %v3515
    %v4391 = vpack.c.b16 %v3518, %v3517
    %v4392 = vpack.c.b16 %v3520, %v3519
    %v4393 = vpack.c.b16 %v3522, %v3521
    %v4394 = vpack.c.b16 %v3524, %v3523
    %v4395 = vpack.c.b16 %v3526, %v3525
    %v4396 = vpack.c.b16 %v3528, %v3527
    %v4397 = vpack.c.b16 %v3530, %v3529
    %v4398 = vpack.c.b16 %v3532, %v3531
    %v4399 = vpack.c.b16 %v3534, %v3533
    %v4400 = vpack.c.b16 %v3536, %v3535
    %v4401 = vpack.c.b16 %v3538, %v3537
    %v4402 = vpack.c.b16 %v3540, %v3539
    %v4403 = vpack.c.b16 %v3542, %v3541
    %v4404 = vpack.c.b16 %v3544, %v3543
    %v4405 = vpack.c.b16 %v3546, %v3545
    %v4406 = vpack.c.b16 %v3548, %v3547
    %v4407 = vpack.c.b16 %v3550, %v3549
    %v4408 = vpack.c.b16 %v3552, %v3551
    %v4409 = vpack.c.b16 %v3554, %v3553
    %v4410 = vpack.c.b16 %v3556, %v3555
    %v4411 = vpack.c.b16 %v3558, %v3557
    %v4412 = vpack.c.b16 %v3560, %v3559
    %v4413 = vpack.c.b16 %v3562, %v3561
    %v4414 = vpack.c.b16 %v3564, %v3563
    %v4415 = vpack.c.b16 %v3566, %v3565
    %v4416 = vpack.c.b16 %v3568, %v3567
    %v4417 = vpack.c.b16 %v3570, %v3569
    %v4418 = vpack.c.b16 %v3572, %v3571
    %v4419 = vpack.c.b16 %v3574, %v3573
    %v4420 = vpack.c.b16 %v3576, %v3575
    %v4421 = vpack.c.b16 %v3578, %v3577
    %v4422 = vpack.c.b16 %v3580, %v3579
    %v4423 = vpack.c.b16 %v3582, %v3581
    %v4424 = vpack.c.b16 %v3584, %v3583
    %v4425 = vpack.c.b16 %v3586, %v3585
    %v4426 = vpack.c.b16 %v3588, %v3587
    %v4427 = vpack.c.b16 %v3590, %v3589
    %v4428 = vpack.c.b16 %v3592, %v3591
    %v4429 = vpack.c.b16 %v3594, %v3593
    %v4430 = vpack.c.b16 %v3596, %v3595
    %v4431 = vpack.c.b16 %v3598, %v3597
    %v4432 = vpack.c.b16 %v3600, %v3599
    %v4433 = vpack.c.b16 %v3602, %v3601
    %v4434 = vpack.c.b16 %v3604, %v3603
    %v4435 = vpack.c.b16 %v3606, %v3605
    %v4436 = vpack.c.b16 %v3608, %v3607
    %v4437 = vpack.c.b16 %v3610, %v3609
    %v4438 = vpack.c.b16 %v3612, %v3611
    %v4439 = vpack.c.b16 %v3614, %v3613
    %v4440 = vpack.c.b16 %v3616, %v3615
    %v4441 = vpack.c.b16 %v3618, %v3617
    %v4442 = vpack.c.b16 %v3620, %v3619
    %v4443 = vpack.c.b16 %v3622, %v3621
    %v4444 = vpack.c.b16 %v3624, %v3623
    %v4445 = vpack.c.b16 %v3626, %v3625
    %v4446 = vpack.c.b16 %v3628, %v3627
    %v4447 = vpack.c.b16 %v3630, %v3629
    %v4448 = vpack.c.b16 %v3632, %v3631
    %v4449 = vpack.c.b16 %v3634, %v3633
    %v4450 = vpack.c.b16 %v3636, %v3635
    %v4451 = vpack.c.b16 %v3638, %v3637
    %v4452 = vpack.c.b16 %v3640, %v3639
    %v4453 = vpack.c.b16 %v3642, %v3641
    %v4454 = vpack.c.b16 %v3644, %v3643
    %v4455 = vpack.c.b16 %v3646, %v3645
    %v4456 = vpack.c.b16 %v3648, %v3647
    %v4457 = vpack.c.b16 %v3650, %v3649
    %v4458 = vpack.c.b16 %v3652, %v3651
    %v4459 = vpack.c.b16 %v3654, %v3653
    %v4460 = vpack.c.b16 %v3656, %v3655
    %v4461 = vpack.c.b16 %v3658, %v3657
    %v4462 = vpack.c.b16 %v3660, %v3659
    %v4463 = vpack.c.b16 %v3662, %v3661
    %v4464 = vpack.c.b16 %v3664, %v3663
    %v4465 = vpack.c.b16 %v3666, %v3665
    %v4466 = vpack.c.b16 %v3668, %v3667
    %v4467 = vpack.c.b16 %v3670, %v3669
    %v4468 = vpack.c.b16 %v3672, %v3671
    %v4469 = vpack.c.b16 %v3674, %v3673
    %v4470 = vpack.c.b16 %v3676, %v3675
    %v4471 = vpack.c.b16 %v3678, %v3677
    %v4472 = vpack.c.b16 %v3680, %v3679
    %v4473 = vpack.c.b16 %v3682, %v3681
    %v4474 = vpack.c.b16 %v3684, %v3683
    %v4475 = vpack.c.b16 %v3686, %v3685
    %v4476 = vpack.c.b16 %v3688, %v3687
    %v4477 = vpack.c.b16 %v3690, %v3689
    %v4478 = vpack.c.b16 %v3692, %v3691
    %v4479 = vpack.c.b16 %v3694, %v3693
    %v4480 = vpack.c.b16 %v3696, %v3695
    %v4481 = vpack.c.b16 %v3698, %v3697
    %v4482 = vpack.c.b16 %v3700, %v3699
    %v4483 = vpack.c.b16 %v3702, %v3701
    %v4484 = vpack.c.b16 %v3704, %v3703
    %v4485 = vpack.c.b16 %v3706, %v3705
    %v4486 = vpack.c.b16 %v3708, %v3707
    %v4487 = vpack.c.b16 %v3710, %v3709
    %v4488 = vpack.c.b16 %v3712, %v3711
    %v4489 = vpack.c.b16 %v3714, %v3713
    %v4490 = vpack.c.b16 %v3716, %v3715
    %v4491 = vpack.c.b16 %v3718, %v3717
    %v4492 = vpack.c.b16 %v3720, %v3719
    %v4493 = vpack.c.b16 %v3722, %v3721
    %v4494 = vpack.c.b16 %v3724, %v3723
    %v4495 = vpack.c.b16 %v3726, %v3725
    %v4496 = vpack.c.b16 %v3728, %v3727
    %v4497 = vpack.c.b16 %v3730, %v3729
    %v4498 = vpack.c.b16 %v3732, %v3731
    %v4499 = vpack.c.b16 %v3734, %v3733
    %v4500 = vpack.c.b16 %v3736, %v3735
    %v4501 = vpack.c.b16 %v3738, %v3737
    %v4502 = vpack.c.b16 %v3740, %v3739
    %v4503 = vpack.c.b16 %v3742, %v3741
    %v4504 = vpack.c.b16 %v3744, %v3743
    %v4505 = vpack.c.b16 %v3746, %v3745
    %v4506 = vpack.c.b16 %v3748, %v3747
    %v4507 = vpack.c.b16 %v3750, %v3749
    %v4508 = vpack.c.b16 %v3752, %v3751
    %v4509 = vpack.c.b16 %v3754, %v3753
    %v4510 = vpack.c.b16 %v3756, %v3755
    %v4511 = vpack.c.b16 %v3758, %v3757
    %v4512 = vpack.c.b16 %v3760, %v3759
    %v4513 = vpack.c.b16 %v3762, %v3761
    %v4514 = vpack.c.b16 %v3764, %v3763
    %v4515 = vpack.c.b16 %v3766, %v3765
    %v4516 = vpack.c.b16 %v3768, %v3767
    %v4517 = vpack.c.b16 %v3770, %v3769
    %v4518 = vpack.c.b16 %v3772, %v3771
    %v4519 = vpack.c.b16 %v3774, %v3773
    %v4520 = vpack.c.b16 %v3776, %v3775
    %v4521 = vpack.c.b16 %v3778, %v3777
    %v4522 = vpack.c.b16 %v3780, %v3779
    %v4523 = vpack.c.b16 %v3782, %v3781
    %v4524 = vpack.c.b16 %v3784, %v3783
    %v4525 = vpack.c.b16 %v3786, %v3785
    %v4526 = vpack.c.b16 %v3788, %v3787
    %v4527 = vpack.c.b16 %v3790, %v3789
    %v4528 = vpack.c.b16 %v3792, %v3791
    %v4529 = vpack.c.b16 %v3794, %v3793
    %v4530 = vpack.c.b16 %v3796, %v3795
    %v4531 = vpack.c.b16 %v3798, %v3797
    %v4532 = vpack.c.b16 %v3800, %v3799
    %v4533 = vpack.c.b16 %v3802, %v3801
    %v4534 = vpack.c.b16 %v3804, %v3803
    %v4535 = vpack.c.b16 %v3806, %v3805
    %v4536 = vpack.c.b16 %v3808, %v3807
    %v4537 = vpack.c.b16 %v3810, %v3809
    %v4538 = vpack.c.b16 %v3812, %v3811
    %v4539 = vpack.c.b16 %v3814, %v3813
    %v4540 = vpack.c.b16 %v3816, %v3815
    %v4541 = vpack.c.b16 %v3818, %v3817
    %v4542 = vpack.c.b16 %v3820, %v3819
    %v4543 = vpack.c.b16 %v3822, %v3821
    %v4544 = vpack.c.b16 %v3824, %v3823
    %v4545 = vpack.c.b16 %v3826, %v3825
    %v4546 = vpack.c.b16 %v3828, %v3827
    %v4547 = vpack.c.b16 %v3830, %v3829
    %v4548 = vpack.c.b16 %v3832, %v3831
    %v4549 = vpack.c.b16 %v3834, %v3833
    %v4550 = vpack.c.b16 %v3836, %v3835
    %v4551 = vpack.c.b16 %v3838, %v3837
    %v4552 = vpack.c.b16 %v3840, %v3839
    %v4553 = vpack.c.b16 %v3842, %v3841
    %v4554 = vpack.c.b16 %v3844, %v3843
    %v4555 = vpack.c.b16 %v3846, %v3845
    %v4556 = vpack.c.b16 %v3848, %v3847
    %v4557 = vpack.c.b16 %v3850, %v3849
    %v4558 = vpack.c.b16 %v3852, %v3851
    %v4559 = vpack.c.b16 %v3854, %v3853
    %v4560 = vpack.c.b16 %v3856, %v3855
    %v4561 = vpack.c.b16 %v3858, %v3857
    %v4562 = vpack.c.b16 %v3860, %v3859
    %v4563 = vpack.c.b16 %v3862, %v3861
    %v4564 = vpack.c.b16 %v3864, %v3863
    %v4565 = vpack.c.b16 %v3866, %v3865
    %v4566 = vpack.c.b16 %v3868, %v3867
    %v4567 = vpack.c.b16 %v3870, %v3869
    %v4568 = vpack.c.b16 %v3872, %v3871
    %v4569 = vpack.c.b16 %v3874, %v3873
    %v4570 = vpack.c.b16 %v3876, %v3875
    %v4571 = vpack.c.b16 %v3878, %v3877
    %v4572 = vpack.c.b16 %v3880, %v3879
    %v4573 = vpack.c.b16 %v3882, %v3881
    %v4574 = vpack.c.b16 %v3884, %v3883
    %v4575 = vpack.c.b16 %v3886, %v3885
    %v4576 = vpack.c.b16 %v3888, %v3887
    %v4577 = vpack.c.b16 %v3890, %v3889
    %v4578 = vpack.c.b16 %v3892, %v3891
    %v4579 = vpack.c.b16 %v3894, %v3893
    %v4580 = vpack.c.b16 %v3896, %v3895
    %v4581 = vpack.c.b16 %v3898, %v3897
    %v4582 = vpack.c.b16 %v3900, %v3899
    %v4583 = vpack.c.b16 %v3902, %v3901
    %v4584 = vpack.c.b16 %v3904, %v3903
    %v4585 = vpack.c.b16 %v3906, %v3905
    %v4586 = vpack.c.b16 %v3908, %v3907
    %v4587 = vpack.c.b16 %v3910, %v3909
    %v4588 = vpack.c.b16 %v3912, %v3911
    %v4589 = vpack.c.b16 %v3914, %v3913
    %v4590 = vpack.c.b16 %v3916, %v3915
    %v4591 = vpack.c.b16 %v3918, %v3917
    %v4592 = vpack.c.b16 %v3920, %v3919
    %v4593 = vpack.c.b16 %v3922, %v3921
    %v4594 = vpack.c.b16 %v3924, %v3923
    %v4595 = vpack.c.b16 %v3926, %v3925
    %v4596 = vpack.c.b16 %v3928, %v3927
    %v4597 = vpack.c.b16 %v3930, %v3929
    %v4598 = vpack.c.b16 %v3932, %v3931
    %v4599 = vpack.c.b16 %v3934, %v3933
    %v4600 = vpack.c.b16 %v3936, %v3935
    %v4601 = vpack.c.b16 %v3938, %v3937
    %v4602 = vpack.c.b16 %v3940, %v3939
    %v4603 = vpack.c.b16 %v3942, %v3941
    %v4604 = vpack.c.b16 %v3944, %v3943
    %v4605 = vpack.c.b16 %v3946, %v3945
    %v4606 = vpack.c.b16 %v3948, %v3947
    %v4607 = vpack.c.b16 %v3950, %v3949
    %v4608 = vpack.c.b16 %v3952, %v3951
    %v4609 = vpack.c.b16 %v3954, %v3953
    %v4610 = vpack.c.b16 %v3956, %v3955
    %v4611 = vpack.c.b16 %v3958, %v3957
    %v4612 = vpack.c.b16 %v3960, %v3959
    %v4613 = vpack.c.b16 %v3962, %v3961
    %v4614 = vpack.c.b16 %v3964, %v3963
    %v4615 = vpack.c.b16 %v3966, %v3965
    %v4616 = vpack.c.b16 %v3968, %v3967
    %v4617 = vpack.c.b16 %v3970, %v3969
    %v4618 = vpack.c.b16 %v3972, %v3971
    %v4619 = vpack.c.b16 %v3974, %v3973
    %v4620 = vpack.c.b16 %v3976, %v3975
    %v4621 = vpack.c.b16 %v3978, %v3977
    %v4622 = vpack.c.b16 %v3980, %v3979
    %v4623 = vpack.c.b16 %v3982, %v3981
    %v4624 = vpack.c.b16 %v3984, %v3983
    %v4625 = vpack.c.b16 %v3986, %v3985
    %v4626 = vpack.c.b16 %v3988, %v3987
    %v4627 = vpack.c.b16 %v3990, %v3989
    %v4628 = vpack.c.b16 %v3992, %v3991
    %v4629 = vpack.c.b16 %v3994, %v3993
    %v4630 = vpack.c.b16 %v3996, %v3995
    %v4631 = vpack.c.b16 %v3998, %v3997
    %v4632 = vpack.c.b16 %v4000, %v3999
    %v4633 = vpack.c.b16 %v4002, %v4001
    %v4634 = vpack.c.b16 %v4004, %v4003
    %v4635 = vpack.c.b16 %v4006, %v4005
    %v4636 = vpack.c.b16 %v4008, %v4007
    %v4637 = vpack.c.b16 %v4010, %v4009
    %v4638 = vpack.c.b16 %v4012, %v4011
    %v4639 = vpack.c.b16 %v4014, %v4013
    %v4640 = vpack.c.b16 %v4016, %v4015
    %v4641 = vpack.c.b16 %v4018, %v4017
    %v4642 = vpack.c.b16 %v4020, %v4019
    %v4643 = vpack.c.b16 %v4022, %v4021
    %v4644 = vpack.c.b16 %v4024, %v4023
    %v4645 = vpack.c.b16 %v4026, %v4025
    %v4646 = vpack.c.b16 %v4028, %v4027
    %v4647 = vpack.c.b16 %v4030, %v4029
    %v4648 = vpack.c.b16 %v4032, %v4031
    %v4649 = vpack.c.b16 %v4034, %v4033
    %v4650 = vpack.c.b16 %v4036, %v4035
    %v4651 = vpack.c.b16 %v4038, %v4037
    %v4652 = vpack.c.b16 %v4040, %v4039
    %v4653 = vpack.c.b16 %v4042, %v4041
    %v4654 = vpack.c.b16 %v4044, %v4043
    %v4655 = vpack.c.b16 %v4046, %v4045
    %v4656 = vpack.c.b16 %v4048, %v4047
    %v4657 = vpack.c.b16 %v4050, %v4049
    %v4658 = vpack.c.b16 %v4052, %v4051
    %v4659 = vpack.c.b16 %v4054, %v4053
    %v4660 = vpack.c.b16 %v4056, %v4055
    %v4661 = vpack.c.b16 %v4058, %v4057
    %v4662 = vpack.c.b16 %v4060, %v4059
    %v4663 = vpack.c.b16 %v4062, %v4061
    %v4664 = vpack.c.b16 %v4064, %v4063
    %v4665 = vpack.c.b16 %v4066, %v4065
    %v4666 = vpack.c.b16 %v4068, %v4067
    %v4667 = vpack.c.b16 %v4070, %v4069
    %v4668 = vpack.c.b16 %v4072, %v4071
    %v4669 = vpack.c.b16 %v4074, %v4073
    %v4670 = vpack.c.b16 %v4076, %v4075
    %v4671 = vpack.c.b16 %v4078, %v4077
    %v4672 = vpack.c.b16 %v4080, %v4079
    %v4673 = vpack.c.b16 %v4082, %v4081
    %v4674 = vpack.c.b16 %v4084, %v4083
    %v4675 = vpack.c.b16 %v4086, %v4085
    %v4676 = vpack.c.b16 %v4088, %v4087
    %vm5265 = vcmask 523264
    %v5267 = vsel %vm5265, %v556, 0
    %5269 = vmatpush.bf16.msra.mxu0 %v4096
    %5270 = vmatpush.bf16.msra.mxu0 %v4095
    %5271 = vmatpush.bf16.msra.mxu0 %v4094
    %5272 = vmatpush.bf16.msra.mxu0 %v4093
    %5273 = vmatpush.bf16.msra.mxu0 %v4092
    %5274 = vmatpush.bf16.msra.mxu0 %v4091
    %5275 = vmatpush.bf16.msra.mxu0 %v4090
    %5276 = vmatpush.bf16.msra.mxu0 %v4089
    %5277 = vmatmul.bf16.gmra.mxu0 %v483
    %v5278 = vpop.f32.mrf.mxu0
    %v5279 = vadd.f32 %v1735, %v5278
    %v5280 = vpop.f32.mrf.mxu0
    %5281 = vdwg.mxu0
    %5282 = vmatpush.bf16.msra.mxu0 %v4104
    %5283 = vmatpush.bf16.msra.mxu0 %v4103
    %5284 = vmatpush.bf16.msra.mxu0 %v4102
    %5285 = vmatpush.bf16.msra.mxu0 %v4101
    %5286 = vmatpush.bf16.msra.mxu0 %v4100
    %5287 = vmatpush.bf16.msra.mxu0 %v4099
    %5288 = vmatpush.bf16.msra.mxu0 %v4098
    %5289 = vmatpush.bf16.msra.mxu0 %v4097
    %5290 = vmatmul.bf16.gmra.mxu0 %v484
    %v5291 = vpop.f32.mrf.mxu0
    %v5292 = vadd.f32 %v5279, %v5291
    %v5293 = vpop.f32.mrf.mxu0
    %5294 = vdwg.mxu0
    %5295 = vmatpush.bf16.msra.mxu0 %v4112
    %5296 = vmatpush.bf16.msra.mxu0 %v4111
    %5297 = vmatpush.bf16.msra.mxu0 %v4110
    %5298 = vmatpush.bf16.msra.mxu0 %v4109
    %5299 = vmatpush.bf16.msra.mxu0 %v4108
    %5300 = vmatpush.bf16.msra.mxu0 %v4107
    %5301 = vmatpush.bf16.msra.mxu0 %v4106
    %5302 = vmatpush.bf16.msra.mxu0 %v4105
    %5303 = vmatmul.bf16.gmra.mxu0 %v485
    %v5304 = vpop.f32.mrf.mxu0
    %v5305 = vadd.f32 %v5292, %v5304
    %v5306 = vpop.f32.mrf.mxu0
    %5307 = vdwg.mxu0
    %5308 = vmatpush.bf16.msra.mxu0 %v4120
    %5309 = vmatpush.bf16.msra.mxu0 %v4119
    %5310 = vmatpush.bf16.msra.mxu0 %v4118
    %5311 = vmatpush.bf16.msra.mxu0 %v4117
    %5312 = vmatpush.bf16.msra.mxu0 %v4116
    %5313 = vmatpush.bf16.msra.mxu0 %v4115
    %5314 = vmatpush.bf16.msra.mxu0 %v4114
    %5315 = vmatpush.bf16.msra.mxu0 %v4113
    %5316 = vmatmul.bf16.gmra.mxu0 %v486
    %v5317 = vpop.f32.mrf.mxu0
    %v5318 = vadd.f32 %v5305, %v5317
    %v5319 = vpop.f32.mrf.mxu0
    %5320 = vdwg.mxu0
    %5321 = vmatpush.bf16.msra.mxu0 %v4128
    %5322 = vmatpush.bf16.msra.mxu0 %v4127
    %5323 = vmatpush.bf16.msra.mxu0 %v4126
    %5324 = vmatpush.bf16.msra.mxu0 %v4125
    %5325 = vmatpush.bf16.msra.mxu0 %v4124
    %5326 = vmatpush.bf16.msra.mxu0 %v4123
    %5327 = vmatpush.bf16.msra.mxu0 %v4122
    %5328 = vmatpush.bf16.msra.mxu0 %v4121
    %5329 = vmatmul.bf16.gmra.mxu0 %v487
    %v5330 = vpop.f32.mrf.mxu0
    %v5331 = vadd.f32 %v5318, %v5330
    %v5332 = vpop.f32.mrf.mxu0
    %5333 = vdwg.mxu0
    %5334 = vmatpush.bf16.msra.mxu0 %v4136
    %5335 = vmatpush.bf16.msra.mxu0 %v4135
    %5336 = vmatpush.bf16.msra.mxu0 %v4134
    %5337 = vmatpush.bf16.msra.mxu0 %v4133
    %5338 = vmatpush.bf16.msra.mxu0 %v4132
    %5339 = vmatpush.bf16.msra.mxu0 %v4131
    %5340 = vmatpush.bf16.msra.mxu0 %v4130
    %5341 = vmatpush.bf16.msra.mxu0 %v4129
    %5342 = vmatmul.bf16.gmra.mxu0 %v488
    %v5343 = vpop.f32.mrf.mxu0
    %v5344 = vadd.f32 %v5331, %v5343
    %v5345 = vpop.f32.mrf.mxu0
    %5346 = vdwg.mxu0
    %5347 = vmatpush.bf16.msra.mxu0 %v4144
    %5348 = vmatpush.bf16.msra.mxu0 %v4143
    %5349 = vmatpush.bf16.msra.mxu0 %v4142
    %5350 = vmatpush.bf16.msra.mxu0 %v4141
    %5351 = vmatpush.bf16.msra.mxu0 %v4140
    %5352 = vmatpush.bf16.msra.mxu0 %v4139
    %5353 = vmatpush.bf16.msra.mxu0 %v4138
    %5354 = vmatpush.bf16.msra.mxu0 %v4137
    %5355 = vmatmul.bf16.gmra.mxu0 %v489
    %v5356 = vpop.f32.mrf.mxu0
    %v5357 = vadd.f32 %v5344, %v5356
    %v5358 = vpop.f32.mrf.mxu0
    %5359 = vdwg.mxu0
    %5360 = vmatpush.bf16.msra.mxu0 %v4152
    %5361 = vmatpush.bf16.msra.mxu0 %v4151
    %5362 = vmatpush.bf16.msra.mxu0 %v4150
    %5363 = vmatpush.bf16.msra.mxu0 %v4149
    %5364 = vmatpush.bf16.msra.mxu0 %v4148
    %5365 = vmatpush.bf16.msra.mxu0 %v4147
    %5366 = vmatpush.bf16.msra.mxu0 %v4146
    %5367 = vmatpush.bf16.msra.mxu0 %v4145
    %5368 = vmatmul.bf16.gmra.mxu0 %v490
    %v5369 = vpop.f32.mrf.mxu0
    %v5370 = vadd.f32 %v5357, %v5369
    %v5371 = vpop.f32.mrf.mxu0
    %5372 = vdwg.mxu0
    %5373 = vmatpush.bf16.msra.mxu0 %v4160
    %5374 = vmatpush.bf16.msra.mxu0 %v4159
    %5375 = vmatpush.bf16.msra.mxu0 %v4158
    %5376 = vmatpush.bf16.msra.mxu0 %v4157
    %5377 = vmatpush.bf16.msra.mxu0 %v4156
    %5378 = vmatpush.bf16.msra.mxu0 %v4155
    %5379 = vmatpush.bf16.msra.mxu0 %v4154
    %5380 = vmatpush.bf16.msra.mxu0 %v4153
    %5381 = vmatmul.bf16.gmra.mxu0 %v491
    %v5382 = vpop.f32.mrf.mxu0
    %v5383 = vadd.f32 %v5370, %v5382
    %v5384 = vpop.f32.mrf.mxu0
    %5385 = vdwg.mxu0
    %5386 = vmatpush.bf16.msra.mxu0 %v4168
    %5387 = vmatpush.bf16.msra.mxu0 %v4167
    %5388 = vmatpush.bf16.msra.mxu0 %v4166
    %5389 = vmatpush.bf16.msra.mxu0 %v4165
    %5390 = vmatpush.bf16.msra.mxu0 %v4164
    %5391 = vmatpush.bf16.msra.mxu0 %v4163
    %5392 = vmatpush.bf16.msra.mxu0 %v4162
    %5393 = vmatpush.bf16.msra.mxu0 %v4161
    %5394 = vmatmul.bf16.gmra.mxu0 %v492
    %v5395 = vpop.f32.mrf.mxu0
    %v5396 = vadd.f32 %v5383, %v5395
    %v5397 = vpop.f32.mrf.mxu0
    %5398 = vdwg.mxu0
    %5399 = vmatpush.bf16.msra.mxu0 %v4176
    %5400 = vmatpush.bf16.msra.mxu0 %v4175
    %5401 = vmatpush.bf16.msra.mxu0 %v4174
    %5402 = vmatpush.bf16.msra.mxu0 %v4173
    %5403 = vmatpush.bf16.msra.mxu0 %v4172
    %5404 = vmatpush.bf16.msra.mxu0 %v4171
    %5405 = vmatpush.bf16.msra.mxu0 %v4170
    %5406 = vmatpush.bf16.msra.mxu0 %v4169
    %5407 = vmatmul.bf16.gmra.mxu0 %v493
    %v5408 = vpop.f32.mrf.mxu0
    %v5409 = vadd.f32 %v5396, %v5408
    %v5410 = vpop.f32.mrf.mxu0
    %5411 = vdwg.mxu0
    %5412 = vmatpush.bf16.msra.mxu0 %v4184
    %5413 = vmatpush.bf16.msra.mxu0 %v4183
    %5414 = vmatpush.bf16.msra.mxu0 %v4182
    %5415 = vmatpush.bf16.msra.mxu0 %v4181
    %5416 = vmatpush.bf16.msra.mxu0 %v4180
    %5417 = vmatpush.bf16.msra.mxu0 %v4179
    %5418 = vmatpush.bf16.msra.mxu0 %v4178
    %5419 = vmatpush.bf16.msra.mxu0 %v4177
    %5420 = vmatmul.bf16.gmra.mxu0 %v494
    %v5421 = vpop.f32.mrf.mxu0
    %v5422 = vadd.f32 %v5409, %v5421
    %v5423 = vpop.f32.mrf.mxu0
    %5424 = vdwg.mxu0
    %5425 = vmatpush.bf16.msra.mxu0 %v4192
    %5426 = vmatpush.bf16.msra.mxu0 %v4191
    %5427 = vmatpush.bf16.msra.mxu0 %v4190
    %5428 = vmatpush.bf16.msra.mxu0 %v4189
    %5429 = vmatpush.bf16.msra.mxu0 %v4188
    %5430 = vmatpush.bf16.msra.mxu0 %v4187
    %5431 = vmatpush.bf16.msra.mxu0 %v4186
    %5432 = vmatpush.bf16.msra.mxu0 %v4185
    %5433 = vmatmul.bf16.gmra.mxu0 %v495
    %v5434 = vpop.f32.mrf.mxu0
    %v5435 = vadd.f32 %v5422, %v5434
    %v5436 = vpop.f32.mrf.mxu0
    %5437 = vdwg.mxu0
    %5438 = vmatpush.bf16.msra.mxu0 %v4200
    %5439 = vmatpush.bf16.msra.mxu0 %v4199
    %5440 = vmatpush.bf16.msra.mxu0 %v4198
    %5441 = vmatpush.bf16.msra.mxu0 %v4197
    %5442 = vmatpush.bf16.msra.mxu0 %v4196
    %5443 = vmatpush.bf16.msra.mxu0 %v4195
    %5444 = vmatpush.bf16.msra.mxu0 %v4194
    %5445 = vmatpush.bf16.msra.mxu0 %v4193
    %5446 = vmatmul.bf16.gmra.mxu0 %v496
    %v5447 = vpop.f32.mrf.mxu0
    %v5448 = vadd.f32 %v5435, %v5447
    %v5449 = vpop.f32.mrf.mxu0
    %5450 = vdwg.mxu0
    %5451 = vmatpush.bf16.msra.mxu0 %v4208
    %5452 = vmatpush.bf16.msra.mxu0 %v4207
    %5453 = vmatpush.bf16.msra.mxu0 %v4206
    %5454 = vmatpush.bf16.msra.mxu0 %v4205
    %5455 = vmatpush.bf16.msra.mxu0 %v4204
    %5456 = vmatpush.bf16.msra.mxu0 %v4203
    %5457 = vmatpush.bf16.msra.mxu0 %v4202
    %5458 = vmatpush.bf16.msra.mxu0 %v4201
    %5459 = vmatmul.bf16.gmra.mxu0 %v497
    %v5460 = vpop.f32.mrf.mxu0
    %v5461 = vadd.f32 %v5448, %v5460
    %v5462 = vpop.f32.mrf.mxu0
    %5463 = vdwg.mxu0
    %5464 = vmatpush.bf16.msra.mxu0 %v4216
    %5465 = vmatpush.bf16.msra.mxu0 %v4215
    %5466 = vmatpush.bf16.msra.mxu0 %v4214
    %5467 = vmatpush.bf16.msra.mxu0 %v4213
    %5468 = vmatpush.bf16.msra.mxu0 %v4212
    %5469 = vmatpush.bf16.msra.mxu0 %v4211
    %5470 = vmatpush.bf16.msra.mxu0 %v4210
    %5471 = vmatpush.bf16.msra.mxu0 %v4209
    %5472 = vmatmul.bf16.gmra.mxu0 %v498
    %v5473 = vpop.f32.mrf.mxu0
    %v5474 = vadd.f32 %v5461, %v5473
    %v5475 = vpop.f32.mrf.mxu0
    %5476 = vdwg.mxu0
    %5477 = vmatpush.bf16.msra.mxu0 %v4224
    %5478 = vmatpush.bf16.msra.mxu0 %v4223
    %5479 = vmatpush.bf16.msra.mxu0 %v4222
    %5480 = vmatpush.bf16.msra.mxu0 %v4221
    %5481 = vmatpush.bf16.msra.mxu0 %v4220
    %5482 = vmatpush.bf16.msra.mxu0 %v4219
    %5483 = vmatpush.bf16.msra.mxu0 %v4218
    %5484 = vmatpush.bf16.msra.mxu0 %v4217
    %5485 = vmatmul.bf16.gmra.mxu0 %v499
    %v5486 = vpop.f32.mrf.mxu0
    %v5487 = vadd.f32 %v5474, %v5486
    %v5488 = vpop.f32.mrf.mxu0
    %5489 = vdwg.mxu0
    %5490 = vmatpush.bf16.msra.mxu0 %v4232
    %5491 = vmatpush.bf16.msra.mxu0 %v4231
    %5492 = vmatpush.bf16.msra.mxu0 %v4230
    %5493 = vmatpush.bf16.msra.mxu0 %v4229
    %5494 = vmatpush.bf16.msra.mxu0 %v4228
    %5495 = vmatpush.bf16.msra.mxu0 %v4227
    %5496 = vmatpush.bf16.msra.mxu0 %v4226
    %5497 = vmatpush.bf16.msra.mxu0 %v4225
    %5498 = vmatmul.bf16.gmra.mxu0 %v500
    %v5499 = vpop.f32.mrf.mxu0
    %v5500 = vadd.f32 %v5487, %v5499
    %v5501 = vpop.f32.mrf.mxu0
    %5502 = vdwg.mxu0
    %5503 = vmatpush.bf16.msra.mxu0 %v4240
    %5504 = vmatpush.bf16.msra.mxu0 %v4239
    %5505 = vmatpush.bf16.msra.mxu0 %v4238
    %5506 = vmatpush.bf16.msra.mxu0 %v4237
    %5507 = vmatpush.bf16.msra.mxu0 %v4236
    %5508 = vmatpush.bf16.msra.mxu0 %v4235
    %5509 = vmatpush.bf16.msra.mxu0 %v4234
    %5510 = vmatpush.bf16.msra.mxu0 %v4233
    %5511 = vmatmul.bf16.gmra.mxu0 %v501
    %v5512 = vpop.f32.mrf.mxu0
    %v5513 = vadd.f32 %v5500, %v5512
    %v5514 = vpop.f32.mrf.mxu0
    %5515 = vdwg.mxu0
    %5516 = vmatpush.bf16.msra.mxu0 %v4248
    %5517 = vmatpush.bf16.msra.mxu0 %v4247
    %5518 = vmatpush.bf16.msra.mxu0 %v4246
    %5519 = vmatpush.bf16.msra.mxu0 %v4245
    %5520 = vmatpush.bf16.msra.mxu0 %v4244
    %5521 = vmatpush.bf16.msra.mxu0 %v4243
    %5522 = vmatpush.bf16.msra.mxu0 %v4242
    %5523 = vmatpush.bf16.msra.mxu0 %v4241
    %5524 = vmatmul.bf16.gmra.mxu0 %v502
    %v5525 = vpop.f32.mrf.mxu0
    %v5526 = vadd.f32 %v5513, %v5525
    %v5527 = vpop.f32.mrf.mxu0
    %5528 = vdwg.mxu0
    %5529 = vmatpush.bf16.msra.mxu0 %v4256
    %5530 = vmatpush.bf16.msra.mxu0 %v4255
    %5531 = vmatpush.bf16.msra.mxu0 %v4254
    %5532 = vmatpush.bf16.msra.mxu0 %v4253
    %5533 = vmatpush.bf16.msra.mxu0 %v4252
    %5534 = vmatpush.bf16.msra.mxu0 %v4251
    %5535 = vmatpush.bf16.msra.mxu0 %v4250
    %5536 = vmatpush.bf16.msra.mxu0 %v4249
    %5537 = vmatmul.bf16.gmra.mxu0 %v503
    %v5538 = vpop.f32.mrf.mxu0
    %v5539 = vadd.f32 %v5526, %v5538
    %v5540 = vpop.f32.mrf.mxu0
    %5541 = vdwg.mxu0
    %5542 = vmatpush.bf16.msra.mxu0 %v4264
    %5543 = vmatpush.bf16.msra.mxu0 %v4263
    %5544 = vmatpush.bf16.msra.mxu0 %v4262
    %5545 = vmatpush.bf16.msra.mxu0 %v4261
    %5546 = vmatpush.bf16.msra.mxu0 %v4260
    %5547 = vmatpush.bf16.msra.mxu0 %v4259
    %5548 = vmatpush.bf16.msra.mxu0 %v4258
    %5549 = vmatpush.bf16.msra.mxu0 %v4257
    %5550 = vmatmul.bf16.gmra.mxu0 %v504
    %v5551 = vpop.f32.mrf.mxu0
    %v5552 = vadd.f32 %v5539, %v5551
    %v5553 = vpop.f32.mrf.mxu0
    %5554 = vdwg.mxu0
    %5555 = vmatpush.bf16.msra.mxu0 %v4272
    %5556 = vmatpush.bf16.msra.mxu0 %v4271
    %5557 = vmatpush.bf16.msra.mxu0 %v4270
    %5558 = vmatpush.bf16.msra.mxu0 %v4269
    %5559 = vmatpush.bf16.msra.mxu0 %v4268
    %5560 = vmatpush.bf16.msra.mxu0 %v4267
    %5561 = vmatpush.bf16.msra.mxu0 %v4266
    %5562 = vmatpush.bf16.msra.mxu0 %v4265
    %5563 = vmatmul.bf16.gmra.mxu0 %v505
    %v5564 = vpop.f32.mrf.mxu0
    %v5565 = vadd.f32 %v5552, %v5564
    %v5566 = vpop.f32.mrf.mxu0
    %5567 = vdwg.mxu0
    %5568 = vmatpush.bf16.msra.mxu0 %v4280
    %5569 = vmatpush.bf16.msra.mxu0 %v4279
    %5570 = vmatpush.bf16.msra.mxu0 %v4278
    %5571 = vmatpush.bf16.msra.mxu0 %v4277
    %5572 = vmatpush.bf16.msra.mxu0 %v4276
    %5573 = vmatpush.bf16.msra.mxu0 %v4275
    %5574 = vmatpush.bf16.msra.mxu0 %v4274
    %5575 = vmatpush.bf16.msra.mxu0 %v4273
    %5576 = vmatmul.bf16.gmra.mxu0 %v506
    %v5577 = vpop.f32.mrf.mxu0
    %v5578 = vadd.f32 %v5565, %v5577
    %v5579 = vpop.f32.mrf.mxu0
    %5580 = vdwg.mxu0
    %5581 = vmatpush.bf16.msra.mxu0 %v4288
    %5582 = vmatpush.bf16.msra.mxu0 %v4287
    %5583 = vmatpush.bf16.msra.mxu0 %v4286
    %5584 = vmatpush.bf16.msra.mxu0 %v4285
    %5585 = vmatpush.bf16.msra.mxu0 %v4284
    %5586 = vmatpush.bf16.msra.mxu0 %v4283
    %5587 = vmatpush.bf16.msra.mxu0 %v4282
    %5588 = vmatpush.bf16.msra.mxu0 %v4281
    %5589 = vmatmul.bf16.gmra.mxu0 %v507
    %v5590 = vpop.f32.mrf.mxu0
    %v5591 = vadd.f32 %v5578, %v5590
    %v5592 = vpop.f32.mrf.mxu0
    %5593 = vdwg.mxu0
    %5594 = vmatpush.bf16.msra.mxu0 %v4296
    %5595 = vmatpush.bf16.msra.mxu0 %v4295
    %5596 = vmatpush.bf16.msra.mxu0 %v4294
    %5597 = vmatpush.bf16.msra.mxu0 %v4293
    %5598 = vmatpush.bf16.msra.mxu0 %v4292
    %5599 = vmatpush.bf16.msra.mxu0 %v4291
    %5600 = vmatpush.bf16.msra.mxu0 %v4290
    %5601 = vmatpush.bf16.msra.mxu0 %v4289
    %5602 = vmatmul.bf16.gmra.mxu0 %v508
    %v5603 = vpop.f32.mrf.mxu0
    %v5604 = vadd.f32 %v5591, %v5603
    %v5605 = vpop.f32.mrf.mxu0
    %5606 = vdwg.mxu0
    %5607 = vmatpush.bf16.msra.mxu0 %v4304
    %5608 = vmatpush.bf16.msra.mxu0 %v4303
    %5609 = vmatpush.bf16.msra.mxu0 %v4302
    %5610 = vmatpush.bf16.msra.mxu0 %v4301
    %5611 = vmatpush.bf16.msra.mxu0 %v4300
    %5612 = vmatpush.bf16.msra.mxu0 %v4299
    %5613 = vmatpush.bf16.msra.mxu0 %v4298
    %5614 = vmatpush.bf16.msra.mxu0 %v4297
    %5615 = vmatmul.bf16.gmra.mxu0 %v509
    %v5616 = vpop.f32.mrf.mxu0
    %v5617 = vadd.f32 %v5604, %v5616
    %v5618 = vpop.f32.mrf.mxu0
    %5619 = vdwg.mxu0
    %5620 = vmatpush.bf16.msra.mxu0 %v4312
    %5621 = vmatpush.bf16.msra.mxu0 %v4311
    %5622 = vmatpush.bf16.msra.mxu0 %v4310
    %5623 = vmatpush.bf16.msra.mxu0 %v4309
    %5624 = vmatpush.bf16.msra.mxu0 %v4308
    %5625 = vmatpush.bf16.msra.mxu0 %v4307
    %5626 = vmatpush.bf16.msra.mxu0 %v4306
    %5627 = vmatpush.bf16.msra.mxu0 %v4305
    %5628 = vmatmul.bf16.gmra.mxu0 %v510
    %v5629 = vpop.f32.mrf.mxu0
    %v5630 = vadd.f32 %v5617, %v5629
    %v5631 = vpop.f32.mrf.mxu0
    %5632 = vdwg.mxu0
    %5633 = vmatpush.bf16.msra.mxu0 %v4320
    %5634 = vmatpush.bf16.msra.mxu0 %v4319
    %5635 = vmatpush.bf16.msra.mxu0 %v4318
    %5636 = vmatpush.bf16.msra.mxu0 %v4317
    %5637 = vmatpush.bf16.msra.mxu0 %v4316
    %5638 = vmatpush.bf16.msra.mxu0 %v4315
    %5639 = vmatpush.bf16.msra.mxu0 %v4314
    %5640 = vmatpush.bf16.msra.mxu0 %v4313
    %5641 = vmatmul.bf16.gmra.mxu0 %v511
    %v5642 = vpop.f32.mrf.mxu0
    %v5643 = vadd.f32 %v5630, %v5642
    %v5644 = vpop.f32.mrf.mxu0
    %5645 = vdwg.mxu0
    %5646 = vmatpush.bf16.msra.mxu0 %v4328
    %5647 = vmatpush.bf16.msra.mxu0 %v4327
    %5648 = vmatpush.bf16.msra.mxu0 %v4326
    %5649 = vmatpush.bf16.msra.mxu0 %v4325
    %5650 = vmatpush.bf16.msra.mxu0 %v4324
    %5651 = vmatpush.bf16.msra.mxu0 %v4323
    %5652 = vmatpush.bf16.msra.mxu0 %v4322
    %5653 = vmatpush.bf16.msra.mxu0 %v4321
    %5654 = vmatmul.bf16.gmra.mxu0 %v512
    %v5655 = vpop.f32.mrf.mxu0
    %v5656 = vadd.f32 %v5643, %v5655
    %v5657 = vpop.f32.mrf.mxu0
    %5658 = vdwg.mxu0
    %5659 = vmatpush.bf16.msra.mxu0 %v4336
    %5660 = vmatpush.bf16.msra.mxu0 %v4335
    %5661 = vmatpush.bf16.msra.mxu0 %v4334
    %5662 = vmatpush.bf16.msra.mxu0 %v4333
    %5663 = vmatpush.bf16.msra.mxu0 %v4332
    %5664 = vmatpush.bf16.msra.mxu0 %v4331
    %5665 = vmatpush.bf16.msra.mxu0 %v4330
    %5666 = vmatpush.bf16.msra.mxu0 %v4329
    %5667 = vmatmul.bf16.gmra.mxu0 %v513
    %v5668 = vpop.f32.mrf.mxu0
    %v5669 = vadd.f32 %v5656, %v5668
    %v5670 = vpop.f32.mrf.mxu0
    %5671 = vdwg.mxu0
    %5672 = vmatpush.bf16.msra.mxu0 %v4344
    %5673 = vmatpush.bf16.msra.mxu0 %v4343
    %5674 = vmatpush.bf16.msra.mxu0 %v4342
    %5675 = vmatpush.bf16.msra.mxu0 %v4341
    %5676 = vmatpush.bf16.msra.mxu0 %v4340
    %5677 = vmatpush.bf16.msra.mxu0 %v4339
    %5678 = vmatpush.bf16.msra.mxu0 %v4338
    %5679 = vmatpush.bf16.msra.mxu0 %v4337
    %5680 = vmatmul.bf16.gmra.mxu0 %v514
    %v5681 = vpop.f32.mrf.mxu0
    %v5682 = vadd.f32 %v5669, %v5681
    %v5683 = vpop.f32.mrf.mxu0
    %5684 = vdwg.mxu0
    %5685 = vmatpush.bf16.msra.mxu0 %v4352
    %5686 = vmatpush.bf16.msra.mxu0 %v4351
    %5687 = vmatpush.bf16.msra.mxu0 %v4350
    %5688 = vmatpush.bf16.msra.mxu0 %v4349
    %5689 = vmatpush.bf16.msra.mxu0 %v4348
    %5690 = vmatpush.bf16.msra.mxu0 %v4347
    %5691 = vmatpush.bf16.msra.mxu0 %v4346
    %5692 = vmatpush.bf16.msra.mxu0 %v4345
    %5693 = vmatmul.bf16.gmra.mxu0 %v515
    %v5694 = vpop.f32.mrf.mxu0
    %v5695 = vadd.f32 %v5682, %v5694
    %v5696 = vpop.f32.mrf.mxu0
    %5697 = vdwg.mxu0
    %5698 = vmatpush.bf16.msra.mxu0 %v4360
    %5699 = vmatpush.bf16.msra.mxu0 %v4359
    %5700 = vmatpush.bf16.msra.mxu0 %v4358
    %5701 = vmatpush.bf16.msra.mxu0 %v4357
    %5702 = vmatpush.bf16.msra.mxu0 %v4356
    %5703 = vmatpush.bf16.msra.mxu0 %v4355
    %5704 = vmatpush.bf16.msra.mxu0 %v4354
    %5705 = vmatpush.bf16.msra.mxu0 %v4353
    %5706 = vmatmul.bf16.gmra.mxu0 %v516
    %v5707 = vpop.f32.mrf.mxu0
    %v5708 = vadd.f32 %v5695, %v5707
    %v5709 = vpop.f32.mrf.mxu0
    %5710 = vdwg.mxu0
    %5711 = vmatpush.bf16.msra.mxu0 %v4368
    %5712 = vmatpush.bf16.msra.mxu0 %v4367
    %5713 = vmatpush.bf16.msra.mxu0 %v4366
    %5714 = vmatpush.bf16.msra.mxu0 %v4365
    %5715 = vmatpush.bf16.msra.mxu0 %v4364
    %5716 = vmatpush.bf16.msra.mxu0 %v4363
    %5717 = vmatpush.bf16.msra.mxu0 %v4362
    %5718 = vmatpush.bf16.msra.mxu0 %v4361
    %5719 = vmatmul.bf16.gmra.mxu0 %v517
    %v5720 = vpop.f32.mrf.mxu0
    %v5721 = vadd.f32 %v5708, %v5720
    %v5722 = vpop.f32.mrf.mxu0
    %5723 = vdwg.mxu0
    %5724 = vmatpush.bf16.msra.mxu0 %v4376
    %5725 = vmatpush.bf16.msra.mxu0 %v4375
    %5726 = vmatpush.bf16.msra.mxu0 %v4374
    %5727 = vmatpush.bf16.msra.mxu0 %v4373
    %5728 = vmatpush.bf16.msra.mxu0 %v4372
    %5729 = vmatpush.bf16.msra.mxu0 %v4371
    %5730 = vmatpush.bf16.msra.mxu0 %v4370
    %5731 = vmatpush.bf16.msra.mxu0 %v4369
    %5732 = vmatmul.bf16.gmra.mxu0 %v518
    %v5733 = vpop.f32.mrf.mxu0
    %v5734 = vadd.f32 %v5721, %v5733
    %v5735 = vpop.f32.mrf.mxu0
    %5736 = vdwg.mxu0
    %5737 = vmatpush.bf16.msra.mxu0 %v4384
    %5738 = vmatpush.bf16.msra.mxu0 %v4383
    %5739 = vmatpush.bf16.msra.mxu0 %v4382
    %5740 = vmatpush.bf16.msra.mxu0 %v4381
    %5741 = vmatpush.bf16.msra.mxu0 %v4380
    %5742 = vmatpush.bf16.msra.mxu0 %v4379
    %5743 = vmatpush.bf16.msra.mxu0 %v4378
    %5744 = vmatpush.bf16.msra.mxu0 %v4377
    %5745 = vmatmul.bf16.gmra.mxu0 %v519
    %v5746 = vpop.f32.mrf.mxu0
    %v5747 = vadd.f32 %v5734, %v5746
    %v5748 = vpop.f32.mrf.mxu0
    %5749 = vdwg.mxu0
    %5750 = vmatpush.bf16.msra.mxu0 %v4392
    %5751 = vmatpush.bf16.msra.mxu0 %v4391
    %5752 = vmatpush.bf16.msra.mxu0 %v4390
    %5753 = vmatpush.bf16.msra.mxu0 %v4389
    %5754 = vmatpush.bf16.msra.mxu0 %v4388
    %5755 = vmatpush.bf16.msra.mxu0 %v4387
    %5756 = vmatpush.bf16.msra.mxu0 %v4386
    %5757 = vmatpush.bf16.msra.mxu0 %v4385
    %5758 = vmatmul.bf16.gmra.mxu0 %v520
    %v5759 = vpop.f32.mrf.mxu0
    %v5760 = vadd.f32 %v5747, %v5759
    %v5761 = vpop.f32.mrf.mxu0
    %5762 = vdwg.mxu0
    %5763 = vmatpush.bf16.msra.mxu0 %v4400
    %5764 = vmatpush.bf16.msra.mxu0 %v4399
    %5765 = vmatpush.bf16.msra.mxu0 %v4398
    %5766 = vmatpush.bf16.msra.mxu0 %v4397
    %5767 = vmatpush.bf16.msra.mxu0 %v4396
    %5768 = vmatpush.bf16.msra.mxu0 %v4395
    %5769 = vmatpush.bf16.msra.mxu0 %v4394
    %5770 = vmatpush.bf16.msra.mxu0 %v4393
    %5771 = vmatmul.bf16.gmra.mxu0 %v521
    %v5772 = vpop.f32.mrf.mxu0
    %v5773 = vadd.f32 %v5760, %v5772
    %v5774 = vpop.f32.mrf.mxu0
    %5775 = vdwg.mxu0
    %5776 = vmatpush.bf16.msra.mxu0 %v4408
    %5777 = vmatpush.bf16.msra.mxu0 %v4407
    %5778 = vmatpush.bf16.msra.mxu0 %v4406
    %5779 = vmatpush.bf16.msra.mxu0 %v4405
    %5780 = vmatpush.bf16.msra.mxu0 %v4404
    %5781 = vmatpush.bf16.msra.mxu0 %v4403
    %5782 = vmatpush.bf16.msra.mxu0 %v4402
    %5783 = vmatpush.bf16.msra.mxu0 %v4401
    %5784 = vmatmul.bf16.gmra.mxu0 %v522
    %v5785 = vpop.f32.mrf.mxu0
    %v5786 = vadd.f32 %v5773, %v5785
    %v5787 = vpop.f32.mrf.mxu0
    %5788 = vdwg.mxu0
    %5789 = vmatpush.bf16.msra.mxu0 %v4416
    %5790 = vmatpush.bf16.msra.mxu0 %v4415
    %5791 = vmatpush.bf16.msra.mxu0 %v4414
    %5792 = vmatpush.bf16.msra.mxu0 %v4413
    %5793 = vmatpush.bf16.msra.mxu0 %v4412
    %5794 = vmatpush.bf16.msra.mxu0 %v4411
    %5795 = vmatpush.bf16.msra.mxu0 %v4410
    %5796 = vmatpush.bf16.msra.mxu0 %v4409
    %5797 = vmatmul.bf16.gmra.mxu0 %v523
    %v5798 = vpop.f32.mrf.mxu0
    %v5799 = vadd.f32 %v5786, %v5798
    %v5800 = vpop.f32.mrf.mxu0
    %5801 = vdwg.mxu0
    %5802 = vmatpush.bf16.msra.mxu0 %v4424
    %5803 = vmatpush.bf16.msra.mxu0 %v4423
    %5804 = vmatpush.bf16.msra.mxu0 %v4422
    %5805 = vmatpush.bf16.msra.mxu0 %v4421
    %5806 = vmatpush.bf16.msra.mxu0 %v4420
    %5807 = vmatpush.bf16.msra.mxu0 %v4419
    %5808 = vmatpush.bf16.msra.mxu0 %v4418
    %5809 = vmatpush.bf16.msra.mxu0 %v4417
    %5810 = vmatmul.bf16.gmra.mxu0 %v524
    %v5811 = vpop.f32.mrf.mxu0
    %v5812 = vadd.f32 %v5799, %v5811
    %v5813 = vpop.f32.mrf.mxu0
    %5814 = vdwg.mxu0
    %5815 = vmatpush.bf16.msra.mxu0 %v4432
    %5816 = vmatpush.bf16.msra.mxu0 %v4431
    %5817 = vmatpush.bf16.msra.mxu0 %v4430
    %5818 = vmatpush.bf16.msra.mxu0 %v4429
    %5819 = vmatpush.bf16.msra.mxu0 %v4428
    %5820 = vmatpush.bf16.msra.mxu0 %v4427
    %5821 = vmatpush.bf16.msra.mxu0 %v4426
    %5822 = vmatpush.bf16.msra.mxu0 %v4425
    %5823 = vmatmul.bf16.gmra.mxu0 %v525
    %v5824 = vpop.f32.mrf.mxu0
    %v5825 = vadd.f32 %v5812, %v5824
    %v5826 = vpop.f32.mrf.mxu0
    %5827 = vdwg.mxu0
    %5828 = vmatpush.bf16.msra.mxu0 %v4440
    %5829 = vmatpush.bf16.msra.mxu0 %v4439
    %5830 = vmatpush.bf16.msra.mxu0 %v4438
    %5831 = vmatpush.bf16.msra.mxu0 %v4437
    %5832 = vmatpush.bf16.msra.mxu0 %v4436
    %5833 = vmatpush.bf16.msra.mxu0 %v4435
    %5834 = vmatpush.bf16.msra.mxu0 %v4434
    %5835 = vmatpush.bf16.msra.mxu0 %v4433
    %5836 = vmatmul.bf16.gmra.mxu0 %v526
    %v5837 = vpop.f32.mrf.mxu0
    %v5838 = vadd.f32 %v5825, %v5837
    %v5839 = vpop.f32.mrf.mxu0
    %5840 = vdwg.mxu0
    %5841 = vmatpush.bf16.msra.mxu0 %v4448
    %5842 = vmatpush.bf16.msra.mxu0 %v4447
    %5843 = vmatpush.bf16.msra.mxu0 %v4446
    %5844 = vmatpush.bf16.msra.mxu0 %v4445
    %5845 = vmatpush.bf16.msra.mxu0 %v4444
    %5846 = vmatpush.bf16.msra.mxu0 %v4443
    %5847 = vmatpush.bf16.msra.mxu0 %v4442
    %5848 = vmatpush.bf16.msra.mxu0 %v4441
    %5849 = vmatmul.bf16.gmra.mxu0 %v527
    %v5850 = vpop.f32.mrf.mxu0
    %v5851 = vadd.f32 %v5838, %v5850
    %v5852 = vpop.f32.mrf.mxu0
    %5853 = vdwg.mxu0
    %5854 = vmatpush.bf16.msra.mxu0 %v4456
    %5855 = vmatpush.bf16.msra.mxu0 %v4455
    %5856 = vmatpush.bf16.msra.mxu0 %v4454
    %5857 = vmatpush.bf16.msra.mxu0 %v4453
    %5858 = vmatpush.bf16.msra.mxu0 %v4452
    %5859 = vmatpush.bf16.msra.mxu0 %v4451
    %5860 = vmatpush.bf16.msra.mxu0 %v4450
    %5861 = vmatpush.bf16.msra.mxu0 %v4449
    %5862 = vmatmul.bf16.gmra.mxu0 %v528
    %v5863 = vpop.f32.mrf.mxu0
    %v5864 = vadd.f32 %v5851, %v5863
    %v5865 = vpop.f32.mrf.mxu0
    %5866 = vdwg.mxu0
    %5867 = vmatpush.bf16.msra.mxu0 %v4464
    %5868 = vmatpush.bf16.msra.mxu0 %v4463
    %5869 = vmatpush.bf16.msra.mxu0 %v4462
    %5870 = vmatpush.bf16.msra.mxu0 %v4461
    %5871 = vmatpush.bf16.msra.mxu0 %v4460
    %5872 = vmatpush.bf16.msra.mxu0 %v4459
    %5873 = vmatpush.bf16.msra.mxu0 %v4458
    %5874 = vmatpush.bf16.msra.mxu0 %v4457
    %5875 = vmatmul.bf16.gmra.mxu0 %v529
    %v5876 = vpop.f32.mrf.mxu0
    %v5877 = vadd.f32 %v5864, %v5876
    %v5878 = vpop.f32.mrf.mxu0
    %5879 = vdwg.mxu0
    %5880 = vmatpush.bf16.msra.mxu0 %v4472
    %5881 = vmatpush.bf16.msra.mxu0 %v4471
    %5882 = vmatpush.bf16.msra.mxu0 %v4470
    %5883 = vmatpush.bf16.msra.mxu0 %v4469
    %5884 = vmatpush.bf16.msra.mxu0 %v4468
    %5885 = vmatpush.bf16.msra.mxu0 %v4467
    %5886 = vmatpush.bf16.msra.mxu0 %v4466
    %5887 = vmatpush.bf16.msra.mxu0 %v4465
    %5888 = vmatmul.bf16.gmra.mxu0 %v530
    %v5889 = vpop.f32.mrf.mxu0
    %v5890 = vadd.f32 %v5877, %v5889
    %v5891 = vpop.f32.mrf.mxu0
    %5892 = vdwg.mxu0
    %5893 = vmatpush.bf16.msra.mxu0 %v4480
    %5894 = vmatpush.bf16.msra.mxu0 %v4479
    %5895 = vmatpush.bf16.msra.mxu0 %v4478
    %5896 = vmatpush.bf16.msra.mxu0 %v4477
    %5897 = vmatpush.bf16.msra.mxu0 %v4476
    %5898 = vmatpush.bf16.msra.mxu0 %v4475
    %5899 = vmatpush.bf16.msra.mxu0 %v4474
    %5900 = vmatpush.bf16.msra.mxu0 %v4473
    %5901 = vmatmul.bf16.gmra.mxu0 %v531
    %v5902 = vpop.f32.mrf.mxu0
    %v5903 = vadd.f32 %v5890, %v5902
    %v5904 = vpop.f32.mrf.mxu0
    %5905 = vdwg.mxu0
    %5906 = vmatpush.bf16.msra.mxu0 %v4488
    %5907 = vmatpush.bf16.msra.mxu0 %v4487
    %5908 = vmatpush.bf16.msra.mxu0 %v4486
    %5909 = vmatpush.bf16.msra.mxu0 %v4485
    %5910 = vmatpush.bf16.msra.mxu0 %v4484
    %5911 = vmatpush.bf16.msra.mxu0 %v4483
    %5912 = vmatpush.bf16.msra.mxu0 %v4482
    %5913 = vmatpush.bf16.msra.mxu0 %v4481
    %5914 = vmatmul.bf16.gmra.mxu0 %v532
    %v5915 = vpop.f32.mrf.mxu0
    %v5916 = vadd.f32 %v5903, %v5915
    %v5917 = vpop.f32.mrf.mxu0
    %5918 = vdwg.mxu0
    %5919 = vmatpush.bf16.msra.mxu0 %v4496
    %5920 = vmatpush.bf16.msra.mxu0 %v4495
    %5921 = vmatpush.bf16.msra.mxu0 %v4494
    %5922 = vmatpush.bf16.msra.mxu0 %v4493
    %5923 = vmatpush.bf16.msra.mxu0 %v4492
    %5924 = vmatpush.bf16.msra.mxu0 %v4491
    %5925 = vmatpush.bf16.msra.mxu0 %v4490
    %5926 = vmatpush.bf16.msra.mxu0 %v4489
    %5927 = vmatmul.bf16.gmra.mxu0 %v533
    %v5928 = vpop.f32.mrf.mxu0
    %v5929 = vadd.f32 %v5916, %v5928
    %v5930 = vpop.f32.mrf.mxu0
    %5931 = vdwg.mxu0
    %5932 = vmatpush.bf16.msra.mxu0 %v4504
    %5933 = vmatpush.bf16.msra.mxu0 %v4503
    %5934 = vmatpush.bf16.msra.mxu0 %v4502
    %5935 = vmatpush.bf16.msra.mxu0 %v4501
    %5936 = vmatpush.bf16.msra.mxu0 %v4500
    %5937 = vmatpush.bf16.msra.mxu0 %v4499
    %5938 = vmatpush.bf16.msra.mxu0 %v4498
    %5939 = vmatpush.bf16.msra.mxu0 %v4497
    %5940 = vmatmul.bf16.gmra.mxu0 %v534
    %v5941 = vpop.f32.mrf.mxu0
    %v5942 = vadd.f32 %v5929, %v5941
    %v5943 = vpop.f32.mrf.mxu0
    %5944 = vdwg.mxu0
    %5945 = vmatpush.bf16.msra.mxu0 %v4512
    %5946 = vmatpush.bf16.msra.mxu0 %v4511
    %5947 = vmatpush.bf16.msra.mxu0 %v4510
    %5948 = vmatpush.bf16.msra.mxu0 %v4509
    %5949 = vmatpush.bf16.msra.mxu0 %v4508
    %5950 = vmatpush.bf16.msra.mxu0 %v4507
    %5951 = vmatpush.bf16.msra.mxu0 %v4506
    %5952 = vmatpush.bf16.msra.mxu0 %v4505
    %5953 = vmatmul.bf16.gmra.mxu0 %v535
    %v5954 = vpop.f32.mrf.mxu0
    %v5955 = vadd.f32 %v5942, %v5954
    %v5956 = vpop.f32.mrf.mxu0
    %5957 = vdwg.mxu0
    %5958 = vmatpush.bf16.msra.mxu0 %v4520
    %5959 = vmatpush.bf16.msra.mxu0 %v4519
    %5960 = vmatpush.bf16.msra.mxu0 %v4518
    %5961 = vmatpush.bf16.msra.mxu0 %v4517
    %5962 = vmatpush.bf16.msra.mxu0 %v4516
    %5963 = vmatpush.bf16.msra.mxu0 %v4515
    %5964 = vmatpush.bf16.msra.mxu0 %v4514
    %5965 = vmatpush.bf16.msra.mxu0 %v4513
    %5966 = vmatmul.bf16.gmra.mxu0 %v536
    %v5967 = vpop.f32.mrf.mxu0
    %v5968 = vadd.f32 %v5955, %v5967
    %v5969 = vpop.f32.mrf.mxu0
    %5970 = vdwg.mxu0
    %5971 = vmatpush.bf16.msra.mxu0 %v4528
    %5972 = vmatpush.bf16.msra.mxu0 %v4527
    %5973 = vmatpush.bf16.msra.mxu0 %v4526
    %5974 = vmatpush.bf16.msra.mxu0 %v4525
    %5975 = vmatpush.bf16.msra.mxu0 %v4524
    %5976 = vmatpush.bf16.msra.mxu0 %v4523
    %5977 = vmatpush.bf16.msra.mxu0 %v4522
    %5978 = vmatpush.bf16.msra.mxu0 %v4521
    %5979 = vmatmul.bf16.gmra.mxu0 %v537
    %v5980 = vpop.f32.mrf.mxu0
    %v5981 = vadd.f32 %v5968, %v5980
    %v5982 = vpop.f32.mrf.mxu0
    %5983 = vdwg.mxu0
    %5984 = vmatpush.bf16.msra.mxu0 %v4536
    %5985 = vmatpush.bf16.msra.mxu0 %v4535
    %5986 = vmatpush.bf16.msra.mxu0 %v4534
    %5987 = vmatpush.bf16.msra.mxu0 %v4533
    %5988 = vmatpush.bf16.msra.mxu0 %v4532
    %5989 = vmatpush.bf16.msra.mxu0 %v4531
    %5990 = vmatpush.bf16.msra.mxu0 %v4530
    %5991 = vmatpush.bf16.msra.mxu0 %v4529
    %5992 = vmatmul.bf16.gmra.mxu0 %v538
    %v5993 = vpop.f32.mrf.mxu0
    %v5994 = vadd.f32 %v5981, %v5993
    %v5995 = vpop.f32.mrf.mxu0
    %5996 = vdwg.mxu0
    %5997 = vmatpush.bf16.msra.mxu0 %v4544
    %5998 = vmatpush.bf16.msra.mxu0 %v4543
    %5999 = vmatpush.bf16.msra.mxu0 %v4542
    %6000 = vmatpush.bf16.msra.mxu0 %v4541
    %6001 = vmatpush.bf16.msra.mxu0 %v4540
    %6002 = vmatpush.bf16.msra.mxu0 %v4539
    %6003 = vmatpush.bf16.msra.mxu0 %v4538
    %6004 = vmatpush.bf16.msra.mxu0 %v4537
    %6005 = vmatmul.bf16.gmra.mxu0 %v539
    %v6006 = vpop.f32.mrf.mxu0
    %v6007 = vadd.f32 %v5994, %v6006
    %v6008 = vpop.f32.mrf.mxu0
    %6009 = vdwg.mxu0
    %6010 = vmatpush.bf16.msra.mxu0 %v4552
    %6011 = vmatpush.bf16.msra.mxu0 %v4551
    %6012 = vmatpush.bf16.msra.mxu0 %v4550
    %6013 = vmatpush.bf16.msra.mxu0 %v4549
    %6014 = vmatpush.bf16.msra.mxu0 %v4548
    %6015 = vmatpush.bf16.msra.mxu0 %v4547
    %6016 = vmatpush.bf16.msra.mxu0 %v4546
    %6017 = vmatpush.bf16.msra.mxu0 %v4545
    %6018 = vmatmul.bf16.gmra.mxu0 %v540
    %v6019 = vpop.f32.mrf.mxu0
    %v6020 = vadd.f32 %v6007, %v6019
    %v6021 = vpop.f32.mrf.mxu0
    %6022 = vdwg.mxu0
    %6023 = vmatpush.bf16.msra.mxu0 %v4560
    %6024 = vmatpush.bf16.msra.mxu0 %v4559
    %6025 = vmatpush.bf16.msra.mxu0 %v4558
    %6026 = vmatpush.bf16.msra.mxu0 %v4557
    %6027 = vmatpush.bf16.msra.mxu0 %v4556
    %6028 = vmatpush.bf16.msra.mxu0 %v4555
    %6029 = vmatpush.bf16.msra.mxu0 %v4554
    %6030 = vmatpush.bf16.msra.mxu0 %v4553
    %6031 = vmatmul.bf16.gmra.mxu0 %v541
    %v6032 = vpop.f32.mrf.mxu0
    %v6033 = vadd.f32 %v6020, %v6032
    %v6034 = vpop.f32.mrf.mxu0
    %6035 = vdwg.mxu0
    %6036 = vmatpush.bf16.msra.mxu0 %v4568
    %6037 = vmatpush.bf16.msra.mxu0 %v4567
    %6038 = vmatpush.bf16.msra.mxu0 %v4566
    %6039 = vmatpush.bf16.msra.mxu0 %v4565
    %6040 = vmatpush.bf16.msra.mxu0 %v4564
    %6041 = vmatpush.bf16.msra.mxu0 %v4563
    %6042 = vmatpush.bf16.msra.mxu0 %v4562
    %6043 = vmatpush.bf16.msra.mxu0 %v4561
    %6044 = vmatmul.bf16.gmra.mxu0 %v542
    %v6045 = vpop.f32.mrf.mxu0
    %v6046 = vadd.f32 %v6033, %v6045
    %v6047 = vpop.f32.mrf.mxu0
    %6048 = vdwg.mxu0
    %6049 = vmatpush.bf16.msra.mxu0 %v4576
    %6050 = vmatpush.bf16.msra.mxu0 %v4575
    %6051 = vmatpush.bf16.msra.mxu0 %v4574
    %6052 = vmatpush.bf16.msra.mxu0 %v4573
    %6053 = vmatpush.bf16.msra.mxu0 %v4572
    %6054 = vmatpush.bf16.msra.mxu0 %v4571
    %6055 = vmatpush.bf16.msra.mxu0 %v4570
    %6056 = vmatpush.bf16.msra.mxu0 %v4569
    %6057 = vmatmul.bf16.gmra.mxu0 %v543
    %v6058 = vpop.f32.mrf.mxu0
    %v6059 = vadd.f32 %v6046, %v6058
    %v6060 = vpop.f32.mrf.mxu0
    %6061 = vdwg.mxu0
    %6062 = vmatpush.bf16.msra.mxu0 %v4584
    %6063 = vmatpush.bf16.msra.mxu0 %v4583
    %6064 = vmatpush.bf16.msra.mxu0 %v4582
    %6065 = vmatpush.bf16.msra.mxu0 %v4581
    %6066 = vmatpush.bf16.msra.mxu0 %v4580
    %6067 = vmatpush.bf16.msra.mxu0 %v4579
    %6068 = vmatpush.bf16.msra.mxu0 %v4578
    %6069 = vmatpush.bf16.msra.mxu0 %v4577
    %6070 = vmatmul.bf16.gmra.mxu0 %v544
    %v6071 = vpop.f32.mrf.mxu0
    %v6072 = vadd.f32 %v6059, %v6071
    %v6073 = vpop.f32.mrf.mxu0
    %6074 = vdwg.mxu0
    %6075 = vmatpush.bf16.msra.mxu0 %v4592
    %6076 = vmatpush.bf16.msra.mxu0 %v4591
    %6077 = vmatpush.bf16.msra.mxu0 %v4590
    %6078 = vmatpush.bf16.msra.mxu0 %v4589
    %6079 = vmatpush.bf16.msra.mxu0 %v4588
    %6080 = vmatpush.bf16.msra.mxu0 %v4587
    %6081 = vmatpush.bf16.msra.mxu0 %v4586
    %6082 = vmatpush.bf16.msra.mxu0 %v4585
    %6083 = vmatmul.bf16.gmra.mxu0 %v545
    %v6084 = vpop.f32.mrf.mxu0
    %v6085 = vadd.f32 %v6072, %v6084
    %v6086 = vpop.f32.mrf.mxu0
    %6087 = vdwg.mxu0
    %6088 = vmatpush.bf16.msra.mxu0 %v4600
    %6089 = vmatpush.bf16.msra.mxu0 %v4599
    %6090 = vmatpush.bf16.msra.mxu0 %v4598
    %6091 = vmatpush.bf16.msra.mxu0 %v4597
    %6092 = vmatpush.bf16.msra.mxu0 %v4596
    %6093 = vmatpush.bf16.msra.mxu0 %v4595
    %6094 = vmatpush.bf16.msra.mxu0 %v4594
    %6095 = vmatpush.bf16.msra.mxu0 %v4593
    %6096 = vmatmul.bf16.gmra.mxu0 %v546
    %v6097 = vpop.f32.mrf.mxu0
    %v6098 = vadd.f32 %v6085, %v6097
    %v6099 = vpop.f32.mrf.mxu0
    %6100 = vdwg.mxu0
    %6101 = vmatpush.bf16.msra.mxu0 %v4608
    %6102 = vmatpush.bf16.msra.mxu0 %v4607
    %6103 = vmatpush.bf16.msra.mxu0 %v4606
    %6104 = vmatpush.bf16.msra.mxu0 %v4605
    %6105 = vmatpush.bf16.msra.mxu0 %v4604
    %6106 = vmatpush.bf16.msra.mxu0 %v4603
    %6107 = vmatpush.bf16.msra.mxu0 %v4602
    %6108 = vmatpush.bf16.msra.mxu0 %v4601
    %6109 = vmatmul.bf16.gmra.mxu0 %v547
    %v6110 = vpop.f32.mrf.mxu0
    %v6111 = vadd.f32 %v6098, %v6110
    %v6112 = vpop.f32.mrf.mxu0
    %6113 = vdwg.mxu0
    %6114 = vmatpush.bf16.msra.mxu0 %v4616
    %6115 = vmatpush.bf16.msra.mxu0 %v4615
    %6116 = vmatpush.bf16.msra.mxu0 %v4614
    %6117 = vmatpush.bf16.msra.mxu0 %v4613
    %6118 = vmatpush.bf16.msra.mxu0 %v4612
    %6119 = vmatpush.bf16.msra.mxu0 %v4611
    %6120 = vmatpush.bf16.msra.mxu0 %v4610
    %6121 = vmatpush.bf16.msra.mxu0 %v4609
    %6122 = vmatmul.bf16.gmra.mxu0 %v548
    %v6123 = vpop.f32.mrf.mxu0
    %v6124 = vadd.f32 %v6111, %v6123
    %v6125 = vpop.f32.mrf.mxu0
    %6126 = vdwg.mxu0
    %6127 = vmatpush.bf16.msra.mxu0 %v4624
    %6128 = vmatpush.bf16.msra.mxu0 %v4623
    %6129 = vmatpush.bf16.msra.mxu0 %v4622
    %6130 = vmatpush.bf16.msra.mxu0 %v4621
    %6131 = vmatpush.bf16.msra.mxu0 %v4620
    %6132 = vmatpush.bf16.msra.mxu0 %v4619
    %6133 = vmatpush.bf16.msra.mxu0 %v4618
    %6134 = vmatpush.bf16.msra.mxu0 %v4617
    %6135 = vmatmul.bf16.gmra.mxu0 %v549
    %v6136 = vpop.f32.mrf.mxu0
    %v6137 = vadd.f32 %v6124, %v6136
    %v6138 = vpop.f32.mrf.mxu0
    %6139 = vdwg.mxu0
    %6140 = vmatpush.bf16.msra.mxu0 %v4632
    %6141 = vmatpush.bf16.msra.mxu0 %v4631
    %6142 = vmatpush.bf16.msra.mxu0 %v4630
    %6143 = vmatpush.bf16.msra.mxu0 %v4629
    %6144 = vmatpush.bf16.msra.mxu0 %v4628
    %6145 = vmatpush.bf16.msra.mxu0 %v4627
    %6146 = vmatpush.bf16.msra.mxu0 %v4626
    %6147 = vmatpush.bf16.msra.mxu0 %v4625
    %6148 = vmatmul.bf16.gmra.mxu0 %v550
    %v6149 = vpop.f32.mrf.mxu0
    %v6150 = vadd.f32 %v6137, %v6149
    %v6151 = vpop.f32.mrf.mxu0
    %6152 = vdwg.mxu0
    %6153 = vmatpush.bf16.msra.mxu0 %v4640
    %6154 = vmatpush.bf16.msra.mxu0 %v4639
    %6155 = vmatpush.bf16.msra.mxu0 %v4638
    %6156 = vmatpush.bf16.msra.mxu0 %v4637
    %6157 = vmatpush.bf16.msra.mxu0 %v4636
    %6158 = vmatpush.bf16.msra.mxu0 %v4635
    %6159 = vmatpush.bf16.msra.mxu0 %v4634
    %6160 = vmatpush.bf16.msra.mxu0 %v4633
    %6161 = vmatmul.bf16.gmra.mxu0 %v551
    %v6162 = vpop.f32.mrf.mxu0
    %v6163 = vadd.f32 %v6150, %v6162
    %v6164 = vpop.f32.mrf.mxu0
    %6165 = vdwg.mxu0
    %6166 = vmatpush.bf16.msra.mxu0 %v4648
    %6167 = vmatpush.bf16.msra.mxu0 %v4647
    %6168 = vmatpush.bf16.msra.mxu0 %v4646
    %6169 = vmatpush.bf16.msra.mxu0 %v4645
    %6170 = vmatpush.bf16.msra.mxu0 %v4644
    %6171 = vmatpush.bf16.msra.mxu0 %v4643
    %6172 = vmatpush.bf16.msra.mxu0 %v4642
    %6173 = vmatpush.bf16.msra.mxu0 %v4641
    %6174 = vmatmul.bf16.gmra.mxu0 %v552
    %v6175 = vpop.f32.mrf.mxu0
    %v6176 = vadd.f32 %v6163, %v6175
    %v6177 = vpop.f32.mrf.mxu0
    %6178 = vdwg.mxu0
    %6179 = vmatpush.bf16.msra.mxu0 %v4656
    %6180 = vmatpush.bf16.msra.mxu0 %v4655
    %6181 = vmatpush.bf16.msra.mxu0 %v4654
    %6182 = vmatpush.bf16.msra.mxu0 %v4653
    %6183 = vmatpush.bf16.msra.mxu0 %v4652
    %6184 = vmatpush.bf16.msra.mxu0 %v4651
    %6185 = vmatpush.bf16.msra.mxu0 %v4650
    %6186 = vmatpush.bf16.msra.mxu0 %v4649
    %6187 = vmatmul.bf16.gmra.mxu0 %v553
    %v6188 = vpop.f32.mrf.mxu0
    %v6189 = vadd.f32 %v6176, %v6188
    %v6190 = vpop.f32.mrf.mxu0
    %6191 = vdwg.mxu0
    %6192 = vmatpush.bf16.msra.mxu0 %v4664
    %6193 = vmatpush.bf16.msra.mxu0 %v4663
    %6194 = vmatpush.bf16.msra.mxu0 %v4662
    %6195 = vmatpush.bf16.msra.mxu0 %v4661
    %6196 = vmatpush.bf16.msra.mxu0 %v4660
    %6197 = vmatpush.bf16.msra.mxu0 %v4659
    %6198 = vmatpush.bf16.msra.mxu0 %v4658
    %6199 = vmatpush.bf16.msra.mxu0 %v4657
    %6200 = vmatmul.bf16.gmra.mxu0 %v554
    %v6201 = vpop.f32.mrf.mxu0
    %v6202 = vadd.f32 %v6189, %v6201
    %v6203 = vpop.f32.mrf.mxu0
    %6204 = vdwg.mxu0
    %6205 = vmatpush.bf16.msra.mxu0 %v4672
    %6206 = vmatpush.bf16.msra.mxu0 %v4671
    %6207 = vmatpush.bf16.msra.mxu0 %v4670
    %6208 = vmatpush.bf16.msra.mxu0 %v4669
    %6209 = vmatpush.bf16.msra.mxu0 %v4668
    %6210 = vmatpush.bf16.msra.mxu0 %v4667
    %6211 = vmatpush.bf16.msra.mxu0 %v4666
    %6212 = vmatpush.bf16.msra.mxu0 %v4665
    %6213 = vmatmul.bf16.gmra.mxu0 %v555
    %v6214 = vpop.f32.mrf.mxu0
    %v6215 = vadd.f32 %v6202, %v6214
    %v6216 = vpop.f32.mrf.mxu0
    %6217 = vdwg.mxu0
    %6218 = vmatpush.bf16.msra.mxu0 0
    %6219 = vmatpush.bf16.msra.mxu0 0
    %6220 = vmatpush.bf16.msra.mxu0 0
    %6221 = vmatpush.bf16.msra.mxu0 0
    %6222 = vmatpush.bf16.msra.mxu0 %v4676
    %6223 = vmatpush.bf16.msra.mxu0 %v4675
    %6224 = vmatpush.bf16.msra.mxu0 %v4674
    %6225 = vmatpush.bf16.msra.mxu0 %v4673
    %6226 = vmatmul.bf16.gmra.mxu0 %v5267
    %v6227 = vpop.f32.mrf.mxu0
    %v6228 = vadd.f32 %v6215, %v6227
    %v6229 = vpop.f32.mrf.mxu0
    %6230 = vdwg.mxu0
    %v6231 = vmax.f32 %v6228, 0.0
    %v6232 = vld [vmem:[%s3] sm:$0xff]
    %v6233 = vld [vmem:[%s3 + $0x8] sm:$0xff]
    %v6234 = vld [vmem:[%s3 + $0x10] sm:$0xff]
    %v6235 = vld [vmem:[%s3 + $0x18] sm:$0xff]
    %v6236 = vld [vmem:[%s3 + $0x20] sm:$0xff]
    %v6237 = vld [vmem:[%s3 + $0x28] sm:$0xff]
    %v6238 = vld [vmem:[%s3 + $0x30] sm:$0xff]
    %v6239 = vld [vmem:[%s3 + $0x38] sm:$0xff]
    %v6240 = vld [vmem:[%s3 + $0x40] sm:$0xff]
    %v6241 = vld [vmem:[%s3 + $0x48] sm:$0xff]
    %v6242 = vld [vmem:[%s3 + $0x50] sm:$0xff]
    %v6243 = vld [vmem:[%s3 + $0x58] sm:$0xff]
    %v6244 = vld [vmem:[%s3 + $0x60] sm:$0xff]
    %v6245 = vld [vmem:[%s3 + $0x68] sm:$0xff]
    %v6246 = vld [vmem:[%s3 + $0x70] sm:$0xff]
    %v6247 = vld [vmem:[%s3 + $0x78] sm:$0xff]
    %v6248 = vld [vmem:[#allocation9] sm:$0x1]
    %v6250 = vperm.slane %v6248, 0
    %6252 = vmatpush.msra.mxu0 %v6247
    %6253 = vmatpush.msra.mxu0 %v6246
    %6254 = vmatpush.msra.mxu0 %v6245
    %6255 = vmatpush.msra.mxu0 %v6244
    %6256 = vmatpush.msra.mxu0 %v6243
    %6257 = vmatpush.msra.mxu0 %v6242
    %6258 = vmatpush.msra.mxu0 %v6241
    %6259 = vmatpush.msra.mxu0 %v6240
    %6260 = vmatpush.msra.mxu0 %v6239
    %6261 = vmatpush.msra.mxu0 %v6238
    %6262 = vmatpush.msra.mxu0 %v6237
    %6263 = vmatpush.msra.mxu0 %v6236
    %6264 = vmatpush.msra.mxu0 %v6235
    %6265 = vmatpush.msra.mxu0 %v6234
    %6266 = vmatpush.msra.mxu0 %v6233
    %6267 = vmatpush.msra.mxu0 %v6232
    %6268 = vmatmul.f32.gmra.mxu0 %v6231
    %v6269 = vpop.f32.mrf.mxu0
    %v6270 = vadd.f32 %v6250, %v6269
    %6271 = vdwg.mxu0
    %v6272 = vmax.f32 %v6270, 0.0
    %v6273 = vld [vmem:[%s5] sm:$0xff]
    %v6274 = vld [vmem:[%s5 + $0x8] sm:$0xff]
    %v6275 = vld [vmem:[%s5 + $0x10] sm:$0xff]
    %v6276 = vld [vmem:[%s5 + $0x18] sm:$0xff]
    %v6277 = vld [vmem:[%s5 + $0x20] sm:$0xff]
    %v6278 = vld [vmem:[%s5 + $0x28] sm:$0xff]
    %v6279 = vld [vmem:[%s5 + $0x30] sm:$0xff]
    %v6280 = vld [vmem:[%s5 + $0x38] sm:$0xff]
    %s6281 = sld [smem:[#allocation11 + $0x1]]
    %v6282 = vstv %s6281
    %v6284 = vsel %vm5265, %v6272, 0
    %6286 = vmatpush.msra.mxu0 0.0
    %6287 = vmatpush.msra.mxu0 0.0
    %6288 = vmatpush.msra.mxu0 0.0
    %6289 = vmatpush.msra.mxu0 0.0
    %6290 = vmatpush.msra.mxu0 0.0
    %6291 = vmatpush.msra.mxu0 0.0
    %6292 = vmatpush.msra.mxu0 0.0
    %6293 = vmatpush.msra.mxu0 0.0
    %6294 = vmatpush.msra.mxu0 %v6280
    %6295 = vmatpush.msra.mxu0 %v6279
    %6296 = vmatpush.msra.mxu0 %v6278
    %6297 = vmatpush.msra.mxu0 %v6277
    %6298 = vmatpush.msra.mxu0 %v6276
    %6299 = vmatpush.msra.mxu0 %v6275
    %6300 = vmatpush.msra.mxu0 %v6274
    %6301 = vmatpush.msra.mxu0 %v6273
    %6302 = vmatmul.f32.gmra.mxu0 %v6284
    %v6303 = vpop.f32.mrf.mxu0
    %v6304 = vadd.f32 %v6282, %v6303
    %6305 = vdwg.mxu0
    %v6306 = vmul.f32 %v6304, 1.442695
    %v6307 = vpow.pop %v6306
    %v6308 = vadd.f32 %v6307, 1.0
    %v6309 = vrcp.pop %v6308
    %v6310 = vsub.f32 1.0, %v6309
    %s6311 = sld [smem:[#allocation11]]
    %6313 = vrot.lane.b32.xlu0 %v6309, 1
    %v6314 = vpop.permute.xlu0 %6313
    %vm6316 = vcmask 7168
    %v6317 = vsel %vm6316, %v6310, %v6314
    %v6318 = vstv %s6311
    %v6319 = vmul.f32 %v6317, %v6318
    %vm6320 = vcmask 15360
    %6321 = vst.msk [vmem:[#allocation12] sm:$0xff] %vm6320, %v6319
    // Predicated region
    $region50: #{tpu_custom_call.1} parent=1 // pred_check
      _
    $region51: #{tpu_custom_call.1} parent=1 // pred_check_branch
      %6323 = sbr.rel (0) target = $region53
    $region52: #{tpu_custom_call.1} parent=1 // pred_region
      %6325 = vsyncadd [#allocation4], 96
      %s6326 = sshll.u32 [#allocation12], 4
      %s6327 = int_to_ptr.vmem [resolvable:$true] %s6326
      %s6328 = sshll.u32 %s7, 4
      %s6329 = int_to_ptr.hbm [resolvable:$true] %s6328
      %6334 = dma.vmem_to_hbm [thread:$0]  %s6327, 32, %s6329, [#allocation4], 32, 32, 2
    $region53: #{tpu_custom_call.1} parent=1 // pred_fallthru
      _
    // Predicated region
    $region54: #{tpu_custom_call.1} parent=1 // pred_check
      _
    $region55: #{tpu_custom_call.1} parent=1 // pred_check_branch
      %6336 = sbr.rel (0) target = $region57
    $region56: #{tpu_custom_call.1} parent=1 // pred_region
      %6338 = dma.done [#allocation4], 128
    $region57: #{tpu_custom_call.1} parent=1 // pred_fallthru
      _
    %6339 = vsyncpa [#allocation3], 1
    %6340 = vsyncpa [#allocation7], 1
    %6341 = vsyncpa [#allocation10], 1
    %6342 = vsyncpa [#allocation4], 1
    %6343 = vsyncpa [#allocation5], 1

</llo_original>
